<compile_context>
chip_gen: v6e
topology: v6e:2x2x1
jax: 0.10.0
libtpu: 0.0.40
codegen_flags: <defaults>
</compile_context>

<pallas_src>
import jax
import jax.numpy as jnp
from jax.experimental import pallas as pl
from jax.experimental.pallas import tpu as pltpu

INPUT_SIZE = 40
HIDDEN = 256
# 128-row batch tiles fill the v5e MXU and stay well inside its 16 MiB scoped
# VMEM; bump to 256 on v6e/v7x (2x256 MXU) for large-batch throughput.
TILE_B_MAX = 128


# ---------------------------------------------------------------------------
# Fused kernel: LSTM over T steps + classifier MLP epilogue, one batch tile.
# ---------------------------------------------------------------------------
def _fused_kernel(x_ref, wih_ref, whh_ref, bias_ref,
                  w1_ref, b1_ref, w2_ref, b2_ref, w3_ref, b3_ref,
                  w45t_ref, b45_ref, out_ref, gates_ref):
    T, TB, I = x_ref.shape                            # time-major (T, B_tile, I)

    # --- prologue: hoisted input projection, one well-shaped MXU call -------
    # x is time-major so the leading-dim merge is a layout no-op and the
    # result rows land in (t, b) order -> a single tile-aligned store into the
    # time-major gates scratch.
    x2d = x_ref[...].reshape(T * TB, I)
    gates_x = jnp.dot(x2d, wih_ref[...],
                      preferred_element_type=jnp.float32) + bias_ref[...]
    gates_ref[...] = gates_x.reshape(T, TB, 4 * HIDDEN)

    whh = whh_ref[...]                                # (H, 4H)
    h = jnp.zeros((TB, HIDDEN), jnp.float32)
    c = jnp.zeros((TB, HIDDEN), jnp.float32)

    # --- recurrence: statically unrolled (T small & static). Each step reads
    # a clean (TB, 4H) slab from VMEM scratch; only h @ W_hh + gate math sits
    # on the serial critical path.
    # TODO(synk): switch to lax.fori_loop(..., unroll=2-4) over gates_ref if T
    # grows beyond ~16-32 (full unroll would bloat code / live ranges).
    for t in range(T):
        gates = gates_ref[t] + jnp.dot(h, whh,
                                       preferred_element_type=jnp.float32)
        i_g = jax.nn.sigmoid(gates[:, 0 * HIDDEN:1 * HIDDEN])
        f_g = jax.nn.sigmoid(gates[:, 1 * HIDDEN:2 * HIDDEN])
        g_g = jnp.tanh(gates[:, 2 * HIDDEN:3 * HIDDEN])
        o_g = jax.nn.sigmoid(gates[:, 3 * HIDDEN:4 * HIDDEN])
        c = f_g * c + i_g * g_g
        h = o_g * jnp.tanh(c)

    # --- epilogue: fused classifier on the last hidden state ----------------
    z = jnp.maximum(jnp.dot(h, w1_ref[...], preferred_element_type=jnp.float32)
                    + b1_ref[...], 0.0)
    z = jnp.maximum(jnp.dot(z, w2_ref[...], preferred_element_type=jnp.float32)
                    + b2_ref[...], 0.0)
    z = jnp.maximum(jnp.dot(z, w3_ref[...], preferred_element_type=jnp.float32)
                    + b3_ref[...], 0.0)               # (TB, 32)
    # Linear(32,16) and Linear(16,1) have no ReLU between them: folded into a
    # single lane reduction against w45t = (W4 @ W5)^T, shape (1, 32).
    out_ref[...] = (jnp.sum(z * w45t_ref[...], axis=-1, keepdims=True)
                    + b45_ref[...])


# ---------------------------------------------------------------------------
# Wrapper
# ---------------------------------------------------------------------------
@jax.jit
def base_model_forward(x, lstm_p, mlp_p):
    B, T, I = x.shape
    tile_b = min(TILE_B_MAX, ((B + 7) // 8) * 8)      # sublane-aligned tile
    n_tiles = pl.cdiv(B, tile_b)
    B_pad = n_tiles * tile_b
    if B_pad != B:
        # Padded rows run through the LSTM/MLP (zeros -> finite) and are
        # dropped at the end; numerically benign.
        x = jnp.pad(x, ((0, B_pad - B), (0, 0), (0, 0)))
    # Time-major layout so each recurrence step reads a tile-aligned slab.
    x_tm = jnp.transpose(x, (1, 0, 2))                # (T, B_pad, I)

    args = (x_tm,
            lstm_p["wih_t"], lstm_p["whh_t"], lstm_p["bias"],
            mlp_p["w1"], mlp_p["b1"],
            mlp_p["w2"], mlp_p["b2"],
            mlp_p["w3"], mlp_p["b3"],
            mlp_p["w45t"], mlp_p["b45"])

    def const_spec(a):                                # weight: whole array, resident
        return pl.BlockSpec(a.shape, lambda i, _nd=a.ndim: (0,) * _nd)

    in_specs = ([pl.BlockSpec((T, tile_b, I), lambda i: (0, i, 0))]
                + [const_spec(a) for a in args[1:]])
    out_specs = pl.BlockSpec((tile_b, 1), lambda i: (i, 0))
    # NOTE: out last-dim of 1 is lane-sparse; negligible at small B.  For very
    # large B, accumulate a lane-dense (1, B_tile) slab instead.

    # Deterministic VMEM budget: double-buffered weights + x tile + output,
    # plus gates scratch and per-step temporaries, with headroom.
    f32b, lane = 4, 128
    w_bytes = sum(int(a.size) for a in args[1:]) * f32b
    x_bytes = T * tile_b * lane * f32b                # I padded to 128 lanes
    out_bytes = tile_b * lane * f32b
    gates_bytes = T * tile_b * 4 * HIDDEN * f32b
    tmp_bytes = 8 * tile_b * 4 * HIDDEN * f32b
    vmem_limit = min(2 * (w_bytes + x_bytes + out_bytes)
                     + gates_bytes + tmp_bytes + (4 << 20), 100 << 20)

    out = pl.pallas_call(
        _fused_kernel,
        out_shape=jax.ShapeDtypeStruct((B_pad, 1), jnp.float32),
        grid_spec=pltpu.PrefetchScalarGridSpec(
            num_scalar_prefetch=0,
            grid=(n_tiles,),
            in_specs=in_specs,
            out_specs=out_specs,
            scratch_shapes=[pltpu.VMEM((T, tile_b, 4 * HIDDEN), jnp.float32)],
        ),
        compiler_params=pltpu.CompilerParams(
            dimension_semantics=("parallel",),
            vmem_limit_bytes=int(vmem_limit),
        ),
    )(*args)
    return out[:B]


# ---------------------------------------------------------------------------
# Parameter construction (deterministic, matches nn.Module shapes)
# ---------------------------------------------------------------------------
def init_params(key):
    ks = jax.random.split(key, 14)
    s = 0.05

    def rnd(k, shape):
        return jax.random.normal(k, shape, dtype=jnp.float32) * s

    # LSTM: PyTorch stores W_ih (4H, I), W_hh (4H, H); we store transposed.
    wih_t = rnd(ks[0], (INPUT_SIZE, 4 * HIDDEN))
    whh_t = rnd(ks[1], (HIDDEN, 4 * HIDDEN))
    b_ih = rnd(ks[2], (4 * HIDDEN,))
    b_hh = rnd(ks[3], (4 * HIDDEN,))
    lstm_p = dict(wih_t=wih_t, whh_t=whh_t,
                  bias=(b_ih + b_hh).reshape(1, 4 * HIDDEN))

    # Classifier: Linear weights stored as (in, out).
    w4 = rnd(ks[10], (32, 16))
    b4 = rnd(ks[11], (1, 16))
    w5t = rnd(ks[12], (1, 16))            # Linear(16, 1) weight, stored (1, 16)
    b5 = rnd(ks[13], (1, 1))
    # Fold Linear(32,16) -> Linear(16,1) (no ReLU in between) into one layer.
    w45t = (w4 @ w5t.T).T                 # (1, 32)
    b45 = b4 @ w5t.T + b5                 # (1, 1)

    mlp_p = dict(
        w1=rnd(ks[4], (256, 128)), b1=rnd(ks[5], (1, 128)),
        w2=rnd(ks[6], (128, 64)),  b2=rnd(ks[7], (1, 64)),
        w3=rnd(ks[8], (64, 32)),   b3=rnd(ks[9], (1, 32)),
        w4=w4, b4=b4, w5t=w5t, b5=b5,     # raw weights (reference path)
        w45t=w45t, b45=b45,               # folded weights (kernel path)
    )
    return lstm_p, mlp_p


# ---------------------------------------------------------------------------
# Pure-JAX reference (mirrors PyTorch nn.LSTM + nn.Sequential semantics,
# uses the UNFOLDED last two Linear layers — also validates the folding).
# ---------------------------------------------------------------------------
def reference_forward(x, lstm_p, mlp_p):
    B = x.shape[0]
    h0 = jnp.zeros((B, HIDDEN), jnp.float32)
    c0 = jnp.zeros((B, HIDDEN), jnp.float32)

    def step(carry, x_t):
        h, c = carry
        gates = x_t @ lstm_p["wih_t"] + h @ lstm_p["whh_t"] + lstm_p["bias"]
        i = jax.nn.sigmoid(gates[:, 0 * HIDDEN:1 * HIDDEN])
        f = jax.nn.sigmoid(gates[:, 1 * HIDDEN:2 * HIDDEN])
        g = jnp.tanh(gates[:, 2 * HIDDEN:3 * HIDDEN])
        o = jax.nn.sigmoid(gates[:, 3 * HIDDEN:4 * HIDDEN])
        c_new = f * c + i * g
        h_new = o * jnp.tanh(c_new)
        return (h_new, c_new), None

    (h_last, _), _ = jax.lax.scan(step, (h0, c0), jnp.transpose(x, (1, 0, 2)))

    h = jnp.maximum(h_last @ mlp_p["w1"] + mlp_p["b1"], 0.0)
    h = jnp.maximum(h @ mlp_p["w2"] + mlp_p["b2"], 0.0)
    h = jnp.maximum(h @ mlp_p["w3"] + mlp_p["b3"], 0.0)
    h = h @ mlp_p["w4"] + mlp_p["b4"]                       # Linear(32, 16)
    return jnp.sum(h * mlp_p["w5t"], axis=-1, keepdims=True) + mlp_p["b5"]


if __name__ == "__main__":
    B, T = 2, 8
    key = jax.random.PRNGKey(0)
    k_params, k_x = jax.random.split(key)
    lstm_p, mlp_p = init_params(k_params)
    x = jax.random.normal(k_x, (B, T, INPUT_SIZE), dtype=jnp.float32)

    out = base_model_forward(x, lstm_p, mlp_p)
    out = jax.block_until_ready(out)

    ref = reference_forward(x, lstm_p, mlp_p)
    assert out.shape == (B, 1), out.shape
    assert jnp.allclose(out, ref, atol=1e-5, rtol=1e-5), (out, ref)
    print("KERNEL_OK")
</pallas_src>

<mosaic_0001>
module attributes {stable_mosaic.version = 11 : i64} {
  func.func @_fused_kernel(%arg0: i32, %arg1: memref<8x8x40xf32, #tpu.memory_space<vmem>>, %arg2: memref<40x1024xf32, #tpu.memory_space<vmem>>, %arg3: memref<256x1024xf32, #tpu.memory_space<vmem>>, %arg4: memref<1x1024xf32, #tpu.memory_space<vmem>>, %arg5: memref<256x128xf32, #tpu.memory_space<vmem>>, %arg6: memref<1x128xf32, #tpu.memory_space<vmem>>, %arg7: memref<128x64xf32, #tpu.memory_space<vmem>>, %arg8: memref<1x64xf32, #tpu.memory_space<vmem>>, %arg9: memref<64x32xf32, #tpu.memory_space<vmem>>, %arg10: memref<1x32xf32, #tpu.memory_space<vmem>>, %arg11: memref<1x32xf32, #tpu.memory_space<vmem>>, %arg12: memref<1x1xf32, #tpu.memory_space<vmem>>, %arg13: memref<8x1xf32, #tpu.memory_space<vmem>>, %arg14: memref<8x8x1024xf32, #tpu.memory_space<vmem>>) attributes {dimension_semantics = [#tpu.dimension_semantics<parallel>], iteration_bounds = array<i64: 1>, scalar_prefetch = 0 : i64, scratch_operands = 1 : i64, tpu.core_type = #tpu.core_type<tc>, window_params = [{transform_indices = @transform_0, window_bounds = array<i64: 8, 8, 40>}, {pipeline_mode = #tpu.pipeline_mode<synchronous>, transform_indices = @transform_1, window_bounds = array<i64: 40, 1024>}, {pipeline_mode = #tpu.pipeline_mode<synchronous>, transform_indices = @transform_2, window_bounds = array<i64: 256, 1024>}, {pipeline_mode = #tpu.pipeline_mode<synchronous>, transform_indices = @transform_3, window_bounds = array<i64: 1, 1024>}, {pipeline_mode = #tpu.pipeline_mode<synchronous>, transform_indices = @transform_4, window_bounds = array<i64: 256, 128>}, {pipeline_mode = #tpu.pipeline_mode<synchronous>, transform_indices = @transform_5, window_bounds = array<i64: 1, 128>}, {pipeline_mode = #tpu.pipeline_mode<synchronous>, transform_indices = @transform_6, window_bounds = array<i64: 128, 64>}, {pipeline_mode = #tpu.pipeline_mode<synchronous>, transform_indices = @transform_7, window_bounds = array<i64: 1, 64>}, {pipeline_mode = #tpu.pipeline_mode<synchronous>, transform_indices = @transform_8, window_bounds = array<i64: 64, 32>}, {pipeline_mode = #tpu.pipeline_mode<synchronous>, transform_indices = @transform_9, window_bounds = array<i64: 1, 32>}, {pipeline_mode = #tpu.pipeline_mode<synchronous>, transform_indices = @transform_10, window_bounds = array<i64: 1, 32>}, {pipeline_mode = #tpu.pipeline_mode<synchronous>, transform_indices = @transform_11, window_bounds = array<i64: 1, 1>}, {transform_indices = @transform_12, window_bounds = array<i64: 8, 1>}]} {
    %c0 = arith.constant 0 : index
    %c0_0 = arith.constant 0 : index
    %c0_1 = arith.constant 0 : index
    %0 = vector.load %arg1[%c0, %c0_0, %c0_1] : memref<8x8x40xf32, #tpu.memory_space<vmem>>, vector<8x8x40xf32>
    %1 = vector.shape_cast %0 : vector<8x8x40xf32> to vector<64x40xf32>
    %c0_2 = arith.constant 0 : index
    %c0_3 = arith.constant 0 : index
    %2 = vector.load %arg2[%c0_2, %c0_3] : memref<40x1024xf32, #tpu.memory_space<vmem>>, vector<40x1024xf32>
    %cst = arith.constant dense<0.000000e+00> : vector<64x1024xf32>
    %3 = tpu.matmul %1, %2, %cst {dimension_numbers = #tpu.dot_dimension_numbers<[1], [0], [0], [1], [0, 0, 1, 1], [], []>} : vector<64x40xf32>, vector<40x1024xf32>, vector<64x1024xf32> -> vector<64x1024xf32>
    %c0_4 = arith.constant 0 : index
    %c0_5 = arith.constant 0 : index
    %4 = vector.load %arg4[%c0_4, %c0_5] : memref<1x1024xf32, #tpu.memory_space<vmem>>, vector<1x1024xf32>
    %5 = vector.broadcast %4 : vector<1x1024xf32> to vector<64x1024xf32>
    %6 = arith.addf %3, %5 : vector<64x1024xf32>
    %7 = vector.shape_cast %6 : vector<64x1024xf32> to vector<8x8x1024xf32>
    %c0_6 = arith.constant 0 : index
    %c0_7 = arith.constant 0 : index
    %c0_8 = arith.constant 0 : index
    %8 = vector.load %arg14[%c0_6, %c0_7, %c0_8] : memref<8x8x1024xf32, #tpu.memory_space<vmem>>, vector<8x8x1024xf32>
    tpu.vector_store %arg14[%c0_6, %c0_7, %c0_8], %7 {strides = array<i32>} : memref<8x8x1024xf32, #tpu.memory_space<vmem>>, vector<8x8x1024xf32>,
    %c0_9 = arith.constant 0 : index
    %c0_10 = arith.constant 0 : index
    %9 = vector.load %arg3[%c0_9, %c0_10] : memref<256x1024xf32, #tpu.memory_space<vmem>>, vector<256x1024xf32>
    %cst_11 = arith.constant 0.000000e+00 : f32
    %10 = vector.broadcast %cst_11 : f32 to vector<8x256xf32>
    %cst_12 = arith.constant 0.000000e+00 : f32
    %11 = vector.broadcast %cst_12 : f32 to vector<8x256xf32>
    %c0_13 = arith.constant 0 : index
    %c0_14 = arith.constant 0 : index
    %c0_15 = arith.constant 0 : index
    %12 = vector.load %arg14[%c0_13, %c0_14, %c0_15] : memref<8x8x1024xf32, #tpu.memory_space<vmem>>, vector<1x8x1024xf32>
    %13 = vector.shape_cast %12 : vector<1x8x1024xf32> to vector<8x1024xf32>
    %cst_16 = arith.constant dense<0.000000e+00> : vector<8x1024xf32>
    %14 = tpu.matmul %10, %9, %cst_16 {dimension_numbers = #tpu.dot_dimension_numbers<[1], [0], [0], [1], [0, 0, 1, 1], [], []>} : vector<8x256xf32>, vector<256x1024xf32>, vector<8x1024xf32> -> vector<8x1024xf32>
    %15 = arith.addf %13, %14 : vector<8x1024xf32>
    %16 = vector.extract_strided_slice %15 {offsets = [0, 0], sizes = [8, 256], strides = [1, 1]} : vector<8x1024xf32> to vector<8x256xf32>
    %17 = arith.negf %16 : vector<8x256xf32>
    %18 = math.exp %17 : vector<8x256xf32>
    %cst_17 = arith.constant 1.000000e+00 : f32
    %19 = vector.broadcast %cst_17 : f32 to vector<8x256xf32>
    %20 = arith.addf %19, %18 : vector<8x256xf32>
    %21 = arith.divf %19, %20 : vector<8x256xf32>
    %22 = vector.extract_strided_slice %15 {offsets = [0, 256], sizes = [8, 256], strides = [1, 1]} : vector<8x1024xf32> to vector<8x256xf32>
    %23 = arith.negf %22 : vector<8x256xf32>
    %24 = math.exp %23 : vector<8x256xf32>
    %cst_18 = arith.constant 1.000000e+00 : f32
    %25 = vector.broadcast %cst_18 : f32 to vector<8x256xf32>
    %26 = arith.addf %25, %24 : vector<8x256xf32>
    %27 = arith.divf %25, %26 : vector<8x256xf32>
    %28 = vector.extract_strided_slice %15 {offsets = [0, 512], sizes = [8, 256], strides = [1, 1]} : vector<8x1024xf32> to vector<8x256xf32>
    %29 = math.tanh %28 : vector<8x256xf32>
    %30 = vector.extract_strided_slice %15 {offsets = [0, 768], sizes = [8, 256], strides = [1, 1]} : vector<8x1024xf32> to vector<8x256xf32>
    %31 = arith.negf %30 : vector<8x256xf32>
    %32 = math.exp %31 : vector<8x256xf32>
    %cst_19 = arith.constant 1.000000e+00 : f32
    %33 = vector.broadcast %cst_19 : f32 to vector<8x256xf32>
    %34 = arith.addf %33, %32 : vector<8x256xf32>
    %35 = arith.divf %33, %34 : vector<8x256xf32>
    %36 = arith.mulf %27, %11 : vector<8x256xf32>
    %37 = arith.mulf %21, %29 : vector<8x256xf32>
    %38 = arith.addf %36, %37 : vector<8x256xf32>
    %39 = math.tanh %38 : vector<8x256xf32>
    %40 = arith.mulf %35, %39 : vector<8x256xf32>
    %c1 = arith.constant 1 : index
    %c0_20 = arith.constant 0 : index
    %c0_21 = arith.constant 0 : index
    %41 = vector.load %arg14[%c1, %c0_20, %c0_21] : memref<8x8x1024xf32, #tpu.memory_space<vmem>>, vector<1x8x1024xf32>
    %42 = vector.shape_cast %41 : vector<1x8x1024xf32> to vector<8x1024xf32>
    %cst_22 = arith.constant dense<0.000000e+00> : vector<8x1024xf32>
    %43 = tpu.matmul %40, %9, %cst_22 {dimension_numbers = #tpu.dot_dimension_numbers<[1], [0], [0], [1], [0, 0, 1, 1], [], []>} : vector<8x256xf32>, vector<256x1024xf32>, vector<8x1024xf32> -> vector<8x1024xf32>
    %44 = arith.addf %42, %43 : vector<8x1024xf32>
    %45 = vector.extract_strided_slice %44 {offsets = [0, 0], sizes = [8, 256], strides = [1, 1]} : vector<8x1024xf32> to vector<8x256xf32>
    %46 = arith.negf %45 : vector<8x256xf32>
    %47 = math.exp %46 : vector<8x256xf32>
    %cst_23 = arith.constant 1.000000e+00 : f32
    %48 = vector.broadcast %cst_23 : f32 to vector<8x256xf32>
    %49 = arith.addf %48, %47 : vector<8x256xf32>
    %50 = arith.divf %48, %49 : vector<8x256xf32>
    %51 = vector.extract_strided_slice %44 {offsets = [0, 256], sizes = [8, 256], strides = [1, 1]} : vector<8x1024xf32> to vector<8x256xf32>
    %52 = arith.negf %51 : vector<8x256xf32>
    %53 = math.exp %52 : vector<8x256xf32>
    %cst_24 = arith.constant 1.000000e+00 : f32
    %54 = vector.broadcast %cst_24 : f32 to vector<8x256xf32>
    %55 = arith.addf %54, %53 : vector<8x256xf32>
    %56 = arith.divf %54, %55 : vector<8x256xf32>
    %57 = vector.extract_strided_slice %44 {offsets = [0, 512], sizes = [8, 256], strides = [1, 1]} : vector<8x1024xf32> to vector<8x256xf32>
    %58 = math.tanh %57 : vector<8x256xf32>
    %59 = vector.extract_strided_slice %44 {offsets = [0, 768], sizes = [8, 256], strides = [1, 1]} : vector<8x1024xf32> to vector<8x256xf32>
    %60 = arith.negf %59 : vector<8x256xf32>
    %61 = math.exp %60 : vector<8x256xf32>
    %cst_25 = arith.constant 1.000000e+00 : f32
    %62 = vector.broadcast %cst_25 : f32 to vector<8x256xf32>
    %63 = arith.addf %62, %61 : vector<8x256xf32>
    %64 = arith.divf %62, %63 : vector<8x256xf32>
    %65 = arith.mulf %56, %38 : vector<8x256xf32>
    %66 = arith.mulf %50, %58 : vector<8x256xf32>
    %67 = arith.addf %65, %66 : vector<8x256xf32>
    %68 = math.tanh %67 : vector<8x256xf32>
    %69 = arith.mulf %64, %68 : vector<8x256xf32>
    %c2 = arith.constant 2 : index
    %c0_26 = arith.constant 0 : index
    %c0_27 = arith.constant 0 : index
    %70 = vector.load %arg14[%c2, %c0_26, %c0_27] : memref<8x8x1024xf32, #tpu.memory_space<vmem>>, vector<1x8x1024xf32>
    %71 = vector.shape_cast %70 : vector<1x8x1024xf32> to vector<8x1024xf32>
    %cst_28 = arith.constant dense<0.000000e+00> : vector<8x1024xf32>
    %72 = tpu.matmul %69, %9, %cst_28 {dimension_numbers = #tpu.dot_dimension_numbers<[1], [0], [0], [1], [0, 0, 1, 1], [], []>} : vector<8x256xf32>, vector<256x1024xf32>, vector<8x1024xf32> -> vector<8x1024xf32>
    %73 = arith.addf %71, %72 : vector<8x1024xf32>
    %74 = vector.extract_strided_slice %73 {offsets = [0, 0], sizes = [8, 256], strides = [1, 1]} : vector<8x1024xf32> to vector<8x256xf32>
    %75 = arith.negf %74 : vector<8x256xf32>
    %76 = math.exp %75 : vector<8x256xf32>
    %cst_29 = arith.constant 1.000000e+00 : f32
    %77 = vector.broadcast %cst_29 : f32 to vector<8x256xf32>
    %78 = arith.addf %77, %76 : vector<8x256xf32>
    %79 = arith.divf %77, %78 : vector<8x256xf32>
    %80 = vector.extract_strided_slice %73 {offsets = [0, 256], sizes = [8, 256], strides = [1, 1]} : vector<8x1024xf32> to vector<8x256xf32>
    %81 = arith.negf %80 : vector<8x256xf32>
    %82 = math.exp %81 : vector<8x256xf32>
    %cst_30 = arith.constant 1.000000e+00 : f32
    %83 = vector.broadcast %cst_30 : f32 to vector<8x256xf32>
    %84 = arith.addf %83, %82 : vector<8x256xf32>
    %85 = arith.divf %83, %84 : vector<8x256xf32>
    %86 = vector.extract_strided_slice %73 {offsets = [0, 512], sizes = [8, 256], strides = [1, 1]} : vector<8x1024xf32> to vector<8x256xf32>
    %87 = math.tanh %86 : vector<8x256xf32>
    %88 = vector.extract_strided_slice %73 {offsets = [0, 768], sizes = [8, 256], strides = [1, 1]} : vector<8x1024xf32> to vector<8x256xf32>
    %89 = arith.negf %88 : vector<8x256xf32>
    %90 = math.exp %89 : vector<8x256xf32>
    %cst_31 = arith.constant 1.000000e+00 : f32
    %91 = vector.broadcast %cst_31 : f32 to vector<8x256xf32>
    %92 = arith.addf %91, %90 : vector<8x256xf32>
    %93 = arith.divf %91, %92 : vector<8x256xf32>
    %94 = arith.mulf %85, %67 : vector<8x256xf32>
    %95 = arith.mulf %79, %87 : vector<8x256xf32>
    %96 = arith.addf %94, %95 : vector<8x256xf32>
    %97 = math.tanh %96 : vector<8x256xf32>
    %98 = arith.mulf %93, %97 : vector<8x256xf32>
    %c3 = arith.constant 3 : index
    %c0_32 = arith.constant 0 : index
    %c0_33 = arith.constant 0 : index
    %99 = vector.load %arg14[%c3, %c0_32, %c0_33] : memref<8x8x1024xf32, #tpu.memory_space<vmem>>, vector<1x8x1024xf32>
    %100 = vector.shape_cast %99 : vector<1x8x1024xf32> to vector<8x1024xf32>
    %cst_34 = arith.constant dense<0.000000e+00> : vector<8x1024xf32>
    %101 = tpu.matmul %98, %9, %cst_34 {dimension_numbers = #tpu.dot_dimension_numbers<[1], [0], [0], [1], [0, 0, 1, 1], [], []>} : vector<8x256xf32>, vector<256x1024xf32>, vector<8x1024xf32> -> vector<8x1024xf32>
    %102 = arith.addf %100, %101 : vector<8x1024xf32>
    %103 = vector.extract_strided_slice %102 {offsets = [0, 0], sizes = [8, 256], strides = [1, 1]} : vector<8x1024xf32> to vector<8x256xf32>
    %104 = arith.negf %103 : vector<8x256xf32>
    %105 = math.exp %104 : vector<8x256xf32>
    %cst_35 = arith.constant 1.000000e+00 : f32
    %106 = vector.broadcast %cst_35 : f32 to vector<8x256xf32>
    %107 = arith.addf %106, %105 : vector<8x256xf32>
    %108 = arith.divf %106, %107 : vector<8x256xf32>
    %109 = vector.extract_strided_slice %102 {offsets = [0, 256], sizes = [8, 256], strides = [1, 1]} : vector<8x1024xf32> to vector<8x256xf32>
    %110 = arith.negf %109 : vector<8x256xf32>
    %111 = math.exp %110 : vector<8x256xf32>
    %cst_36 = arith.constant 1.000000e+00 : f32
    %112 = vector.broadcast %cst_36 : f32 to vector<8x256xf32>
    %113 = arith.addf %112, %111 : vector<8x256xf32>
    %114 = arith.divf %112, %113 : vector<8x256xf32>
    %115 = vector.extract_strided_slice %102 {offsets = [0, 512], sizes = [8, 256], strides = [1, 1]} : vector<8x1024xf32> to vector<8x256xf32>
    %116 = math.tanh %115 : vector<8x256xf32>
    %117 = vector.extract_strided_slice %102 {offsets = [0, 768], sizes = [8, 256], strides = [1, 1]} : vector<8x1024xf32> to vector<8x256xf32>
    %118 = arith.negf %117 : vector<8x256xf32>
    %119 = math.exp %118 : vector<8x256xf32>
    %cst_37 = arith.constant 1.000000e+00 : f32
    %120 = vector.broadcast %cst_37 : f32 to vector<8x256xf32>
    %121 = arith.addf %120, %119 : vector<8x256xf32>
    %122 = arith.divf %120, %121 : vector<8x256xf32>
    %123 = arith.mulf %114, %96 : vector<8x256xf32>
    %124 = arith.mulf %108, %116 : vector<8x256xf32>
    %125 = arith.addf %123, %124 : vector<8x256xf32>
    %126 = math.tanh %125 : vector<8x256xf32>
    %127 = arith.mulf %122, %126 : vector<8x256xf32>
    %c4 = arith.constant 4 : index
    %c0_38 = arith.constant 0 : index
    %c0_39 = arith.constant 0 : index
    %128 = vector.load %arg14[%c4, %c0_38, %c0_39] : memref<8x8x1024xf32, #tpu.memory_space<vmem>>, vector<1x8x1024xf32>
    %129 = vector.shape_cast %128 : vector<1x8x1024xf32> to vector<8x1024xf32>
    %cst_40 = arith.constant dense<0.000000e+00> : vector<8x1024xf32>
    %130 = tpu.matmul %127, %9, %cst_40 {dimension_numbers = #tpu.dot_dimension_numbers<[1], [0], [0], [1], [0, 0, 1, 1], [], []>} : vector<8x256xf32>, vector<256x1024xf32>, vector<8x1024xf32> -> vector<8x1024xf32>
    %131 = arith.addf %129, %130 : vector<8x1024xf32>
    %132 = vector.extract_strided_slice %131 {offsets = [0, 0], sizes = [8, 256], strides = [1, 1]} : vector<8x1024xf32> to vector<8x256xf32>
    %133 = arith.negf %132 : vector<8x256xf32>
    %134 = math.exp %133 : vector<8x256xf32>
    %cst_41 = arith.constant 1.000000e+00 : f32
    %135 = vector.broadcast %cst_41 : f32 to vector<8x256xf32>
    %136 = arith.addf %135, %134 : vector<8x256xf32>
    %137 = arith.divf %135, %136 : vector<8x256xf32>
    %138 = vector.extract_strided_slice %131 {offsets = [0, 256], sizes = [8, 256], strides = [1, 1]} : vector<8x1024xf32> to vector<8x256xf32>
    %139 = arith.negf %138 : vector<8x256xf32>
    %140 = math.exp %139 : vector<8x256xf32>
    %cst_42 = arith.constant 1.000000e+00 : f32
    %141 = vector.broadcast %cst_42 : f32 to vector<8x256xf32>
    %142 = arith.addf %141, %140 : vector<8x256xf32>
    %143 = arith.divf %141, %142 : vector<8x256xf32>
    %144 = vector.extract_strided_slice %131 {offsets = [0, 512], sizes = [8, 256], strides = [1, 1]} : vector<8x1024xf32> to vector<8x256xf32>
    %145 = math.tanh %144 : vector<8x256xf32>
    %146 = vector.extract_strided_slice %131 {offsets = [0, 768], sizes = [8, 256], strides = [1, 1]} : vector<8x1024xf32> to vector<8x256xf32>
    %147 = arith.negf %146 : vector<8x256xf32>
    %148 = math.exp %147 : vector<8x256xf32>
    %cst_43 = arith.constant 1.000000e+00 : f32
    %149 = vector.broadcast %cst_43 : f32 to vector<8x256xf32>
    %150 = arith.addf %149, %148 : vector<8x256xf32>
    %151 = arith.divf %149, %150 : vector<8x256xf32>
    %152 = arith.mulf %143, %125 : vector<8x256xf32>
    %153 = arith.mulf %137, %145 : vector<8x256xf32>
    %154 = arith.addf %152, %153 : vector<8x256xf32>
    %155 = math.tanh %154 : vector<8x256xf32>
    %156 = arith.mulf %151, %155 : vector<8x256xf32>
    %c5 = arith.constant 5 : index
    %c0_44 = arith.constant 0 : index
    %c0_45 = arith.constant 0 : index
    %157 = vector.load %arg14[%c5, %c0_44, %c0_45] : memref<8x8x1024xf32, #tpu.memory_space<vmem>>, vector<1x8x1024xf32>
    %158 = vector.shape_cast %157 : vector<1x8x1024xf32> to vector<8x1024xf32>
    %cst_46 = arith.constant dense<0.000000e+00> : vector<8x1024xf32>
    %159 = tpu.matmul %156, %9, %cst_46 {dimension_numbers = #tpu.dot_dimension_numbers<[1], [0], [0], [1], [0, 0, 1, 1], [], []>} : vector<8x256xf32>, vector<256x1024xf32>, vector<8x1024xf32> -> vector<8x1024xf32>
    %160 = arith.addf %158, %159 : vector<8x1024xf32>
    %161 = vector.extract_strided_slice %160 {offsets = [0, 0], sizes = [8, 256], strides = [1, 1]} : vector<8x1024xf32> to vector<8x256xf32>
    %162 = arith.negf %161 : vector<8x256xf32>
    %163 = math.exp %162 : vector<8x256xf32>
    %cst_47 = arith.constant 1.000000e+00 : f32
    %164 = vector.broadcast %cst_47 : f32 to vector<8x256xf32>
    %165 = arith.addf %164, %163 : vector<8x256xf32>
    %166 = arith.divf %164, %165 : vector<8x256xf32>
    %167 = vector.extract_strided_slice %160 {offsets = [0, 256], sizes = [8, 256], strides = [1, 1]} : vector<8x1024xf32> to vector<8x256xf32>
    %168 = arith.negf %167 : vector<8x256xf32>
    %169 = math.exp %168 : vector<8x256xf32>
    %cst_48 = arith.constant 1.000000e+00 : f32
    %170 = vector.broadcast %cst_48 : f32 to vector<8x256xf32>
    %171 = arith.addf %170, %169 : vector<8x256xf32>
    %172 = arith.divf %170, %171 : vector<8x256xf32>
    %173 = vector.extract_strided_slice %160 {offsets = [0, 512], sizes = [8, 256], strides = [1, 1]} : vector<8x1024xf32> to vector<8x256xf32>
    %174 = math.tanh %173 : vector<8x256xf32>
    %175 = vector.extract_strided_slice %160 {offsets = [0, 768], sizes = [8, 256], strides = [1, 1]} : vector<8x1024xf32> to vector<8x256xf32>
    %176 = arith.negf %175 : vector<8x256xf32>
    %177 = math.exp %176 : vector<8x256xf32>
    %cst_49 = arith.constant 1.000000e+00 : f32
    %178 = vector.broadcast %cst_49 : f32 to vector<8x256xf32>
    %179 = arith.addf %178, %177 : vector<8x256xf32>
    %180 = arith.divf %178, %179 : vector<8x256xf32>
    %181 = arith.mulf %172, %154 : vector<8x256xf32>
    %182 = arith.mulf %166, %174 : vector<8x256xf32>
    %183 = arith.addf %181, %182 : vector<8x256xf32>
    %184 = math.tanh %183 : vector<8x256xf32>
    %185 = arith.mulf %180, %184 : vector<8x256xf32>
    %c6 = arith.constant 6 : index
    %c0_50 = arith.constant 0 : index
    %c0_51 = arith.constant 0 : index
    %186 = vector.load %arg14[%c6, %c0_50, %c0_51] : memref<8x8x1024xf32, #tpu.memory_space<vmem>>, vector<1x8x1024xf32>
    %187 = vector.shape_cast %186 : vector<1x8x1024xf32> to vector<8x1024xf32>
    %cst_52 = arith.constant dense<0.000000e+00> : vector<8x1024xf32>
    %188 = tpu.matmul %185, %9, %cst_52 {dimension_numbers = #tpu.dot_dimension_numbers<[1], [0], [0], [1], [0, 0, 1, 1], [], []>} : vector<8x256xf32>, vector<256x1024xf32>, vector<8x1024xf32> -> vector<8x1024xf32>
    %189 = arith.addf %187, %188 : vector<8x1024xf32>
    %190 = vector.extract_strided_slice %189 {offsets = [0, 0], sizes = [8, 256], strides = [1, 1]} : vector<8x1024xf32> to vector<8x256xf32>
    %191 = arith.negf %190 : vector<8x256xf32>
    %192 = math.exp %191 : vector<8x256xf32>
    %cst_53 = arith.constant 1.000000e+00 : f32
    %193 = vector.broadcast %cst_53 : f32 to vector<8x256xf32>
    %194 = arith.addf %193, %192 : vector<8x256xf32>
    %195 = arith.divf %193, %194 : vector<8x256xf32>
    %196 = vector.extract_strided_slice %189 {offsets = [0, 256], sizes = [8, 256], strides = [1, 1]} : vector<8x1024xf32> to vector<8x256xf32>
    %197 = arith.negf %196 : vector<8x256xf32>
    %198 = math.exp %197 : vector<8x256xf32>
    %cst_54 = arith.constant 1.000000e+00 : f32
    %199 = vector.broadcast %cst_54 : f32 to vector<8x256xf32>
    %200 = arith.addf %199, %198 : vector<8x256xf32>
    %201 = arith.divf %199, %200 : vector<8x256xf32>
    %202 = vector.extract_strided_slice %189 {offsets = [0, 512], sizes = [8, 256], strides = [1, 1]} : vector<8x1024xf32> to vector<8x256xf32>
    %203 = math.tanh %202 : vector<8x256xf32>
    %204 = vector.extract_strided_slice %189 {offsets = [0, 768], sizes = [8, 256], strides = [1, 1]} : vector<8x1024xf32> to vector<8x256xf32>
    %205 = arith.negf %204 : vector<8x256xf32>
    %206 = math.exp %205 : vector<8x256xf32>
    %cst_55 = arith.constant 1.000000e+00 : f32
    %207 = vector.broadcast %cst_55 : f32 to vector<8x256xf32>
    %208 = arith.addf %207, %206 : vector<8x256xf32>
    %209 = arith.divf %207, %208 : vector<8x256xf32>
    %210 = arith.mulf %201, %183 : vector<8x256xf32>
    %211 = arith.mulf %195, %203 : vector<8x256xf32>
    %212 = arith.addf %210, %211 : vector<8x256xf32>
    %213 = math.tanh %212 : vector<8x256xf32>
    %214 = arith.mulf %209, %213 : vector<8x256xf32>
    %c7 = arith.constant 7 : index
    %c0_56 = arith.constant 0 : index
    %c0_57 = arith.constant 0 : index
    %215 = vector.load %arg14[%c7, %c0_56, %c0_57] : memref<8x8x1024xf32, #tpu.memory_space<vmem>>, vector<1x8x1024xf32>
    %216 = vector.shape_cast %215 : vector<1x8x1024xf32> to vector<8x1024xf32>
    %cst_58 = arith.constant dense<0.000000e+00> : vector<8x1024xf32>
    %217 = tpu.matmul %214, %9, %cst_58 {dimension_numbers = #tpu.dot_dimension_numbers<[1], [0], [0], [1], [0, 0, 1, 1], [], []>} : vector<8x256xf32>, vector<256x1024xf32>, vector<8x1024xf32> -> vector<8x1024xf32>
    %218 = arith.addf %216, %217 : vector<8x1024xf32>
    %219 = vector.extract_strided_slice %218 {offsets = [0, 0], sizes = [8, 256], strides = [1, 1]} : vector<8x1024xf32> to vector<8x256xf32>
    %220 = arith.negf %219 : vector<8x256xf32>
    %221 = math.exp %220 : vector<8x256xf32>
    %cst_59 = arith.constant 1.000000e+00 : f32
    %222 = vector.broadcast %cst_59 : f32 to vector<8x256xf32>
    %223 = arith.addf %222, %221 : vector<8x256xf32>
    %224 = arith.divf %222, %223 : vector<8x256xf32>
    %225 = vector.extract_strided_slice %218 {offsets = [0, 256], sizes = [8, 256], strides = [1, 1]} : vector<8x1024xf32> to vector<8x256xf32>
    %226 = arith.negf %225 : vector<8x256xf32>
    %227 = math.exp %226 : vector<8x256xf32>
    %cst_60 = arith.constant 1.000000e+00 : f32
    %228 = vector.broadcast %cst_60 : f32 to vector<8x256xf32>
    %229 = arith.addf %228, %227 : vector<8x256xf32>
    %230 = arith.divf %228, %229 : vector<8x256xf32>
    %231 = vector.extract_strided_slice %218 {offsets = [0, 512], sizes = [8, 256], strides = [1, 1]} : vector<8x1024xf32> to vector<8x256xf32>
    %232 = math.tanh %231 : vector<8x256xf32>
    %233 = vector.extract_strided_slice %218 {offsets = [0, 768], sizes = [8, 256], strides = [1, 1]} : vector<8x1024xf32> to vector<8x256xf32>
    %234 = arith.negf %233 : vector<8x256xf32>
    %235 = math.exp %234 : vector<8x256xf32>
    %cst_61 = arith.constant 1.000000e+00 : f32
    %236 = vector.broadcast %cst_61 : f32 to vector<8x256xf32>
    %237 = arith.addf %236, %235 : vector<8x256xf32>
    %238 = arith.divf %236, %237 : vector<8x256xf32>
    %239 = arith.mulf %230, %212 : vector<8x256xf32>
    %240 = arith.mulf %224, %232 : vector<8x256xf32>
    %241 = arith.addf %239, %240 : vector<8x256xf32>
    %242 = math.tanh %241 : vector<8x256xf32>
    %243 = arith.mulf %238, %242 : vector<8x256xf32>
    %c0_62 = arith.constant 0 : index
    %c0_63 = arith.constant 0 : index
    %244 = vector.load %arg5[%c0_62, %c0_63] : memref<256x128xf32, #tpu.memory_space<vmem>>, vector<256x128xf32>
    %cst_64 = arith.constant dense<0.000000e+00> : vector<8x128xf32>
    %245 = tpu.matmul %243, %244, %cst_64 {dimension_numbers = #tpu.dot_dimension_numbers<[1], [0], [0], [1], [0, 0, 1, 1], [], []>} : vector<8x256xf32>, vector<256x128xf32>, vector<8x128xf32> -> vector<8x128xf32>
    %c0_65 = arith.constant 0 : index
    %c0_66 = arith.constant 0 : index
    %246 = vector.load %arg6[%c0_65, %c0_66] : memref<1x128xf32, #tpu.memory_space<vmem>>, vector<1x128xf32>
    %247 = vector.broadcast %246 : vector<1x128xf32> to vector<8x128xf32>
    %248 = arith.addf %245, %247 : vector<8x128xf32>
    %cst_67 = arith.constant 0.000000e+00 : f32
    %249 = vector.broadcast %cst_67 : f32 to vector<8x128xf32>
    %250 = arith.maximumf %248, %249 : vector<8x128xf32>
    %c0_68 = arith.constant 0 : index
    %c0_69 = arith.constant 0 : index
    %251 = vector.load %arg7[%c0_68, %c0_69] : memref<128x64xf32, #tpu.memory_space<vmem>>, vector<128x64xf32>
    %cst_70 = arith.constant dense<0.000000e+00> : vector<8x64xf32>
    %252 = tpu.matmul %250, %251, %cst_70 {dimension_numbers = #tpu.dot_dimension_numbers<[1], [0], [0], [1], [0, 0, 1, 1], [], []>} : vector<8x128xf32>, vector<128x64xf32>, vector<8x64xf32> -> vector<8x64xf32>
    %c0_71 = arith.constant 0 : index
    %c0_72 = arith.constant 0 : index
    %253 = vector.load %arg8[%c0_71, %c0_72] : memref<1x64xf32, #tpu.memory_space<vmem>>, vector<1x64xf32>
    %254 = vector.broadcast %253 : vector<1x64xf32> to vector<8x64xf32>
    %255 = arith.addf %252, %254 : vector<8x64xf32>
    %cst_73 = arith.constant 0.000000e+00 : f32
    %256 = vector.broadcast %cst_73 : f32 to vector<8x64xf32>
    %257 = arith.maximumf %255, %256 : vector<8x64xf32>
    %c0_74 = arith.constant 0 : index
    %c0_75 = arith.constant 0 : index
    %258 = vector.load %arg9[%c0_74, %c0_75] : memref<64x32xf32, #tpu.memory_space<vmem>>, vector<64x32xf32>
    %cst_76 = arith.constant dense<0.000000e+00> : vector<8x32xf32>
    %259 = tpu.matmul %257, %258, %cst_76 {dimension_numbers = #tpu.dot_dimension_numbers<[1], [0], [0], [1], [0, 0, 1, 1], [], []>} : vector<8x64xf32>, vector<64x32xf32>, vector<8x32xf32> -> vector<8x32xf32>
    %c0_77 = arith.constant 0 : index
    %c0_78 = arith.constant 0 : index
    %260 = vector.load %arg10[%c0_77, %c0_78] : memref<1x32xf32, #tpu.memory_space<vmem>>, vector<1x32xf32>
    %261 = vector.broadcast %260 : vector<1x32xf32> to vector<8x32xf32>
    %262 = arith.addf %259, %261 : vector<8x32xf32>
    %cst_79 = arith.constant 0.000000e+00 : f32
    %263 = vector.broadcast %cst_79 : f32 to vector<8x32xf32>
    %264 = arith.maximumf %262, %263 : vector<8x32xf32>
    %c0_80 = arith.constant 0 : index
    %c0_81 = arith.constant 0 : index
    %265 = vector.load %arg11[%c0_80, %c0_81] : memref<1x32xf32, #tpu.memory_space<vmem>>, vector<1x32xf32>
    %266 = vector.broadcast %265 : vector<1x32xf32> to vector<8x32xf32>
    %267 = arith.mulf %264, %266 : vector<8x32xf32>
    %cst_82 = arith.constant dense<0.000000e+00> : vector<8xf32>
    %268 = vector.multi_reduction <add>, %267, %cst_82 [1] : vector<8x32xf32> to vector<8xf32>
    %269 = vector.shape_cast %268 : vector<8xf32> to vector<8x1xf32>
    %c0_83 = arith.constant 0 : index
    %c0_84 = arith.constant 0 : index
    %270 = vector.load %arg12[%c0_83, %c0_84] : memref<1x1xf32, #tpu.memory_space<vmem>>, vector<1x1xf32>
    %271 = vector.broadcast %270 : vector<1x1xf32> to vector<8x1xf32>
    %272 = arith.addf %269, %271 : vector<8x1xf32>
    %c0_85 = arith.constant 0 : index
    %c0_86 = arith.constant 0 : index
    %273 = vector.load %arg13[%c0_85, %c0_86] : memref<8x1xf32, #tpu.memory_space<vmem>>, vector<8x1xf32>
    tpu.vector_store %arg13[%c0_85, %c0_86], %272 {strides = array<i32>} : memref<8x1xf32, #tpu.memory_space<vmem>>, vector<8x1xf32>,
    return
  }
  func.func @transform_0(%arg0: i32) -> (i32, i32, i32) {
    %c0_i32 = arith.constant 0 : i32
    %c0_i32_0 = arith.constant 0 : i32
    %c0_i32_1 = arith.constant 0 : i32
    return %c0_i32, %arg0, %c0_i32_0 : i32, i32, i32
  }
  func.func @transform_1(%arg0: i32) -> (i32, i32) {
    %c0_i32 = arith.constant 0 : i32
    %c0_i32_0 = arith.constant 0 : i32
    %c0_i32_1 = arith.constant 0 : i32
    return %c0_i32, %c0_i32_0 : i32, i32
  }
  func.func @transform_2(%arg0: i32) -> (i32, i32) {
    %c0_i32 = arith.constant 0 : i32
    %c0_i32_0 = arith.constant 0 : i32
    %c0_i32_1 = arith.constant 0 : i32
    return %c0_i32, %c0_i32_0 : i32, i32
  }
  func.func @transform_3(%arg0: i32) -> (i32, i32) {
    %c0_i32 = arith.constant 0 : i32
    %c0_i32_0 = arith.constant 0 : i32
    %c0_i32_1 = arith.constant 0 : i32
    return %c0_i32, %c0_i32_0 : i32, i32
  }
  func.func @transform_4(%arg0: i32) -> (i32, i32) {
    %c0_i32 = arith.constant 0 : i32
    %c0_i32_0 = arith.constant 0 : i32
    %c0_i32_1 = arith.constant 0 : i32
    return %c0_i32, %c0_i32_0 : i32, i32
  }
  func.func @transform_5(%arg0: i32) -> (i32, i32) {
    %c0_i32 = arith.constant 0 : i32
    %c0_i32_0 = arith.constant 0 : i32
    %c0_i32_1 = arith.constant 0 : i32
    return %c0_i32, %c0_i32_0 : i32, i32
  }
  func.func @transform_6(%arg0: i32) -> (i32, i32) {
    %c0_i32 = arith.constant 0 : i32
    %c0_i32_0 = arith.constant 0 : i32
    %c0_i32_1 = arith.constant 0 : i32
    return %c0_i32, %c0_i32_0 : i32, i32
  }
  func.func @transform_7(%arg0: i32) -> (i32, i32) {
    %c0_i32 = arith.constant 0 : i32
    %c0_i32_0 = arith.constant 0 : i32
    %c0_i32_1 = arith.constant 0 : i32
    return %c0_i32, %c0_i32_0 : i32, i32
  }
  func.func @transform_8(%arg0: i32) -> (i32, i32) {
    %c0_i32 = arith.constant 0 : i32
    %c0_i32_0 = arith.constant 0 : i32
    %c0_i32_1 = arith.constant 0 : i32
    return %c0_i32, %c0_i32_0 : i32, i32
  }
  func.func @transform_9(%arg0: i32) -> (i32, i32) {
    %c0_i32 = arith.constant 0 : i32
    %c0_i32_0 = arith.constant 0 : i32
    %c0_i32_1 = arith.constant 0 : i32
    return %c0_i32, %c0_i32_0 : i32, i32
  }
  func.func @transform_10(%arg0: i32) -> (i32, i32) {
    %c0_i32 = arith.constant 0 : i32
    %c0_i32_0 = arith.constant 0 : i32
    %c0_i32_1 = arith.constant 0 : i32
    return %c0_i32, %c0_i32_0 : i32, i32
  }
  func.func @transform_11(%arg0: i32) -> (i32, i32) {
    %c0_i32 = arith.constant 0 : i32
    %c0_i32_0 = arith.constant 0 : i32
    %c0_i32_1 = arith.constant 0 : i32
    return %c0_i32, %c0_i32_0 : i32, i32
  }
  func.func @transform_12(%arg0: i32) -> (i32, i32) {
    %c0_i32 = arith.constant 0 : i32
    %c0_i32_0 = arith.constant 0 : i32
    return %arg0, %c0_i32 : i32, i32
  }
}

</mosaic_0001>

<llo_original>
// kernel: base_model_forward.1
$region0: #{base_model_forward.1}
  #allocation0 [shape = 'u32[]', space=smem, size = 0x4, offset = 0x4, fixed_abs, tag = 'smem constant byte address 0x4 - core index']
  #allocation1 [shape = 'u32[144,128]{1,0:T(1,128)}', space=vmem, size = 0x12000, scoped, tag = 'internal scratch']
  #allocation2 [shape = 'f32[8,8,1024]{2,1,0:T(8,128)}', space=vmem, size = 0x40000, scoped, tag = 'scratch operand']
  #allocation3 [shape = 'f32[1,1]{1,0:T(1,128)S(1)}', space=vmem, size = 0x200, scoped, tag = 'scoped memory for base_model_forward.1']
  %s0 = inlined_call_operand.vmem [shape: f32[8,8,40], index: 0, kind: input, shape index: {}]
  %s1 = inlined_call_operand.vmem [shape: f32[40,1024], index: 1, kind: input, shape index: {}]
  %s2 = inlined_call_operand.hbm [shape: f32[256,1024], index: 2, kind: input, shape index: {}]
  %s3 = inlined_call_operand.hbm [shape: f32[1,1024], index: 3, kind: input, shape index: {}]
  %s4 = inlined_call_operand.hbm [shape: f32[256,128], index: 4, kind: input, shape index: {}]
  %s5 = inlined_call_operand.hbm [shape: f32[1,128], index: 5, kind: input, shape index: {}]
  %s6 = inlined_call_operand.vmem [shape: f32[128,64], index: 6, kind: input, shape index: {}]
  %s7 = inlined_call_operand.hbm [shape: f32[1,64], index: 7, kind: input, shape index: {}]
  %s8 = inlined_call_operand.vmem [shape: f32[64,32], index: 8, kind: input, shape index: {}]
  %s9 = inlined_call_operand.hbm [shape: f32[1,32], index: 9, kind: input, shape index: {}]
  %s10 = inlined_call_operand.hbm [shape: f32[1,32], index: 10, kind: input, shape index: {}]
  %s11 = inlined_call_operand.<no memory space> [shape: f32[1,1], index: 11, kind: input, shape index: {}]
  %s12 = inlined_call_operand.vmem [shape: f32[8,1], index: 12, kind: output, shape index: {}]
  %s13 = sld [smem:[#allocation0]]
  $region86: #{base_model_forward.1} parent=0
    _
  %s15 = ssub.s32 1, %s13
  %s16 = scalar_select 0, %s15, %s13
  %v17 = vstv %s11
  %18 = vst [vmem:[#allocation3] sm:$0x1] %v17
  $region1: #{base_model_forward.1} parent=0
    #allocation4 [shape = 'u8[1048576]{0}', space=vmem, size = 0x100000, scoped, tag = 'input window, operand 2, single buffered']
    #allocation5 [shape = 's32[1]{0}', space=sflag, size = 0x4, scoped, tag = 'scoped memory for base_model_forward.1']
    #allocation6 [shape = 'u8[4096]{0}', space=vmem, size = 0x1000, scoped, tag = 'input window, operand 3, single buffered']
    #allocation7 [shape = 's32[1]{0}', space=sflag, size = 0x4, scoped, tag = 'scoped memory for base_model_forward.1']
    #allocation8 [shape = 'u8[131072]{0}', space=vmem, size = 0x20000, scoped, tag = 'input window, operand 4, single buffered']
    #allocation9 [shape = 'u8[512]{0}', space=vmem, size = 0x400, scoped, tag = 'input window, operand 5, single buffered']
    #allocation10 [shape = 's32[1]{0}', space=sflag, size = 0x4, scoped, tag = 'scoped memory for base_model_forward.1']
    #allocation11 [shape = 'u8[512]{0}', space=vmem, size = 0x400, scoped, tag = 'input window, operand 7, single buffered']
    #allocation12 [shape = 'u8[512]{0}', space=vmem, size = 0x400, scoped, tag = 'input window, operand 9, single buffered']
    #allocation13 [shape = 's32[1]{0}', space=sflag, size = 0x4, scoped, tag = 'scoped memory for base_model_forward.1']
    #allocation14 [shape = 'u8[512]{0}', space=vmem, size = 0x400, scoped, tag = 'input window, operand 10, single buffered']
    %19 = vsyncpa [#allocation5], 0
    %20 = vsyncpa [#allocation7], 0
    %21 = vsyncpa [#allocation10], 0
    %22 = vsyncpa [#allocation13], 0
    // Predicated region
    $region2: #{base_model_forward.1} parent=1 // pred_check
      _
    $region3: #{base_model_forward.1} parent=1 // pred_check_branch
      %24 = sbr.rel (0) target = $region5
    $region4: #{base_model_forward.1} parent=1 // pred_region
      _
    $region5: #{base_model_forward.1} parent=1 // pred_fallthru
      _
    // Predicated region
    $region6: #{base_model_forward.1} parent=1 // pred_check
      _
    $region7: #{base_model_forward.1} parent=1 // pred_check_branch
      %26 = sbr.rel (0) target = $region9
    $region8: #{base_model_forward.1} parent=1 // pred_region
      _
    $region9: #{base_model_forward.1} parent=1 // pred_fallthru
      _
    // Predicated region
    $region10: #{base_model_forward.1} parent=1 // pred_check
      _
    $region11: #{base_model_forward.1} parent=1 // pred_check_branch
      %28 = sbr.rel (0) target = $region13
    $region12: #{base_model_forward.1} parent=1 // pred_region
      %s30 = ssub.s32 32768, 32768
      %31 = vsyncadd [#allocation5], %s30
      %s32 = sshll.u32 [#allocation4], 4
      %s33 = int_to_ptr.vmem [resolvable:$true] %s32
      %38 = dma.hbm_to_vmem [thread:$0]  %s2, 32768, %s33, [#allocation5], 1024, 1024, 64
    $region13: #{base_model_forward.1} parent=1 // pred_fallthru
      _
    // Predicated region
    $region14: #{base_model_forward.1} parent=1 // pred_check
      _
    $region15: #{base_model_forward.1} parent=1 // pred_check_branch
      %40 = sbr.rel (0) target = $region17
    $region16: #{base_model_forward.1} parent=1 // pred_region
      %s42 = ssub.s32 128, 128
      %43 = vsyncadd [#allocation7], %s42
      %s45 = sshll.u32 [#allocation6], 4
      %s46 = int_to_ptr.vmem [resolvable:$true] %s45
      %48 = dma.hbm_to_vmem [thread:$0]  %s3, 128, %s46, [#allocation7]
    $region17: #{base_model_forward.1} parent=1 // pred_fallthru
      _
    // Predicated region
    $region18: #{base_model_forward.1} parent=1 // pred_check
      _
    $region19: #{base_model_forward.1} parent=1 // pred_check_branch
      %50 = sbr.rel (0) target = $region21
    $region20: #{base_model_forward.1} parent=1 // pred_region
      %s52 = ssub.s32 4096, 4096
      %53 = vsyncadd [#allocation7], %s52
      %s54 = sshll.u32 [#allocation8], 4
      %s55 = int_to_ptr.vmem [resolvable:$true] %s54
      %60 = dma.hbm_to_vmem [thread:$0]  %s4, 4096, %s55, [#allocation7], 128, 128, 8
    $region21: #{base_model_forward.1} parent=1 // pred_fallthru
      _
    // Predicated region
    $region22: #{base_model_forward.1} parent=1 // pred_check
      _
    $region23: #{base_model_forward.1} parent=1 // pred_check_branch
      %62 = sbr.rel (0) target = $region25
    $region24: #{base_model_forward.1} parent=1 // pred_region
      %s64 = ssub.s32 16, 16
      %65 = vsyncadd [#allocation10], %s64
      %s67 = sshll.u32 [#allocation9], 4
      %s68 = int_to_ptr.vmem [resolvable:$true] %s67
      %70 = dma.hbm_to_vmem [thread:$0]  %s5, 16, %s68, [#allocation10]
    $region25: #{base_model_forward.1} parent=1 // pred_fallthru
      _
    // Predicated region
    $region26: #{base_model_forward.1} parent=1 // pred_check
      _
    $region27: #{base_model_forward.1} parent=1 // pred_check_branch
      %72 = sbr.rel (0) target = $region29
    $region28: #{base_model_forward.1} parent=1 // pred_region
      _
    $region29: #{base_model_forward.1} parent=1 // pred_fallthru
      _
    // Predicated region
    $region30: #{base_model_forward.1} parent=1 // pred_check
      _
    $region31: #{base_model_forward.1} parent=1 // pred_check_branch
      %74 = sbr.rel (0) target = $region33
    $region32: #{base_model_forward.1} parent=1 // pred_region
      %s76 = ssub.s32 16, 16
      %77 = vsyncadd [#allocation10], %s76
      %s79 = sshll.u32 [#allocation11], 4
      %s80 = int_to_ptr.vmem [resolvable:$true] %s79
      %82 = dma.hbm_to_vmem [thread:$0]  %s7, 16, %s80, [#allocation10]
    $region33: #{base_model_forward.1} parent=1 // pred_fallthru
      _
    // Predicated region
    $region34: #{base_model_forward.1} parent=1 // pred_check
      _
    $region35: #{base_model_forward.1} parent=1 // pred_check_branch
      %84 = sbr.rel (0) target = $region37
    $region36: #{base_model_forward.1} parent=1 // pred_region
      _
    $region37: #{base_model_forward.1} parent=1 // pred_fallthru
      _
    // Predicated region
    $region38: #{base_model_forward.1} parent=1 // pred_check
      _
    $region39: #{base_model_forward.1} parent=1 // pred_check_branch
      %86 = sbr.rel (0) target = $region41
    $region40: #{base_model_forward.1} parent=1 // pred_region
      %s88 = ssub.s32 16, 16
      %89 = vsyncadd [#allocation13], %s88
      %s91 = sshll.u32 [#allocation12], 4
      %s92 = int_to_ptr.vmem [resolvable:$true] %s91
      %94 = dma.hbm_to_vmem [thread:$0]  %s9, 16, %s92, [#allocation13]
    $region41: #{base_model_forward.1} parent=1 // pred_fallthru
      _
    // Predicated region
    $region42: #{base_model_forward.1} parent=1 // pred_check
      _
    $region43: #{base_model_forward.1} parent=1 // pred_check_branch
      %96 = sbr.rel (0) target = $region45
    $region44: #{base_model_forward.1} parent=1 // pred_region
      %s98 = ssub.s32 16, 16
      %99 = vsyncadd [#allocation13], %s98
      %s101 = sshll.u32 [#allocation14], 4
      %s102 = int_to_ptr.vmem [resolvable:$true] %s101
      %104 = dma.hbm_to_vmem [thread:$0]  %s10, 16, %s102, [#allocation13]
    $region45: #{base_model_forward.1} parent=1 // pred_fallthru
      _
    // Predicated region
    $region46: #{base_model_forward.1} parent=1 // pred_check
      _
    $region47: #{base_model_forward.1} parent=1 // pred_check_branch
      %106 = sbr.rel (0) target = $region49
    $region48: #{base_model_forward.1} parent=1 // pred_region
      _
    $region49: #{base_model_forward.1} parent=1 // pred_fallthru
      _
    // Predicated region
    $region50: #{base_model_forward.1} parent=1 // pred_check
      _
    $region51: #{base_model_forward.1} parent=1 // pred_check_branch
      %108 = sbr.rel (0) target = $region53
    $region52: #{base_model_forward.1} parent=1 // pred_region
      %109 = dma.done [#allocation5], 32768
    $region53: #{base_model_forward.1} parent=1 // pred_fallthru
      _
    // Predicated region
    $region54: #{base_model_forward.1} parent=1 // pred_check
      _
    $region55: #{base_model_forward.1} parent=1 // pred_check_branch
      %111 = sbr.rel (0) target = $region57
    $region56: #{base_model_forward.1} parent=1 // pred_region
      %112 = dma.done [#allocation7], 128
    $region57: #{base_model_forward.1} parent=1 // pred_fallthru
      _
    // Predicated region
    $region58: #{base_model_forward.1} parent=1 // pred_check
      _
    $region59: #{base_model_forward.1} parent=1 // pred_check_branch
      %114 = sbr.rel (0) target = $region61
    $region60: #{base_model_forward.1} parent=1 // pred_region
      %115 = dma.done [#allocation7], 4096
    $region61: #{base_model_forward.1} parent=1 // pred_fallthru
      _
    // Predicated region
    $region62: #{base_model_forward.1} parent=1 // pred_check
      _
    $region63: #{base_model_forward.1} parent=1 // pred_check_branch
      %117 = sbr.rel (0) target = $region65
    $region64: #{base_model_forward.1} parent=1 // pred_region
      %118 = dma.done [#allocation10], 16
    $region65: #{base_model_forward.1} parent=1 // pred_fallthru
      _
    // Predicated region
    $region66: #{base_model_forward.1} parent=1 // pred_check
      _
    $region67: #{base_model_forward.1} parent=1 // pred_check_branch
      %120 = sbr.rel (0) target = $region69
    $region68: #{base_model_forward.1} parent=1 // pred_region
      %121 = dma.done [#allocation10], 16
    $region69: #{base_model_forward.1} parent=1 // pred_fallthru
      _
    // Predicated region
    $region70: #{base_model_forward.1} parent=1 // pred_check
      _
    $region71: #{base_model_forward.1} parent=1 // pred_check_branch
      %123 = sbr.rel (0) target = $region73
    $region72: #{base_model_forward.1} parent=1 // pred_region
      %124 = dma.done [#allocation13], 16
    $region73: #{base_model_forward.1} parent=1 // pred_fallthru
      _
    // Predicated region
    $region74: #{base_model_forward.1} parent=1 // pred_check
      _
    $region75: #{base_model_forward.1} parent=1 // pred_check_branch
      %126 = sbr.rel (0) target = $region77
    $region76: #{base_model_forward.1} parent=1 // pred_region
      %127 = dma.done [#allocation13], 16
    $region77: #{base_model_forward.1} parent=1 // pred_fallthru
      _
    %v128 = vld [vmem:[%s0] sm:$0xff]
    %v129 = vld [vmem:[%s0 + $0x8] sm:$0xff]
    %v130 = vld [vmem:[%s0 + $0x10] sm:$0xff]
    %v131 = vld [vmem:[%s0 + $0x18] sm:$0xff]
    %v132 = vld [vmem:[%s0 + $0x20] sm:$0xff]
    %v133 = vld [vmem:[%s0 + $0x28] sm:$0xff]
    %v134 = vld [vmem:[%s0 + $0x30] sm:$0xff]
    %v135 = vld [vmem:[%s0 + $0x38] sm:$0xff]
    %v136 = vld [vmem:[%s1] sm:$0xff]
    %v137 = vld [vmem:[%s1 + $0x8] sm:$0xff]
    %v138 = vld [vmem:[%s1 + $0x10] sm:$0xff]
    %v139 = vld [vmem:[%s1 + $0x18] sm:$0xff]
    %v140 = vld [vmem:[%s1 + $0x20] sm:$0xff]
    %v141 = vld [vmem:[%s1 + $0x28] sm:$0xff]
    %v142 = vld [vmem:[%s1 + $0x30] sm:$0xff]
    %v143 = vld [vmem:[%s1 + $0x38] sm:$0xff]
    %v144 = vld [vmem:[%s1 + $0x40] sm:$0xff]
    %v145 = vld [vmem:[%s1 + $0x48] sm:$0xff]
    %v146 = vld [vmem:[%s1 + $0x50] sm:$0xff]
    %v147 = vld [vmem:[%s1 + $0x58] sm:$0xff]
    %v148 = vld [vmem:[%s1 + $0x60] sm:$0xff]
    %v149 = vld [vmem:[%s1 + $0x68] sm:$0xff]
    %v150 = vld [vmem:[%s1 + $0x70] sm:$0xff]
    %v151 = vld [vmem:[%s1 + $0x78] sm:$0xff]
    %v152 = vld [vmem:[%s1 + $0x80] sm:$0xff]
    %v153 = vld [vmem:[%s1 + $0x88] sm:$0xff]
    %v154 = vld [vmem:[%s1 + $0x90] sm:$0xff]
    %v155 = vld [vmem:[%s1 + $0x98] sm:$0xff]
    %v156 = vld [vmem:[%s1 + $0xa0] sm:$0xff]
    %v157 = vld [vmem:[%s1 + $0xa8] sm:$0xff]
    %v158 = vld [vmem:[%s1 + $0xb0] sm:$0xff]
    %v159 = vld [vmem:[%s1 + $0xb8] sm:$0xff]
    %v160 = vld [vmem:[%s1 + $0xc0] sm:$0xff]
    %v161 = vld [vmem:[%s1 + $0xc8] sm:$0xff]
    %v162 = vld [vmem:[%s1 + $0xd0] sm:$0xff]
    %v163 = vld [vmem:[%s1 + $0xd8] sm:$0xff]
    %v164 = vld [vmem:[%s1 + $0xe0] sm:$0xff]
    %v165 = vld [vmem:[%s1 + $0xe8] sm:$0xff]
    %v166 = vld [vmem:[%s1 + $0xf0] sm:$0xff]
    %v167 = vld [vmem:[%s1 + $0xf8] sm:$0xff]
    %v168 = vld [vmem:[%s1 + $0x100] sm:$0xff]
    %v169 = vld [vmem:[%s1 + $0x108] sm:$0xff]
    %v170 = vld [vmem:[%s1 + $0x110] sm:$0xff]
    %v171 = vld [vmem:[%s1 + $0x118] sm:$0xff]
    %v172 = vld [vmem:[%s1 + $0x120] sm:$0xff]
    %v173 = vld [vmem:[%s1 + $0x128] sm:$0xff]
    %v174 = vld [vmem:[%s1 + $0x130] sm:$0xff]
    %v175 = vld [vmem:[%s1 + $0x138] sm:$0xff]
    %v176 = vld [vmem:[#allocation6] sm:$0xff]
    %v178 = vlaneseq
    %v179 = vshrl.u32 %v178, 7
    %v180 = vsub.s32 0, %v179
    %v181 = vrot.slane %v176, %v180
    %v182 = vlaneseq
    %v183 = vshrl.u32 %v182, 7
    %v184 = vsub.s32 1, %v183
    %v185 = vrot.slane %v176, %v184
    %v186 = vlaneseq
    %v187 = vshrl.u32 %v186, 7
    %v188 = vsub.s32 2, %v187
    %v189 = vrot.slane %v176, %v188
    %v190 = vlaneseq
    %v191 = vshrl.u32 %v190, 7
    %v192 = vsub.s32 3, %v191
    %v193 = vrot.slane %v176, %v192
    %v194 = vlaneseq
    %v195 = vshrl.u32 %v194, 7
    %v196 = vsub.s32 4, %v195
    %v197 = vrot.slane %v176, %v196
    %v198 = vlaneseq
    %v199 = vshrl.u32 %v198, 7
    %v200 = vsub.s32 5, %v199
    %v201 = vrot.slane %v176, %v200
    %v202 = vlaneseq
    %v203 = vshrl.u32 %v202, 7
    %v204 = vsub.s32 6, %v203
    %v205 = vrot.slane %v176, %v204
    %v206 = vlaneseq
    %v207 = vshrl.u32 %v206, 7
    %v208 = vsub.s32 7, %v207
    %v209 = vrot.slane %v176, %v208
    %vm218 = vcmask 326656
    %v220 = vsel %vm218, %v128, 0
    %v223 = vsel %vm218, %v129, 0
    %v226 = vsel %vm218, %v130, 0
    %v229 = vsel %vm218, %v131, 0
    %v232 = vsel %vm218, %v132, 0
    %v235 = vsel %vm218, %v133, 0
    %v238 = vsel %vm218, %v134, 0
    %v241 = vsel %vm218, %v135, 0
    %243 = vmatprep.subr.mxu0 0.0
    %244 = vmatpush1.msra.mxu0 0.0
    %245 = vmatprep.subr.mxu0 0.0
    %246 = vmatpush1.msra.mxu0 0.0
    %247 = vmatprep.subr.mxu0 0.0
    %248 = vmatpush1.msra.mxu0 0.0
    %249 = vmatprep.subr.mxu0 0.0
    %250 = vmatpush1.msra.mxu0 0.0
    %251 = vmatprep.subr.mxu0 0.0
    %252 = vmatpush1.msra.mxu0 0.0
    %253 = vmatprep.subr.mxu0 0.0
    %254 = vmatpush1.msra.mxu0 0.0
    %255 = vmatprep.subr.mxu0 0.0
    %256 = vmatpush1.msra.mxu0 0.0
    %257 = vmatprep.subr.mxu0 0.0
    %258 = vmatpush1.msra.mxu0 0.0
    %259 = vmatprep.subr.mxu0 0.0
    %260 = vmatpush1.msra.mxu0 0.0
    %261 = vmatprep.subr.mxu0 0.0
    %262 = vmatpush1.msra.mxu0 0.0
    %263 = vmatprep.subr.mxu0 0.0
    %264 = vmatpush1.msra.mxu0 0.0
    %265 = vmatprep.subr.mxu0 %v169
    %266 = vmatpush1.msra.mxu0 %v168
    %267 = vmatprep.subr.mxu0 %v161
    %268 = vmatpush1.msra.mxu0 %v160
    %269 = vmatprep.subr.mxu0 %v153
    %270 = vmatpush1.msra.mxu0 %v152
    %271 = vmatprep.subr.mxu0 %v145
    %272 = vmatpush1.msra.mxu0 %v144
    %273 = vmatprep.subr.mxu0 %v137
    %274 = vmatpush1.msra.mxu0 %v136
    %275 = vmatprep.subr.mxu0 0.0
    %276 = vmatpush2.msra.mxu0 0.0
    %277 = vmatprep.subr.mxu0 0.0
    %278 = vmatpush2.msra.mxu0 0.0
    %279 = vmatprep.subr.mxu0 0.0
    %280 = vmatpush2.msra.mxu0 0.0
    %281 = vmatprep.subr.mxu0 0.0
    %282 = vmatpush2.msra.mxu0 0.0
    %283 = vmatprep.subr.mxu0 0.0
    %284 = vmatpush2.msra.mxu0 0.0
    %285 = vmatprep.subr.mxu0 0.0
    %286 = vmatpush2.msra.mxu0 0.0
    %287 = vmatprep.subr.mxu0 0.0
    %288 = vmatpush2.msra.mxu0 0.0
    %289 = vmatprep.subr.mxu0 0.0
    %290 = vmatpush2.msra.mxu0 0.0
    %291 = vmatprep.subr.mxu0 0.0
    %292 = vmatpush2.msra.mxu0 0.0
    %293 = vmatprep.subr.mxu0 0.0
    %294 = vmatpush2.msra.mxu0 0.0
    %295 = vmatprep.subr.mxu0 0.0
    %296 = vmatpush2.msra.mxu0 0.0
    %297 = vmatprep.subr.mxu0 0.0
    %298 = vmatpush2.msra.mxu0 0.0
    %299 = vmatprep.subr.mxu0 0.0
    %300 = vmatpush2.msra.mxu0 0.0
    %301 = vmatprep.subr.mxu0 0.0
    %302 = vmatpush2.msra.mxu0 0.0
    %303 = vmatprep.subr.mxu0 0.0
    %304 = vmatpush2.msra.mxu0 0.0
    %305 = vmatprep.subr.mxu0 0.0
    %306 = vmatpush2.msra.mxu0 0.0
    %307 = vmatprep.mubr.f32.mxu0 0.0
    %308 = vmatmul.mubr.f32.gmra.mxu0 %v220
    %v309 = vpop.f32.mrf.mxu0
    %v310 = vadd.f32 %v181, %v309
    %v311 = vpop.f32.mrf.mxu0
    %v312 = vadd.f32 %v185, %v311
    %313 = vmatprep.mubr.f32.mxu0 0.0
    %314 = vmatmul.mubr.f32.gmra.mxu0 %v223
    %v315 = vpop.f32.mrf.mxu0
    %v316 = vadd.f32 %v181, %v315
    %v317 = vpop.f32.mrf.mxu0
    %v318 = vadd.f32 %v185, %v317
    %319 = vmatprep.mubr.f32.mxu0 0.0
    %320 = vmatmul.mubr.f32.gmra.mxu0 %v226
    %v321 = vpop.f32.mrf.mxu0
    %v322 = vadd.f32 %v181, %v321
    %v323 = vpop.f32.mrf.mxu0
    %v324 = vadd.f32 %v185, %v323
    %325 = vmatprep.mubr.f32.mxu0 0.0
    %326 = vmatmul.mubr.f32.gmra.mxu0 %v229
    %v327 = vpop.f32.mrf.mxu0
    %v328 = vadd.f32 %v181, %v327
    %v329 = vpop.f32.mrf.mxu0
    %v330 = vadd.f32 %v185, %v329
    %331 = vmatprep.mubr.f32.mxu0 0.0
    %332 = vmatmul.mubr.f32.gmra.mxu0 %v232
    %v333 = vpop.f32.mrf.mxu0
    %v334 = vadd.f32 %v181, %v333
    %v335 = vpop.f32.mrf.mxu0
    %v336 = vadd.f32 %v185, %v335
    %337 = vmatprep.mubr.f32.mxu0 0.0
    %338 = vmatmul.mubr.f32.gmra.mxu0 %v235
    %v339 = vpop.f32.mrf.mxu0
    %v340 = vadd.f32 %v181, %v339
    %v341 = vpop.f32.mrf.mxu0
    %v342 = vadd.f32 %v185, %v341
    %343 = vmatprep.mubr.f32.mxu0 0.0
    %344 = vmatmul.mubr.f32.gmra.mxu0 %v238
    %v345 = vpop.f32.mrf.mxu0
    %v346 = vadd.f32 %v181, %v345
    %v347 = vpop.f32.mrf.mxu0
    %v348 = vadd.f32 %v185, %v347
    %349 = vmatprep.mubr.f32.mxu0 0.0
    %350 = vmatmul.mubr.f32.gmra.mxu0 %v241
    %v351 = vpop.f32.mrf.mxu0
    %v352 = vadd.f32 %v181, %v351
    %v353 = vpop.f32.mrf.mxu0
    %v354 = vadd.f32 %v185, %v353
    %355 = vdwg.mxu0
    %356 = vmatprep.subr.mxu0 0.0
    %357 = vmatpush1.msra.mxu0 0.0
    %358 = vmatprep.subr.mxu0 0.0
    %359 = vmatpush1.msra.mxu0 0.0
    %360 = vmatprep.subr.mxu0 0.0
    %361 = vmatpush1.msra.mxu0 0.0
    %362 = vmatprep.subr.mxu0 0.0
    %363 = vmatpush1.msra.mxu0 0.0
    %364 = vmatprep.subr.mxu0 0.0
    %365 = vmatpush1.msra.mxu0 0.0
    %366 = vmatprep.subr.mxu0 0.0
    %367 = vmatpush1.msra.mxu0 0.0
    %368 = vmatprep.subr.mxu0 0.0
    %369 = vmatpush1.msra.mxu0 0.0
    %370 = vmatprep.subr.mxu0 0.0
    %371 = vmatpush1.msra.mxu0 0.0
    %372 = vmatprep.subr.mxu0 0.0
    %373 = vmatpush1.msra.mxu0 0.0
    %374 = vmatprep.subr.mxu0 0.0
    %375 = vmatpush1.msra.mxu0 0.0
    %376 = vmatprep.subr.mxu0 0.0
    %377 = vmatpush1.msra.mxu0 0.0
    %378 = vmatprep.subr.mxu0 %v171
    %379 = vmatpush1.msra.mxu0 %v170
    %380 = vmatprep.subr.mxu0 %v163
    %381 = vmatpush1.msra.mxu0 %v162
    %382 = vmatprep.subr.mxu0 %v155
    %383 = vmatpush1.msra.mxu0 %v154
    %384 = vmatprep.subr.mxu0 %v147
    %385 = vmatpush1.msra.mxu0 %v146
    %386 = vmatprep.subr.mxu0 %v139
    %387 = vmatpush1.msra.mxu0 %v138
    %388 = vmatprep.subr.mxu0 0.0
    %389 = vmatpush2.msra.mxu0 0.0
    %390 = vmatprep.subr.mxu0 0.0
    %391 = vmatpush2.msra.mxu0 0.0
    %392 = vmatprep.subr.mxu0 0.0
    %393 = vmatpush2.msra.mxu0 0.0
    %394 = vmatprep.subr.mxu0 0.0
    %395 = vmatpush2.msra.mxu0 0.0
    %396 = vmatprep.subr.mxu0 0.0
    %397 = vmatpush2.msra.mxu0 0.0
    %398 = vmatprep.subr.mxu0 0.0
    %399 = vmatpush2.msra.mxu0 0.0
    %400 = vmatprep.subr.mxu0 0.0
    %401 = vmatpush2.msra.mxu0 0.0
    %402 = vmatprep.subr.mxu0 0.0
    %403 = vmatpush2.msra.mxu0 0.0
    %404 = vmatprep.subr.mxu0 0.0
    %405 = vmatpush2.msra.mxu0 0.0
    %406 = vmatprep.subr.mxu0 0.0
    %407 = vmatpush2.msra.mxu0 0.0
    %408 = vmatprep.subr.mxu0 0.0
    %409 = vmatpush2.msra.mxu0 0.0
    %410 = vmatprep.subr.mxu0 0.0
    %411 = vmatpush2.msra.mxu0 0.0
    %412 = vmatprep.subr.mxu0 0.0
    %413 = vmatpush2.msra.mxu0 0.0
    %414 = vmatprep.subr.mxu0 0.0
    %415 = vmatpush2.msra.mxu0 0.0
    %416 = vmatprep.subr.mxu0 0.0
    %417 = vmatpush2.msra.mxu0 0.0
    %418 = vmatprep.subr.mxu0 0.0
    %419 = vmatpush2.msra.mxu0 0.0
    %420 = vmatprep.mubr.f32.mxu0 0.0
    %421 = vmatmul.mubr.f32.gmra.mxu0 %v220
    %v422 = vpop.f32.mrf.mxu0
    %v423 = vadd.f32 %v189, %v422
    %v424 = vpop.f32.mrf.mxu0
    %v425 = vadd.f32 %v193, %v424
    %426 = vmatprep.mubr.f32.mxu0 0.0
    %427 = vmatmul.mubr.f32.gmra.mxu0 %v223
    %v428 = vpop.f32.mrf.mxu0
    %v429 = vadd.f32 %v189, %v428
    %v430 = vpop.f32.mrf.mxu0
    %v431 = vadd.f32 %v193, %v430
    %432 = vmatprep.mubr.f32.mxu0 0.0
    %433 = vmatmul.mubr.f32.gmra.mxu0 %v226
    %v434 = vpop.f32.mrf.mxu0
    %v435 = vadd.f32 %v189, %v434
    %v436 = vpop.f32.mrf.mxu0
    %v437 = vadd.f32 %v193, %v436
    %438 = vmatprep.mubr.f32.mxu0 0.0
    %439 = vmatmul.mubr.f32.gmra.mxu0 %v229
    %v440 = vpop.f32.mrf.mxu0
    %v441 = vadd.f32 %v189, %v440
    %v442 = vpop.f32.mrf.mxu0
    %v443 = vadd.f32 %v193, %v442
    %444 = vmatprep.mubr.f32.mxu0 0.0
    %445 = vmatmul.mubr.f32.gmra.mxu0 %v232
    %v446 = vpop.f32.mrf.mxu0
    %v447 = vadd.f32 %v189, %v446
    %v448 = vpop.f32.mrf.mxu0
    %v449 = vadd.f32 %v193, %v448
    %450 = vmatprep.mubr.f32.mxu0 0.0
    %451 = vmatmul.mubr.f32.gmra.mxu0 %v235
    %v452 = vpop.f32.mrf.mxu0
    %v453 = vadd.f32 %v189, %v452
    %v454 = vpop.f32.mrf.mxu0
    %v455 = vadd.f32 %v193, %v454
    %456 = vmatprep.mubr.f32.mxu0 0.0
    %457 = vmatmul.mubr.f32.gmra.mxu0 %v238
    %v458 = vpop.f32.mrf.mxu0
    %v459 = vadd.f32 %v189, %v458
    %v460 = vpop.f32.mrf.mxu0
    %v461 = vadd.f32 %v193, %v460
    %462 = vmatprep.mubr.f32.mxu0 0.0
    %463 = vmatmul.mubr.f32.gmra.mxu0 %v241
    %v464 = vpop.f32.mrf.mxu0
    %v465 = vadd.f32 %v189, %v464
    %v466 = vpop.f32.mrf.mxu0
    %v467 = vadd.f32 %v193, %v466
    %468 = vdwg.mxu0
    %469 = vmatprep.subr.mxu0 0.0
    %470 = vmatpush1.msra.mxu0 0.0
    %471 = vmatprep.subr.mxu0 0.0
    %472 = vmatpush1.msra.mxu0 0.0
    %473 = vmatprep.subr.mxu0 0.0
    %474 = vmatpush1.msra.mxu0 0.0
    %475 = vmatprep.subr.mxu0 0.0
    %476 = vmatpush1.msra.mxu0 0.0
    %477 = vmatprep.subr.mxu0 0.0
    %478 = vmatpush1.msra.mxu0 0.0
    %479 = vmatprep.subr.mxu0 0.0
    %480 = vmatpush1.msra.mxu0 0.0
    %481 = vmatprep.subr.mxu0 0.0
    %482 = vmatpush1.msra.mxu0 0.0
    %483 = vmatprep.subr.mxu0 0.0
    %484 = vmatpush1.msra.mxu0 0.0
    %485 = vmatprep.subr.mxu0 0.0
    %486 = vmatpush1.msra.mxu0 0.0
    %487 = vmatprep.subr.mxu0 0.0
    %488 = vmatpush1.msra.mxu0 0.0
    %489 = vmatprep.subr.mxu0 0.0
    %490 = vmatpush1.msra.mxu0 0.0
    %491 = vmatprep.subr.mxu0 %v173
    %492 = vmatpush1.msra.mxu0 %v172
    %493 = vmatprep.subr.mxu0 %v165
    %494 = vmatpush1.msra.mxu0 %v164
    %495 = vmatprep.subr.mxu0 %v157
    %496 = vmatpush1.msra.mxu0 %v156
    %497 = vmatprep.subr.mxu0 %v149
    %498 = vmatpush1.msra.mxu0 %v148
    %499 = vmatprep.subr.mxu0 %v141
    %500 = vmatpush1.msra.mxu0 %v140
    %501 = vmatprep.subr.mxu0 0.0
    %502 = vmatpush2.msra.mxu0 0.0
    %503 = vmatprep.subr.mxu0 0.0
    %504 = vmatpush2.msra.mxu0 0.0
    %505 = vmatprep.subr.mxu0 0.0
    %506 = vmatpush2.msra.mxu0 0.0
    %507 = vmatprep.subr.mxu0 0.0
    %508 = vmatpush2.msra.mxu0 0.0
    %509 = vmatprep.subr.mxu0 0.0
    %510 = vmatpush2.msra.mxu0 0.0
    %511 = vmatprep.subr.mxu0 0.0
    %512 = vmatpush2.msra.mxu0 0.0
    %513 = vmatprep.subr.mxu0 0.0
    %514 = vmatpush2.msra.mxu0 0.0
    %515 = vmatprep.subr.mxu0 0.0
    %516 = vmatpush2.msra.mxu0 0.0
    %517 = vmatprep.subr.mxu0 0.0
    %518 = vmatpush2.msra.mxu0 0.0
    %519 = vmatprep.subr.mxu0 0.0
    %520 = vmatpush2.msra.mxu0 0.0
    %521 = vmatprep.subr.mxu0 0.0
    %522 = vmatpush2.msra.mxu0 0.0
    %523 = vmatprep.subr.mxu0 0.0
    %524 = vmatpush2.msra.mxu0 0.0
    %525 = vmatprep.subr.mxu0 0.0
    %526 = vmatpush2.msra.mxu0 0.0
    %527 = vmatprep.subr.mxu0 0.0
    %528 = vmatpush2.msra.mxu0 0.0
    %529 = vmatprep.subr.mxu0 0.0
    %530 = vmatpush2.msra.mxu0 0.0
    %531 = vmatprep.subr.mxu0 0.0
    %532 = vmatpush2.msra.mxu0 0.0
    %533 = vmatprep.mubr.f32.mxu0 0.0
    %534 = vmatmul.mubr.f32.gmra.mxu0 %v220
    %v535 = vpop.f32.mrf.mxu0
    %v536 = vadd.f32 %v197, %v535
    %v537 = vpop.f32.mrf.mxu0
    %v538 = vadd.f32 %v201, %v537
    %539 = vmatprep.mubr.f32.mxu0 0.0
    %540 = vmatmul.mubr.f32.gmra.mxu0 %v223
    %v541 = vpop.f32.mrf.mxu0
    %v542 = vadd.f32 %v197, %v541
    %v543 = vpop.f32.mrf.mxu0
    %v544 = vadd.f32 %v201, %v543
    %545 = vmatprep.mubr.f32.mxu0 0.0
    %546 = vmatmul.mubr.f32.gmra.mxu0 %v226
    %v547 = vpop.f32.mrf.mxu0
    %v548 = vadd.f32 %v197, %v547
    %v549 = vpop.f32.mrf.mxu0
    %v550 = vadd.f32 %v201, %v549
    %551 = vmatprep.mubr.f32.mxu0 0.0
    %552 = vmatmul.mubr.f32.gmra.mxu0 %v229
    %v553 = vpop.f32.mrf.mxu0
    %v554 = vadd.f32 %v197, %v553
    %v555 = vpop.f32.mrf.mxu0
    %v556 = vadd.f32 %v201, %v555
    %557 = vmatprep.mubr.f32.mxu0 0.0
    %558 = vmatmul.mubr.f32.gmra.mxu0 %v232
    %v559 = vpop.f32.mrf.mxu0
    %v560 = vadd.f32 %v197, %v559
    %v561 = vpop.f32.mrf.mxu0
    %v562 = vadd.f32 %v201, %v561
    %563 = vmatprep.mubr.f32.mxu0 0.0
    %564 = vmatmul.mubr.f32.gmra.mxu0 %v235
    %v565 = vpop.f32.mrf.mxu0
    %v566 = vadd.f32 %v197, %v565
    %v567 = vpop.f32.mrf.mxu0
    %v568 = vadd.f32 %v201, %v567
    %569 = vmatprep.mubr.f32.mxu0 0.0
    %570 = vmatmul.mubr.f32.gmra.mxu0 %v238
    %v571 = vpop.f32.mrf.mxu0
    %v572 = vadd.f32 %v197, %v571
    %v573 = vpop.f32.mrf.mxu0
    %v574 = vadd.f32 %v201, %v573
    %575 = vmatprep.mubr.f32.mxu0 0.0
    %576 = vmatmul.mubr.f32.gmra.mxu0 %v241
    %v577 = vpop.f32.mrf.mxu0
    %v578 = vadd.f32 %v197, %v577
    %v579 = vpop.f32.mrf.mxu0
    %v580 = vadd.f32 %v201, %v579
    %581 = vdwg.mxu0
    %582 = vmatprep.subr.mxu0 0.0
    %583 = vmatpush1.msra.mxu0 0.0
    %584 = vmatprep.subr.mxu0 0.0
    %585 = vmatpush1.msra.mxu0 0.0
    %586 = vmatprep.subr.mxu0 0.0
    %587 = vmatpush1.msra.mxu0 0.0
    %588 = vmatprep.subr.mxu0 0.0
    %589 = vmatpush1.msra.mxu0 0.0
    %590 = vmatprep.subr.mxu0 0.0
    %591 = vmatpush1.msra.mxu0 0.0
    %592 = vmatprep.subr.mxu0 0.0
    %593 = vmatpush1.msra.mxu0 0.0
    %594 = vmatprep.subr.mxu0 0.0
    %595 = vmatpush1.msra.mxu0 0.0
    %596 = vmatprep.subr.mxu0 0.0
    %597 = vmatpush1.msra.mxu0 0.0
    %598 = vmatprep.subr.mxu0 0.0
    %599 = vmatpush1.msra.mxu0 0.0
    %600 = vmatprep.subr.mxu0 0.0
    %601 = vmatpush1.msra.mxu0 0.0
    %602 = vmatprep.subr.mxu0 0.0
    %603 = vmatpush1.msra.mxu0 0.0
    %604 = vmatprep.subr.mxu0 %v175
    %605 = vmatpush1.msra.mxu0 %v174
    %606 = vmatprep.subr.mxu0 %v167
    %607 = vmatpush1.msra.mxu0 %v166
    %608 = vmatprep.subr.mxu0 %v159
    %609 = vmatpush1.msra.mxu0 %v158
    %610 = vmatprep.subr.mxu0 %v151
    %611 = vmatpush1.msra.mxu0 %v150
    %612 = vmatprep.subr.mxu0 %v143
    %613 = vmatpush1.msra.mxu0 %v142
    %614 = vmatprep.subr.mxu0 0.0
    %615 = vmatpush2.msra.mxu0 0.0
    %616 = vmatprep.subr.mxu0 0.0
    %617 = vmatpush2.msra.mxu0 0.0
    %618 = vmatprep.subr.mxu0 0.0
    %619 = vmatpush2.msra.mxu0 0.0
    %620 = vmatprep.subr.mxu0 0.0
    %621 = vmatpush2.msra.mxu0 0.0
    %622 = vmatprep.subr.mxu0 0.0
    %623 = vmatpush2.msra.mxu0 0.0
    %624 = vmatprep.subr.mxu0 0.0
    %625 = vmatpush2.msra.mxu0 0.0
    %626 = vmatprep.subr.mxu0 0.0
    %627 = vmatpush2.msra.mxu0 0.0
    %628 = vmatprep.subr.mxu0 0.0
    %629 = vmatpush2.msra.mxu0 0.0
    %630 = vmatprep.subr.mxu0 0.0
    %631 = vmatpush2.msra.mxu0 0.0
    %632 = vmatprep.subr.mxu0 0.0
    %633 = vmatpush2.msra.mxu0 0.0
    %634 = vmatprep.subr.mxu0 0.0
    %635 = vmatpush2.msra.mxu0 0.0
    %636 = vmatprep.subr.mxu0 0.0
    %637 = vmatpush2.msra.mxu0 0.0
    %638 = vmatprep.subr.mxu0 0.0
    %639 = vmatpush2.msra.mxu0 0.0
    %640 = vmatprep.subr.mxu0 0.0
    %641 = vmatpush2.msra.mxu0 0.0
    %642 = vmatprep.subr.mxu0 0.0
    %643 = vmatpush2.msra.mxu0 0.0
    %644 = vmatprep.subr.mxu0 0.0
    %645 = vmatpush2.msra.mxu0 0.0
    %646 = vmatprep.mubr.f32.mxu0 0.0
    %647 = vmatmul.mubr.f32.gmra.mxu0 %v220
    %v648 = vpop.f32.mrf.mxu0
    %v649 = vadd.f32 %v205, %v648
    %v650 = vpop.f32.mrf.mxu0
    %v651 = vadd.f32 %v209, %v650
    %652 = vmatprep.mubr.f32.mxu0 0.0
    %653 = vmatmul.mubr.f32.gmra.mxu0 %v223
    %v654 = vpop.f32.mrf.mxu0
    %v655 = vadd.f32 %v205, %v654
    %v656 = vpop.f32.mrf.mxu0
    %v657 = vadd.f32 %v209, %v656
    %658 = vmatprep.mubr.f32.mxu0 0.0
    %659 = vmatmul.mubr.f32.gmra.mxu0 %v226
    %v660 = vpop.f32.mrf.mxu0
    %v661 = vadd.f32 %v205, %v660
    %v662 = vpop.f32.mrf.mxu0
    %v663 = vadd.f32 %v209, %v662
    %664 = vmatprep.mubr.f32.mxu0 0.0
    %665 = vmatmul.mubr.f32.gmra.mxu0 %v229
    %v666 = vpop.f32.mrf.mxu0
    %v667 = vadd.f32 %v205, %v666
    %v668 = vpop.f32.mrf.mxu0
    %v669 = vadd.f32 %v209, %v668
    %670 = vmatprep.mubr.f32.mxu0 0.0
    %671 = vmatmul.mubr.f32.gmra.mxu0 %v232
    %v672 = vpop.f32.mrf.mxu0
    %v673 = vadd.f32 %v205, %v672
    %v674 = vpop.f32.mrf.mxu0
    %v675 = vadd.f32 %v209, %v674
    %676 = vmatprep.mubr.f32.mxu0 0.0
    %677 = vmatmul.mubr.f32.gmra.mxu0 %v235
    %v678 = vpop.f32.mrf.mxu0
    %v679 = vadd.f32 %v205, %v678
    %v680 = vpop.f32.mrf.mxu0
    %v681 = vadd.f32 %v209, %v680
    %682 = vmatprep.mubr.f32.mxu0 0.0
    %683 = vmatmul.mubr.f32.gmra.mxu0 %v238
    %v684 = vpop.f32.mrf.mxu0
    %v685 = vadd.f32 %v205, %v684
    %v686 = vpop.f32.mrf.mxu0
    %v687 = vadd.f32 %v209, %v686
    %688 = vmatprep.mubr.f32.mxu0 0.0
    %689 = vmatmul.mubr.f32.gmra.mxu0 %v241
    %v690 = vpop.f32.mrf.mxu0
    %v691 = vadd.f32 %v205, %v690
    %v692 = vpop.f32.mrf.mxu0
    %v693 = vadd.f32 %v209, %v692
    %694 = vdwg.mxu0
    %695 = vst [vmem:[#allocation2] sm:$0xff] %v310
    %696 = vst [vmem:[#allocation2 + $0x8] sm:$0xff] %v312
    %697 = vst [vmem:[#allocation2 + $0x10] sm:$0xff] %v423
    %698 = vst [vmem:[#allocation2 + $0x18] sm:$0xff] %v425
    %699 = vst [vmem:[#allocation2 + $0x20] sm:$0xff] %v536
    %700 = vst [vmem:[#allocation2 + $0x28] sm:$0xff] %v538
    %701 = vst [vmem:[#allocation2 + $0x30] sm:$0xff] %v649
    %702 = vst [vmem:[#allocation2 + $0x38] sm:$0xff] %v651
    %703 = vst [vmem:[#allocation2 + $0x40] sm:$0xff] %v316
    %704 = vst [vmem:[#allocation2 + $0x48] sm:$0xff] %v318
    %705 = vst [vmem:[#allocation2 + $0x50] sm:$0xff] %v429
    %706 = vst [vmem:[#allocation2 + $0x58] sm:$0xff] %v431
    %707 = vst [vmem:[#allocation2 + $0x60] sm:$0xff] %v542
    %708 = vst [vmem:[#allocation2 + $0x68] sm:$0xff] %v544
    %709 = vst [vmem:[#allocation2 + $0x70] sm:$0xff] %v655
    %710 = vst [vmem:[#allocation2 + $0x78] sm:$0xff] %v657
    %711 = vst [vmem:[#allocation2 + $0x80] sm:$0xff] %v322
    %712 = vst [vmem:[#allocation2 + $0x88] sm:$0xff] %v324
    %713 = vst [vmem:[#allocation2 + $0x90] sm:$0xff] %v435
    %714 = vst [vmem:[#allocation2 + $0x98] sm:$0xff] %v437
    %715 = vst [vmem:[#allocation2 + $0xa0] sm:$0xff] %v548
    %716 = vst [vmem:[#allocation2 + $0xa8] sm:$0xff] %v550
    %717 = vst [vmem:[#allocation2 + $0xb0] sm:$0xff] %v661
    %718 = vst [vmem:[#allocation2 + $0xb8] sm:$0xff] %v663
    %719 = vst [vmem:[#allocation2 + $0xc0] sm:$0xff] %v328
    %720 = vst [vmem:[#allocation2 + $0xc8] sm:$0xff] %v330
    %721 = vst [vmem:[#allocation2 + $0xd0] sm:$0xff] %v441
    %722 = vst [vmem:[#allocation2 + $0xd8] sm:$0xff] %v443
    %723 = vst [vmem:[#allocation2 + $0xe0] sm:$0xff] %v554
    %724 = vst [vmem:[#allocation2 + $0xe8] sm:$0xff] %v556
    %725 = vst [vmem:[#allocation2 + $0xf0] sm:$0xff] %v667
    %726 = vst [vmem:[#allocation2 + $0xf8] sm:$0xff] %v669
    %727 = vst [vmem:[#allocation2 + $0x100] sm:$0xff] %v334
    %728 = vst [vmem:[#allocation2 + $0x108] sm:$0xff] %v336
    %729 = vst [vmem:[#allocation2 + $0x110] sm:$0xff] %v447
    %730 = vst [vmem:[#allocation2 + $0x118] sm:$0xff] %v449
    %731 = vst [vmem:[#allocation2 + $0x120] sm:$0xff] %v560
    %732 = vst [vmem:[#allocation2 + $0x128] sm:$0xff] %v562
    %733 = vst [vmem:[#allocation2 + $0x130] sm:$0xff] %v673
    %734 = vst [vmem:[#allocation2 + $0x138] sm:$0xff] %v675
    %735 = vst [vmem:[#allocation2 + $0x140] sm:$0xff] %v340
    %736 = vst [vmem:[#allocation2 + $0x148] sm:$0xff] %v342
    %737 = vst [vmem:[#allocation2 + $0x150] sm:$0xff] %v453
    %738 = vst [vmem:[#allocation2 + $0x158] sm:$0xff] %v455
    %739 = vst [vmem:[#allocation2 + $0x160] sm:$0xff] %v566
    %740 = vst [vmem:[#allocation2 + $0x168] sm:$0xff] %v568
    %741 = vst [vmem:[#allocation2 + $0x170] sm:$0xff] %v679
    %742 = vst [vmem:[#allocation2 + $0x178] sm:$0xff] %v681
    %743 = vst [vmem:[#allocation2 + $0x180] sm:$0xff] %v346
    %744 = vst [vmem:[#allocation2 + $0x188] sm:$0xff] %v348
    %745 = vst [vmem:[#allocation2 + $0x190] sm:$0xff] %v459
    %746 = vst [vmem:[#allocation2 + $0x198] sm:$0xff] %v461
    %747 = vst [vmem:[#allocation2 + $0x1a0] sm:$0xff] %v572
    %748 = vst [vmem:[#allocation2 + $0x1a8] sm:$0xff] %v574
    %749 = vst [vmem:[#allocation2 + $0x1b0] sm:$0xff] %v685
    %750 = vst [vmem:[#allocation2 + $0x1b8] sm:$0xff] %v687
    %751 = vst [vmem:[#allocation2 + $0x1c0] sm:$0xff] %v352
    %752 = vst [vmem:[#allocation2 + $0x1c8] sm:$0xff] %v354
    %753 = vst [vmem:[#allocation2 + $0x1d0] sm:$0xff] %v465
    %754 = vst [vmem:[#allocation2 + $0x1d8] sm:$0xff] %v467
    %755 = vst [vmem:[#allocation2 + $0x1e0] sm:$0xff] %v578
    %756 = vst [vmem:[#allocation2 + $0x1e8] sm:$0xff] %v580
    %757 = vst [vmem:[#allocation2 + $0x1f0] sm:$0xff] %v691
    %758 = vst [vmem:[#allocation2 + $0x1f8] sm:$0xff] %v693
    %v759 = vld [vmem:[#allocation4] sm:$0xff]
    %v760 = vld [vmem:[#allocation4 + $0x8] sm:$0xff]
    %v761 = vld [vmem:[#allocation4 + $0x10] sm:$0xff]
    %v762 = vld [vmem:[#allocation4 + $0x18] sm:$0xff]
    %v763 = vld [vmem:[#allocation4 + $0x20] sm:$0xff]
    %v764 = vld [vmem:[#allocation4 + $0x28] sm:$0xff]
    %v765 = vld [vmem:[#allocation4 + $0x30] sm:$0xff]
    %v766 = vld [vmem:[#allocation4 + $0x38] sm:$0xff]
    %v767 = vld [vmem:[#allocation4 + $0x40] sm:$0xff]
    %v768 = vld [vmem:[#allocation4 + $0x48] sm:$0xff]
    %v769 = vld [vmem:[#allocation4 + $0x50] sm:$0xff]
    %v770 = vld [vmem:[#allocation4 + $0x58] sm:$0xff]
    %v771 = vld [vmem:[#allocation4 + $0x60] sm:$0xff]
    %v772 = vld [vmem:[#allocation4 + $0x68] sm:$0xff]
    %v773 = vld [vmem:[#allocation4 + $0x70] sm:$0xff]
    %v774 = vld [vmem:[#allocation4 + $0x78] sm:$0xff]
    %v775 = vld [vmem:[#allocation4 + $0x80] sm:$0xff]
    %v776 = vld [vmem:[#allocation4 + $0x88] sm:$0xff]
    %v777 = vld [vmem:[#allocation4 + $0x90] sm:$0xff]
    %v778 = vld [vmem:[#allocation4 + $0x98] sm:$0xff]
    %v779 = vld [vmem:[#allocation4 + $0xa0] sm:$0xff]
    %v780 = vld [vmem:[#allocation4 + $0xa8] sm:$0xff]
    %v781 = vld [vmem:[#allocation4 + $0xb0] sm:$0xff]
    %v782 = vld [vmem:[#allocation4 + $0xb8] sm:$0xff]
    %v783 = vld [vmem:[#allocation4 + $0xc0] sm:$0xff]
    %v784 = vld [vmem:[#allocation4 + $0xc8] sm:$0xff]
    %v785 = vld [vmem:[#allocation4 + $0xd0] sm:$0xff]
    %v786 = vld [vmem:[#allocation4 + $0xd8] sm:$0xff]
    %v787 = vld [vmem:[#allocation4 + $0xe0] sm:$0xff]
    %v788 = vld [vmem:[#allocation4 + $0xe8] sm:$0xff]
    %v789 = vld [vmem:[#allocation4 + $0xf0] sm:$0xff]
    %v790 = vld [vmem:[#allocation4 + $0xf8] sm:$0xff]
    %v791 = vld [vmem:[#allocation4 + $0x100] sm:$0xff]
    %v792 = vld [vmem:[#allocation4 + $0x108] sm:$0xff]
    %v793 = vld [vmem:[#allocation4 + $0x110] sm:$0xff]
    %v794 = vld [vmem:[#allocation4 + $0x118] sm:$0xff]
    %v795 = vld [vmem:[#allocation4 + $0x120] sm:$0xff]
    %v796 = vld [vmem:[#allocation4 + $0x128] sm:$0xff]
    %v797 = vld [vmem:[#allocation4 + $0x130] sm:$0xff]
    %v798 = vld [vmem:[#allocation4 + $0x138] sm:$0xff]
    %v799 = vld [vmem:[#allocation4 + $0x140] sm:$0xff]
    %v800 = vld [vmem:[#allocation4 + $0x148] sm:$0xff]
    %v801 = vld [vmem:[#allocation4 + $0x150] sm:$0xff]
    %v802 = vld [vmem:[#allocation4 + $0x158] sm:$0xff]
    %v803 = vld [vmem:[#allocation4 + $0x160] sm:$0xff]
    %v804 = vld [vmem:[#allocation4 + $0x168] sm:$0xff]
    %v805 = vld [vmem:[#allocation4 + $0x170] sm:$0xff]
    %v806 = vld [vmem:[#allocation4 + $0x178] sm:$0xff]
    %v807 = vld [vmem:[#allocation4 + $0x180] sm:$0xff]
    %v808 = vld [vmem:[#allocation4 + $0x188] sm:$0xff]
    %v809 = vld [vmem:[#allocation4 + $0x190] sm:$0xff]
    %v810 = vld [vmem:[#allocation4 + $0x198] sm:$0xff]
    %v811 = vld [vmem:[#allocation4 + $0x1a0] sm:$0xff]
    %v812 = vld [vmem:[#allocation4 + $0x1a8] sm:$0xff]
    %v813 = vld [vmem:[#allocation4 + $0x1b0] sm:$0xff]
    %v814 = vld [vmem:[#allocation4 + $0x1b8] sm:$0xff]
    %v815 = vld [vmem:[#allocation4 + $0x1c0] sm:$0xff]
    %v816 = vld [vmem:[#allocation4 + $0x1c8] sm:$0xff]
    %v817 = vld [vmem:[#allocation4 + $0x1d0] sm:$0xff]
    %v818 = vld [vmem:[#allocation4 + $0x1d8] sm:$0xff]
    %v819 = vld [vmem:[#allocation4 + $0x1e0] sm:$0xff]
    %v820 = vld [vmem:[#allocation4 + $0x1e8] sm:$0xff]
    %v821 = vld [vmem:[#allocation4 + $0x1f0] sm:$0xff]
    %v822 = vld [vmem:[#allocation4 + $0x1f8] sm:$0xff]
    %v823 = vld [vmem:[#allocation4 + $0x200] sm:$0xff]
    %v824 = vld [vmem:[#allocation4 + $0x208] sm:$0xff]
    %v825 = vld [vmem:[#allocation4 + $0x210] sm:$0xff]
    %v826 = vld [vmem:[#allocation4 + $0x218] sm:$0xff]
    %v827 = vld [vmem:[#allocation4 + $0x220] sm:$0xff]
    %v828 = vld [vmem:[#allocation4 + $0x228] sm:$0xff]
    %v829 = vld [vmem:[#allocation4 + $0x230] sm:$0xff]
    %v830 = vld [vmem:[#allocation4 + $0x238] sm:$0xff]
    %v831 = vld [vmem:[#allocation4 + $0x240] sm:$0xff]
    %v832 = vld [vmem:[#allocation4 + $0x248] sm:$0xff]
    %v833 = vld [vmem:[#allocation4 + $0x250] sm:$0xff]
    %v834 = vld [vmem:[#allocation4 + $0x258] sm:$0xff]
    %v835 = vld [vmem:[#allocation4 + $0x260] sm:$0xff]
    %v836 = vld [vmem:[#allocation4 + $0x268] sm:$0xff]
    %v837 = vld [vmem:[#allocation4 + $0x270] sm:$0xff]
    %v838 = vld [vmem:[#allocation4 + $0x278] sm:$0xff]
    %v839 = vld [vmem:[#allocation4 + $0x280] sm:$0xff]
    %v840 = vld [vmem:[#allocation4 + $0x288] sm:$0xff]
    %v841 = vld [vmem:[#allocation4 + $0x290] sm:$0xff]
    %v842 = vld [vmem:[#allocation4 + $0x298] sm:$0xff]
    %v843 = vld [vmem:[#allocation4 + $0x2a0] sm:$0xff]
    %v844 = vld [vmem:[#allocation4 + $0x2a8] sm:$0xff]
    %v845 = vld [vmem:[#allocation4 + $0x2b0] sm:$0xff]
    %v846 = vld [vmem:[#allocation4 + $0x2b8] sm:$0xff]
    %v847 = vld [vmem:[#allocation4 + $0x2c0] sm:$0xff]
    %v848 = vld [vmem:[#allocation4 + $0x2c8] sm:$0xff]
    %v849 = vld [vmem:[#allocation4 + $0x2d0] sm:$0xff]
    %v850 = vld [vmem:[#allocation4 + $0x2d8] sm:$0xff]
    %v851 = vld [vmem:[#allocation4 + $0x2e0] sm:$0xff]
    %v852 = vld [vmem:[#allocation4 + $0x2e8] sm:$0xff]
    %v853 = vld [vmem:[#allocation4 + $0x2f0] sm:$0xff]
    %v854 = vld [vmem:[#allocation4 + $0x2f8] sm:$0xff]
    %v855 = vld [vmem:[#allocation4 + $0x300] sm:$0xff]
    %v856 = vld [vmem:[#allocation4 + $0x308] sm:$0xff]
    %v857 = vld [vmem:[#allocation4 + $0x310] sm:$0xff]
    %v858 = vld [vmem:[#allocation4 + $0x318] sm:$0xff]
    %v859 = vld [vmem:[#allocation4 + $0x320] sm:$0xff]
    %v860 = vld [vmem:[#allocation4 + $0x328] sm:$0xff]
    %v861 = vld [vmem:[#allocation4 + $0x330] sm:$0xff]
    %v862 = vld [vmem:[#allocation4 + $0x338] sm:$0xff]
    %v863 = vld [vmem:[#allocation4 + $0x340] sm:$0xff]
    %v864 = vld [vmem:[#allocation4 + $0x348] sm:$0xff]
    %v865 = vld [vmem:[#allocation4 + $0x350] sm:$0xff]
    %v866 = vld [vmem:[#allocation4 + $0x358] sm:$0xff]
    %v867 = vld [vmem:[#allocation4 + $0x360] sm:$0xff]
    %v868 = vld [vmem:[#allocation4 + $0x368] sm:$0xff]
    %v869 = vld [vmem:[#allocation4 + $0x370] sm:$0xff]
    %v870 = vld [vmem:[#allocation4 + $0x378] sm:$0xff]
    %v871 = vld [vmem:[#allocation4 + $0x380] sm:$0xff]
    %v872 = vld [vmem:[#allocation4 + $0x388] sm:$0xff]
    %v873 = vld [vmem:[#allocation4 + $0x390] sm:$0xff]
    %v874 = vld [vmem:[#allocation4 + $0x398] sm:$0xff]
    %v875 = vld [vmem:[#allocation4 + $0x3a0] sm:$0xff]
    %v876 = vld [vmem:[#allocation4 + $0x3a8] sm:$0xff]
    %v877 = vld [vmem:[#allocation4 + $0x3b0] sm:$0xff]
    %v878 = vld [vmem:[#allocation4 + $0x3b8] sm:$0xff]
    %v879 = vld [vmem:[#allocation4 + $0x3c0] sm:$0xff]
    %v880 = vld [vmem:[#allocation4 + $0x3c8] sm:$0xff]
    %v881 = vld [vmem:[#allocation4 + $0x3d0] sm:$0xff]
    %v882 = vld [vmem:[#allocation4 + $0x3d8] sm:$0xff]
    %v883 = vld [vmem:[#allocation4 + $0x3e0] sm:$0xff]
    %v884 = vld [vmem:[#allocation4 + $0x3e8] sm:$0xff]
    %v885 = vld [vmem:[#allocation4 + $0x3f0] sm:$0xff]
    %v886 = vld [vmem:[#allocation4 + $0x3f8] sm:$0xff]
    %v887 = vld [vmem:[#allocation4 + $0x400] sm:$0xff]
    %v888 = vld [vmem:[#allocation4 + $0x408] sm:$0xff]
    %v889 = vld [vmem:[#allocation4 + $0x410] sm:$0xff]
    %v890 = vld [vmem:[#allocation4 + $0x418] sm:$0xff]
    %v891 = vld [vmem:[#allocation4 + $0x420] sm:$0xff]
    %v892 = vld [vmem:[#allocation4 + $0x428] sm:$0xff]
    %v893 = vld [vmem:[#allocation4 + $0x430] sm:$0xff]
    %v894 = vld [vmem:[#allocation4 + $0x438] sm:$0xff]
    %v895 = vld [vmem:[#allocation4 + $0x440] sm:$0xff]
    %v896 = vld [vmem:[#allocation4 + $0x448] sm:$0xff]
    %v897 = vld [vmem:[#allocation4 + $0x450] sm:$0xff]
    %v898 = vld [vmem:[#allocation4 + $0x458] sm:$0xff]
    %v899 = vld [vmem:[#allocation4 + $0x460] sm:$0xff]
    %v900 = vld [vmem:[#allocation4 + $0x468] sm:$0xff]
    %v901 = vld [vmem:[#allocation4 + $0x470] sm:$0xff]
    %v902 = vld [vmem:[#allocation4 + $0x478] sm:$0xff]
    %v903 = vld [vmem:[#allocation4 + $0x480] sm:$0xff]
    %v904 = vld [vmem:[#allocation4 + $0x488] sm:$0xff]
    %v905 = vld [vmem:[#allocation4 + $0x490] sm:$0xff]
    %v906 = vld [vmem:[#allocation4 + $0x498] sm:$0xff]
    %v907 = vld [vmem:[#allocation4 + $0x4a0] sm:$0xff]
    %v908 = vld [vmem:[#allocation4 + $0x4a8] sm:$0xff]
    %v909 = vld [vmem:[#allocation4 + $0x4b0] sm:$0xff]
    %v910 = vld [vmem:[#allocation4 + $0x4b8] sm:$0xff]
    %v911 = vld [vmem:[#allocation4 + $0x4c0] sm:$0xff]
    %v912 = vld [vmem:[#allocation4 + $0x4c8] sm:$0xff]
    %v913 = vld [vmem:[#allocation4 + $0x4d0] sm:$0xff]
    %v914 = vld [vmem:[#allocation4 + $0x4d8] sm:$0xff]
    %v915 = vld [vmem:[#allocation4 + $0x4e0] sm:$0xff]
    %v916 = vld [vmem:[#allocation4 + $0x4e8] sm:$0xff]
    %v917 = vld [vmem:[#allocation4 + $0x4f0] sm:$0xff]
    %v918 = vld [vmem:[#allocation4 + $0x4f8] sm:$0xff]
    %v919 = vld [vmem:[#allocation4 + $0x500] sm:$0xff]
    %v920 = vld [vmem:[#allocation4 + $0x508] sm:$0xff]
    %v921 = vld [vmem:[#allocation4 + $0x510] sm:$0xff]
    %v922 = vld [vmem:[#allocation4 + $0x518] sm:$0xff]
    %v923 = vld [vmem:[#allocation4 + $0x520] sm:$0xff]
    %v924 = vld [vmem:[#allocation4 + $0x528] sm:$0xff]
    %v925 = vld [vmem:[#allocation4 + $0x530] sm:$0xff]
    %v926 = vld [vmem:[#allocation4 + $0x538] sm:$0xff]
    %v927 = vld [vmem:[#allocation4 + $0x540] sm:$0xff]
    %v928 = vld [vmem:[#allocation4 + $0x548] sm:$0xff]
    %v929 = vld [vmem:[#allocation4 + $0x550] sm:$0xff]
    %v930 = vld [vmem:[#allocation4 + $0x558] sm:$0xff]
    %v931 = vld [vmem:[#allocation4 + $0x560] sm:$0xff]
    %v932 = vld [vmem:[#allocation4 + $0x568] sm:$0xff]
    %v933 = vld [vmem:[#allocation4 + $0x570] sm:$0xff]
    %v934 = vld [vmem:[#allocation4 + $0x578] sm:$0xff]
    %v935 = vld [vmem:[#allocation4 + $0x580] sm:$0xff]
    %v936 = vld [vmem:[#allocation4 + $0x588] sm:$0xff]
    %v937 = vld [vmem:[#allocation4 + $0x590] sm:$0xff]
    %v938 = vld [vmem:[#allocation4 + $0x598] sm:$0xff]
    %v939 = vld [vmem:[#allocation4 + $0x5a0] sm:$0xff]
    %v940 = vld [vmem:[#allocation4 + $0x5a8] sm:$0xff]
    %v941 = vld [vmem:[#allocation4 + $0x5b0] sm:$0xff]
    %v942 = vld [vmem:[#allocation4 + $0x5b8] sm:$0xff]
    %v943 = vld [vmem:[#allocation4 + $0x5c0] sm:$0xff]
    %v944 = vld [vmem:[#allocation4 + $0x5c8] sm:$0xff]
    %v945 = vld [vmem:[#allocation4 + $0x5d0] sm:$0xff]
    %v946 = vld [vmem:[#allocation4 + $0x5d8] sm:$0xff]
    %v947 = vld [vmem:[#allocation4 + $0x5e0] sm:$0xff]
    %v948 = vld [vmem:[#allocation4 + $0x5e8] sm:$0xff]
    %v949 = vld [vmem:[#allocation4 + $0x5f0] sm:$0xff]
    %v950 = vld [vmem:[#allocation4 + $0x5f8] sm:$0xff]
    %v951 = vld [vmem:[#allocation4 + $0x600] sm:$0xff]
    %v952 = vld [vmem:[#allocation4 + $0x608] sm:$0xff]
    %v953 = vld [vmem:[#allocation4 + $0x610] sm:$0xff]
    %v954 = vld [vmem:[#allocation4 + $0x618] sm:$0xff]
    %v955 = vld [vmem:[#allocation4 + $0x620] sm:$0xff]
    %v956 = vld [vmem:[#allocation4 + $0x628] sm:$0xff]
    %v957 = vld [vmem:[#allocation4 + $0x630] sm:$0xff]
    %v958 = vld [vmem:[#allocation4 + $0x638] sm:$0xff]
    %v959 = vld [vmem:[#allocation4 + $0x640] sm:$0xff]
    %v960 = vld [vmem:[#allocation4 + $0x648] sm:$0xff]
    %v961 = vld [vmem:[#allocation4 + $0x650] sm:$0xff]
    %v962 = vld [vmem:[#allocation4 + $0x658] sm:$0xff]
    %v963 = vld [vmem:[#allocation4 + $0x660] sm:$0xff]
    %v964 = vld [vmem:[#allocation4 + $0x668] sm:$0xff]
    %v965 = vld [vmem:[#allocation4 + $0x670] sm:$0xff]
    %v966 = vld [vmem:[#allocation4 + $0x678] sm:$0xff]
    %v967 = vld [vmem:[#allocation4 + $0x680] sm:$0xff]
    %v968 = vld [vmem:[#allocation4 + $0x688] sm:$0xff]
    %v969 = vld [vmem:[#allocation4 + $0x690] sm:$0xff]
    %v970 = vld [vmem:[#allocation4 + $0x698] sm:$0xff]
    %v971 = vld [vmem:[#allocation4 + $0x6a0] sm:$0xff]
    %v972 = vld [vmem:[#allocation4 + $0x6a8] sm:$0xff]
    %v973 = vld [vmem:[#allocation4 + $0x6b0] sm:$0xff]
    %v974 = vld [vmem:[#allocation4 + $0x6b8] sm:$0xff]
    %v975 = vld [vmem:[#allocation4 + $0x6c0] sm:$0xff]
    %v976 = vld [vmem:[#allocation4 + $0x6c8] sm:$0xff]
    %v977 = vld [vmem:[#allocation4 + $0x6d0] sm:$0xff]
    %v978 = vld [vmem:[#allocation4 + $0x6d8] sm:$0xff]
    %v979 = vld [vmem:[#allocation4 + $0x6e0] sm:$0xff]
    %v980 = vld [vmem:[#allocation4 + $0x6e8] sm:$0xff]
    %v981 = vld [vmem:[#allocation4 + $0x6f0] sm:$0xff]
    %v982 = vld [vmem:[#allocation4 + $0x6f8] sm:$0xff]
    %v983 = vld [vmem:[#allocation4 + $0x700] sm:$0xff]
    %v984 = vld [vmem:[#allocation4 + $0x708] sm:$0xff]
    %v985 = vld [vmem:[#allocation4 + $0x710] sm:$0xff]
    %v986 = vld [vmem:[#allocation4 + $0x718] sm:$0xff]
    %v987 = vld [vmem:[#allocation4 + $0x720] sm:$0xff]
    %v988 = vld [vmem:[#allocation4 + $0x728] sm:$0xff]
    %v989 = vld [vmem:[#allocation4 + $0x730] sm:$0xff]
    %v990 = vld [vmem:[#allocation4 + $0x738] sm:$0xff]
    %v991 = vld [vmem:[#allocation4 + $0x740] sm:$0xff]
    %v992 = vld [vmem:[#allocation4 + $0x748] sm:$0xff]
    %v993 = vld [vmem:[#allocation4 + $0x750] sm:$0xff]
    %v994 = vld [vmem:[#allocation4 + $0x758] sm:$0xff]
    %v995 = vld [vmem:[#allocation4 + $0x760] sm:$0xff]
    %v996 = vld [vmem:[#allocation4 + $0x768] sm:$0xff]
    %v997 = vld [vmem:[#allocation4 + $0x770] sm:$0xff]
    %v998 = vld [vmem:[#allocation4 + $0x778] sm:$0xff]
    %v999 = vld [vmem:[#allocation4 + $0x780] sm:$0xff]
    %v1000 = vld [vmem:[#allocation4 + $0x788] sm:$0xff]
    %v1001 = vld [vmem:[#allocation4 + $0x790] sm:$0xff]
    %v1002 = vld [vmem:[#allocation4 + $0x798] sm:$0xff]
    %v1003 = vld [vmem:[#allocation4 + $0x7a0] sm:$0xff]
    %v1004 = vld [vmem:[#allocation4 + $0x7a8] sm:$0xff]
    %v1005 = vld [vmem:[#allocation4 + $0x7b0] sm:$0xff]
    %v1006 = vld [vmem:[#allocation4 + $0x7b8] sm:$0xff]
    %v1007 = vld [vmem:[#allocation4 + $0x7c0] sm:$0xff]
    %v1008 = vld [vmem:[#allocation4 + $0x7c8] sm:$0xff]
    %v1009 = vld [vmem:[#allocation4 + $0x7d0] sm:$0xff]
    %v1010 = vld [vmem:[#allocation4 + $0x7d8] sm:$0xff]
    %v1011 = vld [vmem:[#allocation4 + $0x7e0] sm:$0xff]
    %v1012 = vld [vmem:[#allocation4 + $0x7e8] sm:$0xff]
    %v1013 = vld [vmem:[#allocation4 + $0x7f0] sm:$0xff]
    %v1014 = vld [vmem:[#allocation4 + $0x7f8] sm:$0xff]
    %v1015 = vld [vmem:[#allocation2] sm:$0xff]
    %v1016 = vld [vmem:[#allocation2 + $0x8] sm:$0xff]
    %v1017 = vld [vmem:[#allocation2 + $0x10] sm:$0xff]
    %v1018 = vld [vmem:[#allocation2 + $0x18] sm:$0xff]
    %v1019 = vld [vmem:[#allocation2 + $0x20] sm:$0xff]
    %v1020 = vld [vmem:[#allocation2 + $0x28] sm:$0xff]
    %v1021 = vld [vmem:[#allocation2 + $0x30] sm:$0xff]
    %v1022 = vld [vmem:[#allocation2 + $0x38] sm:$0xff]
    %1023 = vmatprep.subr.mxu0 %v880
    %1024 = vmatpush1.msra.mxu0 %v879
    %1025 = vmatprep.subr.mxu0 %v872
    %1026 = vmatpush1.msra.mxu0 %v871
    %1027 = vmatprep.subr.mxu0 %v864
    %1028 = vmatpush1.msra.mxu0 %v863
    %1029 = vmatprep.subr.mxu0 %v856
    %1030 = vmatpush1.msra.mxu0 %v855
    %1031 = vmatprep.subr.mxu0 %v848
    %1032 = vmatpush1.msra.mxu0 %v847
    %1033 = vmatprep.subr.mxu0 %v840
    %1034 = vmatpush1.msra.mxu0 %v839
    %1035 = vmatprep.subr.mxu0 %v832
    %1036 = vmatpush1.msra.mxu0 %v831
    %1037 = vmatprep.subr.mxu0 %v824
    %1038 = vmatpush1.msra.mxu0 %v823
    %1039 = vmatprep.subr.mxu0 %v816
    %1040 = vmatpush1.msra.mxu0 %v815
    %1041 = vmatprep.subr.mxu0 %v808
    %1042 = vmatpush1.msra.mxu0 %v807
    %1043 = vmatprep.subr.mxu0 %v800
    %1044 = vmatpush1.msra.mxu0 %v799
    %1045 = vmatprep.subr.mxu0 %v792
    %1046 = vmatpush1.msra.mxu0 %v791
    %1047 = vmatprep.subr.mxu0 %v784
    %1048 = vmatpush1.msra.mxu0 %v783
    %1049 = vmatprep.subr.mxu0 %v776
    %1050 = vmatpush1.msra.mxu0 %v775
    %1051 = vmatprep.subr.mxu0 %v768
    %1052 = vmatpush1.msra.mxu0 %v767
    %1053 = vmatprep.subr.mxu0 %v760
    %1054 = vmatpush1.msra.mxu0 %v759
    %1055 = vmatprep.subr.mxu0 %v1008
    %1056 = vmatpush2.msra.mxu0 %v1007
    %1057 = vmatprep.subr.mxu0 %v1000
    %1058 = vmatpush2.msra.mxu0 %v999
    %1059 = vmatprep.subr.mxu0 %v992
    %1060 = vmatpush2.msra.mxu0 %v991
    %1061 = vmatprep.subr.mxu0 %v984
    %1062 = vmatpush2.msra.mxu0 %v983
    %1063 = vmatprep.subr.mxu0 %v976
    %1064 = vmatpush2.msra.mxu0 %v975
    %1065 = vmatprep.subr.mxu0 %v968
    %1066 = vmatpush2.msra.mxu0 %v967
    %1067 = vmatprep.subr.mxu0 %v960
    %1068 = vmatpush2.msra.mxu0 %v959
    %1069 = vmatprep.subr.mxu0 %v952
    %1070 = vmatpush2.msra.mxu0 %v951
    %1071 = vmatprep.subr.mxu0 %v944
    %1072 = vmatpush2.msra.mxu0 %v943
    %1073 = vmatprep.subr.mxu0 %v936
    %1074 = vmatpush2.msra.mxu0 %v935
    %1075 = vmatprep.subr.mxu0 %v928
    %1076 = vmatpush2.msra.mxu0 %v927
    %1077 = vmatprep.subr.mxu0 %v920
    %1078 = vmatpush2.msra.mxu0 %v919
    %1079 = vmatprep.subr.mxu0 %v912
    %1080 = vmatpush2.msra.mxu0 %v911
    %1081 = vmatprep.subr.mxu0 %v904
    %1082 = vmatpush2.msra.mxu0 %v903
    %1083 = vmatprep.subr.mxu0 %v896
    %1084 = vmatpush2.msra.mxu0 %v895
    %1085 = vmatprep.subr.mxu0 %v888
    %1086 = vmatpush2.msra.mxu0 %v887
    %1087 = vmatprep.mubr.f32.mxu0 0.0
    %1088 = vmatmul.mubr.f32.gmra.mxu0 0.0
    %v1089 = vpop.f32.mrf.mxu0
    %v1090 = vadd.f32 0.0, %v1089
    %v1091 = vpop.f32.mrf.mxu0
    %v1092 = vadd.f32 0.0, %v1091
    %1093 = vdwg.mxu0
    %1094 = vmatprep.subr.mxu0 %v882
    %1095 = vmatpush1.msra.mxu0 %v881
    %1096 = vmatprep.subr.mxu0 %v874
    %1097 = vmatpush1.msra.mxu0 %v873
    %1098 = vmatprep.subr.mxu0 %v866
    %1099 = vmatpush1.msra.mxu0 %v865
    %1100 = vmatprep.subr.mxu0 %v858
    %1101 = vmatpush1.msra.mxu0 %v857
    %1102 = vmatprep.subr.mxu0 %v850
    %1103 = vmatpush1.msra.mxu0 %v849
    %1104 = vmatprep.subr.mxu0 %v842
    %1105 = vmatpush1.msra.mxu0 %v841
    %1106 = vmatprep.subr.mxu0 %v834
    %1107 = vmatpush1.msra.mxu0 %v833
    %1108 = vmatprep.subr.mxu0 %v826
    %1109 = vmatpush1.msra.mxu0 %v825
    %1110 = vmatprep.subr.mxu0 %v818
    %1111 = vmatpush1.msra.mxu0 %v817
    %1112 = vmatprep.subr.mxu0 %v810
    %1113 = vmatpush1.msra.mxu0 %v809
    %1114 = vmatprep.subr.mxu0 %v802
    %1115 = vmatpush1.msra.mxu0 %v801
    %1116 = vmatprep.subr.mxu0 %v794
    %1117 = vmatpush1.msra.mxu0 %v793
    %1118 = vmatprep.subr.mxu0 %v786
    %1119 = vmatpush1.msra.mxu0 %v785
    %1120 = vmatprep.subr.mxu0 %v778
    %1121 = vmatpush1.msra.mxu0 %v777
    %1122 = vmatprep.subr.mxu0 %v770
    %1123 = vmatpush1.msra.mxu0 %v769
    %1124 = vmatprep.subr.mxu0 %v762
    %1125 = vmatpush1.msra.mxu0 %v761
    %1126 = vmatprep.subr.mxu0 %v1010
    %1127 = vmatpush2.msra.mxu0 %v1009
    %1128 = vmatprep.subr.mxu0 %v1002
    %1129 = vmatpush2.msra.mxu0 %v1001
    %1130 = vmatprep.subr.mxu0 %v994
    %1131 = vmatpush2.msra.mxu0 %v993
    %1132 = vmatprep.subr.mxu0 %v986
    %1133 = vmatpush2.msra.mxu0 %v985
    %1134 = vmatprep.subr.mxu0 %v978
    %1135 = vmatpush2.msra.mxu0 %v977
    %1136 = vmatprep.subr.mxu0 %v970
    %1137 = vmatpush2.msra.mxu0 %v969
    %1138 = vmatprep.subr.mxu0 %v962
    %1139 = vmatpush2.msra.mxu0 %v961
    %1140 = vmatprep.subr.mxu0 %v954
    %1141 = vmatpush2.msra.mxu0 %v953
    %1142 = vmatprep.subr.mxu0 %v946
    %1143 = vmatpush2.msra.mxu0 %v945
    %1144 = vmatprep.subr.mxu0 %v938
    %1145 = vmatpush2.msra.mxu0 %v937
    %1146 = vmatprep.subr.mxu0 %v930
    %1147 = vmatpush2.msra.mxu0 %v929
    %1148 = vmatprep.subr.mxu0 %v922
    %1149 = vmatpush2.msra.mxu0 %v921
    %1150 = vmatprep.subr.mxu0 %v914
    %1151 = vmatpush2.msra.mxu0 %v913
    %1152 = vmatprep.subr.mxu0 %v906
    %1153 = vmatpush2.msra.mxu0 %v905
    %1154 = vmatprep.subr.mxu0 %v898
    %1155 = vmatpush2.msra.mxu0 %v897
    %1156 = vmatprep.subr.mxu0 %v890
    %1157 = vmatpush2.msra.mxu0 %v889
    %1158 = vmatprep.mubr.f32.mxu0 0.0
    %1159 = vmatmul.mubr.f32.gmra.mxu0 0.0
    %v1160 = vpop.f32.mrf.mxu0
    %v1161 = vadd.f32 0.0, %v1160
    %v1162 = vpop.f32.mrf.mxu0
    %v1163 = vadd.f32 0.0, %v1162
    %1164 = vdwg.mxu0
    %1165 = vmatprep.subr.mxu0 %v884
    %1166 = vmatpush1.msra.mxu0 %v883
    %1167 = vmatprep.subr.mxu0 %v876
    %1168 = vmatpush1.msra.mxu0 %v875
    %1169 = vmatprep.subr.mxu0 %v868
    %1170 = vmatpush1.msra.mxu0 %v867
    %1171 = vmatprep.subr.mxu0 %v860
    %1172 = vmatpush1.msra.mxu0 %v859
    %1173 = vmatprep.subr.mxu0 %v852
    %1174 = vmatpush1.msra.mxu0 %v851
    %1175 = vmatprep.subr.mxu0 %v844
    %1176 = vmatpush1.msra.mxu0 %v843
    %1177 = vmatprep.subr.mxu0 %v836
    %1178 = vmatpush1.msra.mxu0 %v835
    %1179 = vmatprep.subr.mxu0 %v828
    %1180 = vmatpush1.msra.mxu0 %v827
    %1181 = vmatprep.subr.mxu0 %v820
    %1182 = vmatpush1.msra.mxu0 %v819
    %1183 = vmatprep.subr.mxu0 %v812
    %1184 = vmatpush1.msra.mxu0 %v811
    %1185 = vmatprep.subr.mxu0 %v804
    %1186 = vmatpush1.msra.mxu0 %v803
    %1187 = vmatprep.subr.mxu0 %v796
    %1188 = vmatpush1.msra.mxu0 %v795
    %1189 = vmatprep.subr.mxu0 %v788
    %1190 = vmatpush1.msra.mxu0 %v787
    %1191 = vmatprep.subr.mxu0 %v780
    %1192 = vmatpush1.msra.mxu0 %v779
    %1193 = vmatprep.subr.mxu0 %v772
    %1194 = vmatpush1.msra.mxu0 %v771
    %1195 = vmatprep.subr.mxu0 %v764
    %1196 = vmatpush1.msra.mxu0 %v763
    %1197 = vmatprep.subr.mxu0 %v1012
    %1198 = vmatpush2.msra.mxu0 %v1011
    %1199 = vmatprep.subr.mxu0 %v1004
    %1200 = vmatpush2.msra.mxu0 %v1003
    %1201 = vmatprep.subr.mxu0 %v996
    %1202 = vmatpush2.msra.mxu0 %v995
    %1203 = vmatprep.subr.mxu0 %v988
    %1204 = vmatpush2.msra.mxu0 %v987
    %1205 = vmatprep.subr.mxu0 %v980
    %1206 = vmatpush2.msra.mxu0 %v979
    %1207 = vmatprep.subr.mxu0 %v972
    %1208 = vmatpush2.msra.mxu0 %v971
    %1209 = vmatprep.subr.mxu0 %v964
    %1210 = vmatpush2.msra.mxu0 %v963
    %1211 = vmatprep.subr.mxu0 %v956
    %1212 = vmatpush2.msra.mxu0 %v955
    %1213 = vmatprep.subr.mxu0 %v948
    %1214 = vmatpush2.msra.mxu0 %v947
    %1215 = vmatprep.subr.mxu0 %v940
    %1216 = vmatpush2.msra.mxu0 %v939
    %1217 = vmatprep.subr.mxu0 %v932
    %1218 = vmatpush2.msra.mxu0 %v931
    %1219 = vmatprep.subr.mxu0 %v924
    %1220 = vmatpush2.msra.mxu0 %v923
    %1221 = vmatprep.subr.mxu0 %v916
    %1222 = vmatpush2.msra.mxu0 %v915
    %1223 = vmatprep.subr.mxu0 %v908
    %1224 = vmatpush2.msra.mxu0 %v907
    %1225 = vmatprep.subr.mxu0 %v900
    %1226 = vmatpush2.msra.mxu0 %v899
    %1227 = vmatprep.subr.mxu0 %v892
    %1228 = vmatpush2.msra.mxu0 %v891
    %1229 = vmatprep.mubr.f32.mxu0 0.0
    %1230 = vmatmul.mubr.f32.gmra.mxu0 0.0
    %v1231 = vpop.f32.mrf.mxu0
    %v1232 = vadd.f32 0.0, %v1231
    %v1233 = vpop.f32.mrf.mxu0
    %v1234 = vadd.f32 0.0, %v1233
    %1235 = vdwg.mxu0
    %1236 = vmatprep.subr.mxu0 %v886
    %1237 = vmatpush1.msra.mxu0 %v885
    %1238 = vmatprep.subr.mxu0 %v878
    %1239 = vmatpush1.msra.mxu0 %v877
    %1240 = vmatprep.subr.mxu0 %v870
    %1241 = vmatpush1.msra.mxu0 %v869
    %1242 = vmatprep.subr.mxu0 %v862
    %1243 = vmatpush1.msra.mxu0 %v861
    %1244 = vmatprep.subr.mxu0 %v854
    %1245 = vmatpush1.msra.mxu0 %v853
    %1246 = vmatprep.subr.mxu0 %v846
    %1247 = vmatpush1.msra.mxu0 %v845
    %1248 = vmatprep.subr.mxu0 %v838
    %1249 = vmatpush1.msra.mxu0 %v837
    %1250 = vmatprep.subr.mxu0 %v830
    %1251 = vmatpush1.msra.mxu0 %v829
    %1252 = vmatprep.subr.mxu0 %v822
    %1253 = vmatpush1.msra.mxu0 %v821
    %1254 = vmatprep.subr.mxu0 %v814
    %1255 = vmatpush1.msra.mxu0 %v813
    %1256 = vmatprep.subr.mxu0 %v806
    %1257 = vmatpush1.msra.mxu0 %v805
    %1258 = vmatprep.subr.mxu0 %v798
    %1259 = vmatpush1.msra.mxu0 %v797
    %1260 = vmatprep.subr.mxu0 %v790
    %1261 = vmatpush1.msra.mxu0 %v789
    %1262 = vmatprep.subr.mxu0 %v782
    %1263 = vmatpush1.msra.mxu0 %v781
    %1264 = vmatprep.subr.mxu0 %v774
    %1265 = vmatpush1.msra.mxu0 %v773
    %1266 = vmatprep.subr.mxu0 %v766
    %1267 = vmatpush1.msra.mxu0 %v765
    %1268 = vmatprep.subr.mxu0 %v1014
    %1269 = vmatpush2.msra.mxu0 %v1013
    %1270 = vmatprep.subr.mxu0 %v1006
    %1271 = vmatpush2.msra.mxu0 %v1005
    %1272 = vmatprep.subr.mxu0 %v998
    %1273 = vmatpush2.msra.mxu0 %v997
    %1274 = vmatprep.subr.mxu0 %v990
    %1275 = vmatpush2.msra.mxu0 %v989
    %1276 = vmatprep.subr.mxu0 %v982
    %1277 = vmatpush2.msra.mxu0 %v981
    %1278 = vmatprep.subr.mxu0 %v974
    %1279 = vmatpush2.msra.mxu0 %v973
    %1280 = vmatprep.subr.mxu0 %v966
    %1281 = vmatpush2.msra.mxu0 %v965
    %1282 = vmatprep.subr.mxu0 %v958
    %1283 = vmatpush2.msra.mxu0 %v957
    %1284 = vmatprep.subr.mxu0 %v950
    %1285 = vmatpush2.msra.mxu0 %v949
    %1286 = vmatprep.subr.mxu0 %v942
    %1287 = vmatpush2.msra.mxu0 %v941
    %1288 = vmatprep.subr.mxu0 %v934
    %1289 = vmatpush2.msra.mxu0 %v933
    %1290 = vmatprep.subr.mxu0 %v926
    %1291 = vmatpush2.msra.mxu0 %v925
    %1292 = vmatprep.subr.mxu0 %v918
    %1293 = vmatpush2.msra.mxu0 %v917
    %1294 = vmatprep.subr.mxu0 %v910
    %1295 = vmatpush2.msra.mxu0 %v909
    %1296 = vmatprep.subr.mxu0 %v902
    %1297 = vmatpush2.msra.mxu0 %v901
    %1298 = vmatprep.subr.mxu0 %v894
    %1299 = vmatpush2.msra.mxu0 %v893
    %1300 = vmatprep.mubr.f32.mxu0 0.0
    %1301 = vmatmul.mubr.f32.gmra.mxu0 0.0
    %v1302 = vpop.f32.mrf.mxu0
    %v1303 = vadd.f32 0.0, %v1302
    %v1304 = vpop.f32.mrf.mxu0
    %v1305 = vadd.f32 0.0, %v1304
    %1306 = vdwg.mxu0
    %v1307 = vadd.f32 %v1015, %v1090
    %v1308 = vadd.f32 %v1016, %v1092
    %v1309 = vadd.f32 %v1017, %v1161
    %v1310 = vadd.f32 %v1018, %v1163
    %v1311 = vadd.f32 %v1019, %v1232
    %v1312 = vadd.f32 %v1020, %v1234
    %v1313 = vadd.f32 %v1021, %v1303
    %v1314 = vadd.f32 %v1022, %v1305
    %v1315 = vxor.u32 %v1307, 2147483648
    %v1316 = vxor.u32 %v1308, 2147483648
    %v1317 = vmul.f32 %v1315, 1.442695
    %v1318 = vpow.pop %v1317
    %v1319 = vmul.f32 %v1316, 1.442695
    %v1320 = vpow.pop %v1319
    %v1321 = vadd.f32 %v1318, 1.0
    %v1322 = vadd.f32 %v1320, 1.0
    %v1323 = vrcp.pop %v1321
    %v1324 = vmul.f32 1.0, %v1323
    %v1325 = vrcp.pop %v1322
    %v1326 = vmul.f32 1.0, %v1325
    %v1327 = vxor.u32 %v1309, 2147483648
    %v1328 = vxor.u32 %v1310, 2147483648
    %v1329 = vmul.f32 %v1327, 1.442695
    %v1330 = vpow.pop %v1329
    %v1331 = vmul.f32 %v1328, 1.442695
    %v1332 = vpow.pop %v1331
    %v1333 = vadd.f32 %v1330, 1.0
    %v1334 = vadd.f32 %v1332, 1.0
    %v1335 = vrcp.pop %v1333
    %v1336 = vmul.f32 1.0, %v1335
    %v1337 = vrcp.pop %v1334
    %v1338 = vmul.f32 1.0, %v1337
    %v1339 = vtanh.pop %v1311
    %v1340 = vtanh.pop %v1312
    %v1341 = vxor.u32 %v1313, 2147483648
    %v1342 = vxor.u32 %v1314, 2147483648
    %v1343 = vmul.f32 %v1341, 1.442695
    %v1344 = vpow.pop %v1343
    %v1345 = vmul.f32 %v1342, 1.442695
    %v1346 = vpow.pop %v1345
    %v1347 = vadd.f32 %v1344, 1.0
    %v1348 = vadd.f32 %v1346, 1.0
    %v1349 = vrcp.pop %v1347
    %v1350 = vmul.f32 1.0, %v1349
    %v1351 = vrcp.pop %v1348
    %v1352 = vmul.f32 1.0, %v1351
    %v1353 = vmul.f32 %v1336, 0.0
    %v1354 = vmul.f32 %v1338, 0.0
    %v1355 = vmul.f32 %v1324, %v1339
    %v1356 = vmul.f32 %v1326, %v1340
    %v1357 = vadd.f32 %v1353, %v1355
    %v1358 = vadd.f32 %v1354, %v1356
    %v1359 = vtanh.pop %v1357
    %v1360 = vtanh.pop %v1358
    %v1361 = vmul.f32 %v1350, %v1359
    %v1362 = vmul.f32 %v1352, %v1360
    %s1363 = scalar_lea.vmem [#allocation2], 64
    %v1364 = vld [vmem:[%s1363] sm:$0xff]
    %v1365 = vld [vmem:[%s1363 + $0x8] sm:$0xff]
    %v1366 = vld [vmem:[%s1363 + $0x10] sm:$0xff]
    %v1367 = vld [vmem:[%s1363 + $0x18] sm:$0xff]
    %v1368 = vld [vmem:[%s1363 + $0x20] sm:$0xff]
    %v1369 = vld [vmem:[%s1363 + $0x28] sm:$0xff]
    %v1370 = vld [vmem:[%s1363 + $0x30] sm:$0xff]
    %v1371 = vld [vmem:[%s1363 + $0x38] sm:$0xff]
    %1372 = vmatprep.subr.mxu0 %v880
    %1373 = vmatpush1.msra.mxu0 %v879
    %1374 = vmatprep.subr.mxu0 %v872
    %1375 = vmatpush1.msra.mxu0 %v871
    %1376 = vmatprep.subr.mxu0 %v864
    %1377 = vmatpush1.msra.mxu0 %v863
    %1378 = vmatprep.subr.mxu0 %v856
    %1379 = vmatpush1.msra.mxu0 %v855
    %1380 = vmatprep.subr.mxu0 %v848
    %1381 = vmatpush1.msra.mxu0 %v847
    %1382 = vmatprep.subr.mxu0 %v840
    %1383 = vmatpush1.msra.mxu0 %v839
    %1384 = vmatprep.subr.mxu0 %v832
    %1385 = vmatpush1.msra.mxu0 %v831
    %1386 = vmatprep.subr.mxu0 %v824
    %1387 = vmatpush1.msra.mxu0 %v823
    %1388 = vmatprep.subr.mxu0 %v816
    %1389 = vmatpush1.msra.mxu0 %v815
    %1390 = vmatprep.subr.mxu0 %v808
    %1391 = vmatpush1.msra.mxu0 %v807
    %1392 = vmatprep.subr.mxu0 %v800
    %1393 = vmatpush1.msra.mxu0 %v799
    %1394 = vmatprep.subr.mxu0 %v792
    %1395 = vmatpush1.msra.mxu0 %v791
    %1396 = vmatprep.subr.mxu0 %v784
    %1397 = vmatpush1.msra.mxu0 %v783
    %1398 = vmatprep.subr.mxu0 %v776
    %1399 = vmatpush1.msra.mxu0 %v775
    %1400 = vmatprep.subr.mxu0 %v768
    %1401 = vmatpush1.msra.mxu0 %v767
    %1402 = vmatprep.subr.mxu0 %v760
    %1403 = vmatpush1.msra.mxu0 %v759
    %1404 = vmatprep.subr.mxu0 %v1008
    %1405 = vmatpush2.msra.mxu0 %v1007
    %1406 = vmatprep.subr.mxu0 %v1000
    %1407 = vmatpush2.msra.mxu0 %v999
    %1408 = vmatprep.subr.mxu0 %v992
    %1409 = vmatpush2.msra.mxu0 %v991
    %1410 = vmatprep.subr.mxu0 %v984
    %1411 = vmatpush2.msra.mxu0 %v983
    %1412 = vmatprep.subr.mxu0 %v976
    %1413 = vmatpush2.msra.mxu0 %v975
    %1414 = vmatprep.subr.mxu0 %v968
    %1415 = vmatpush2.msra.mxu0 %v967
    %1416 = vmatprep.subr.mxu0 %v960
    %1417 = vmatpush2.msra.mxu0 %v959
    %1418 = vmatprep.subr.mxu0 %v952
    %1419 = vmatpush2.msra.mxu0 %v951
    %1420 = vmatprep.subr.mxu0 %v944
    %1421 = vmatpush2.msra.mxu0 %v943
    %1422 = vmatprep.subr.mxu0 %v936
    %1423 = vmatpush2.msra.mxu0 %v935
    %1424 = vmatprep.subr.mxu0 %v928
    %1425 = vmatpush2.msra.mxu0 %v927
    %1426 = vmatprep.subr.mxu0 %v920
    %1427 = vmatpush2.msra.mxu0 %v919
    %1428 = vmatprep.subr.mxu0 %v912
    %1429 = vmatpush2.msra.mxu0 %v911
    %1430 = vmatprep.subr.mxu0 %v904
    %1431 = vmatpush2.msra.mxu0 %v903
    %1432 = vmatprep.subr.mxu0 %v896
    %1433 = vmatpush2.msra.mxu0 %v895
    %1434 = vmatprep.subr.mxu0 %v888
    %1435 = vmatpush2.msra.mxu0 %v887
    %1436 = vmatprep.mubr.f32.mxu0 %v1362
    %1437 = vmatmul.mubr.f32.gmra.mxu0 %v1361
    %v1438 = vpop.f32.mrf.mxu0
    %v1439 = vadd.f32 0.0, %v1438
    %v1440 = vpop.f32.mrf.mxu0
    %v1441 = vadd.f32 0.0, %v1440
    %1442 = vdwg.mxu0
    %1443 = vmatprep.subr.mxu0 %v882
    %1444 = vmatpush1.msra.mxu0 %v881
    %1445 = vmatprep.subr.mxu0 %v874
    %1446 = vmatpush1.msra.mxu0 %v873
    %1447 = vmatprep.subr.mxu0 %v866
    %1448 = vmatpush1.msra.mxu0 %v865
    %1449 = vmatprep.subr.mxu0 %v858
    %1450 = vmatpush1.msra.mxu0 %v857
    %1451 = vmatprep.subr.mxu0 %v850
    %1452 = vmatpush1.msra.mxu0 %v849
    %1453 = vmatprep.subr.mxu0 %v842
    %1454 = vmatpush1.msra.mxu0 %v841
    %1455 = vmatprep.subr.mxu0 %v834
    %1456 = vmatpush1.msra.mxu0 %v833
    %1457 = vmatprep.subr.mxu0 %v826
    %1458 = vmatpush1.msra.mxu0 %v825
    %1459 = vmatprep.subr.mxu0 %v818
    %1460 = vmatpush1.msra.mxu0 %v817
    %1461 = vmatprep.subr.mxu0 %v810
    %1462 = vmatpush1.msra.mxu0 %v809
    %1463 = vmatprep.subr.mxu0 %v802
    %1464 = vmatpush1.msra.mxu0 %v801
    %1465 = vmatprep.subr.mxu0 %v794
    %1466 = vmatpush1.msra.mxu0 %v793
    %1467 = vmatprep.subr.mxu0 %v786
    %1468 = vmatpush1.msra.mxu0 %v785
    %1469 = vmatprep.subr.mxu0 %v778
    %1470 = vmatpush1.msra.mxu0 %v777
    %1471 = vmatprep.subr.mxu0 %v770
    %1472 = vmatpush1.msra.mxu0 %v769
    %1473 = vmatprep.subr.mxu0 %v762
    %1474 = vmatpush1.msra.mxu0 %v761
    %1475 = vmatprep.subr.mxu0 %v1010
    %1476 = vmatpush2.msra.mxu0 %v1009
    %1477 = vmatprep.subr.mxu0 %v1002
    %1478 = vmatpush2.msra.mxu0 %v1001
    %1479 = vmatprep.subr.mxu0 %v994
    %1480 = vmatpush2.msra.mxu0 %v993
    %1481 = vmatprep.subr.mxu0 %v986
    %1482 = vmatpush2.msra.mxu0 %v985
    %1483 = vmatprep.subr.mxu0 %v978
    %1484 = vmatpush2.msra.mxu0 %v977
    %1485 = vmatprep.subr.mxu0 %v970
    %1486 = vmatpush2.msra.mxu0 %v969
    %1487 = vmatprep.subr.mxu0 %v962
    %1488 = vmatpush2.msra.mxu0 %v961
    %1489 = vmatprep.subr.mxu0 %v954
    %1490 = vmatpush2.msra.mxu0 %v953
    %1491 = vmatprep.subr.mxu0 %v946
    %1492 = vmatpush2.msra.mxu0 %v945
    %1493 = vmatprep.subr.mxu0 %v938
    %1494 = vmatpush2.msra.mxu0 %v937
    %1495 = vmatprep.subr.mxu0 %v930
    %1496 = vmatpush2.msra.mxu0 %v929
    %1497 = vmatprep.subr.mxu0 %v922
    %1498 = vmatpush2.msra.mxu0 %v921
    %1499 = vmatprep.subr.mxu0 %v914
    %1500 = vmatpush2.msra.mxu0 %v913
    %1501 = vmatprep.subr.mxu0 %v906
    %1502 = vmatpush2.msra.mxu0 %v905
    %1503 = vmatprep.subr.mxu0 %v898
    %1504 = vmatpush2.msra.mxu0 %v897
    %1505 = vmatprep.subr.mxu0 %v890
    %1506 = vmatpush2.msra.mxu0 %v889
    %1507 = vmatprep.mubr.f32.mxu0 %v1362
    %1508 = vmatmul.mubr.f32.gmra.mxu0 %v1361
    %v1509 = vpop.f32.mrf.mxu0
    %v1510 = vadd.f32 0.0, %v1509
    %v1511 = vpop.f32.mrf.mxu0
    %v1512 = vadd.f32 0.0, %v1511
    %1513 = vdwg.mxu0
    %1514 = vmatprep.subr.mxu0 %v884
    %1515 = vmatpush1.msra.mxu0 %v883
    %1516 = vmatprep.subr.mxu0 %v876
    %1517 = vmatpush1.msra.mxu0 %v875
    %1518 = vmatprep.subr.mxu0 %v868
    %1519 = vmatpush1.msra.mxu0 %v867
    %1520 = vmatprep.subr.mxu0 %v860
    %1521 = vmatpush1.msra.mxu0 %v859
    %1522 = vmatprep.subr.mxu0 %v852
    %1523 = vmatpush1.msra.mxu0 %v851
    %1524 = vmatprep.subr.mxu0 %v844
    %1525 = vmatpush1.msra.mxu0 %v843
    %1526 = vmatprep.subr.mxu0 %v836
    %1527 = vmatpush1.msra.mxu0 %v835
    %1528 = vmatprep.subr.mxu0 %v828
    %1529 = vmatpush1.msra.mxu0 %v827
    %1530 = vmatprep.subr.mxu0 %v820
    %1531 = vmatpush1.msra.mxu0 %v819
    %1532 = vmatprep.subr.mxu0 %v812
    %1533 = vmatpush1.msra.mxu0 %v811
    %1534 = vmatprep.subr.mxu0 %v804
    %1535 = vmatpush1.msra.mxu0 %v803
    %1536 = vmatprep.subr.mxu0 %v796
    %1537 = vmatpush1.msra.mxu0 %v795
    %1538 = vmatprep.subr.mxu0 %v788
    %1539 = vmatpush1.msra.mxu0 %v787
    %1540 = vmatprep.subr.mxu0 %v780
    %1541 = vmatpush1.msra.mxu0 %v779
    %1542 = vmatprep.subr.mxu0 %v772
    %1543 = vmatpush1.msra.mxu0 %v771
    %1544 = vmatprep.subr.mxu0 %v764
    %1545 = vmatpush1.msra.mxu0 %v763
    %1546 = vmatprep.subr.mxu0 %v1012
    %1547 = vmatpush2.msra.mxu0 %v1011
    %1548 = vmatprep.subr.mxu0 %v1004
    %1549 = vmatpush2.msra.mxu0 %v1003
    %1550 = vmatprep.subr.mxu0 %v996
    %1551 = vmatpush2.msra.mxu0 %v995
    %1552 = vmatprep.subr.mxu0 %v988
    %1553 = vmatpush2.msra.mxu0 %v987
    %1554 = vmatprep.subr.mxu0 %v980
    %1555 = vmatpush2.msra.mxu0 %v979
    %1556 = vmatprep.subr.mxu0 %v972
    %1557 = vmatpush2.msra.mxu0 %v971
    %1558 = vmatprep.subr.mxu0 %v964
    %1559 = vmatpush2.msra.mxu0 %v963
    %1560 = vmatprep.subr.mxu0 %v956
    %1561 = vmatpush2.msra.mxu0 %v955
    %1562 = vmatprep.subr.mxu0 %v948
    %1563 = vmatpush2.msra.mxu0 %v947
    %1564 = vmatprep.subr.mxu0 %v940
    %1565 = vmatpush2.msra.mxu0 %v939
    %1566 = vmatprep.subr.mxu0 %v932
    %1567 = vmatpush2.msra.mxu0 %v931
    %1568 = vmatprep.subr.mxu0 %v924
    %1569 = vmatpush2.msra.mxu0 %v923
    %1570 = vmatprep.subr.mxu0 %v916
    %1571 = vmatpush2.msra.mxu0 %v915
    %1572 = vmatprep.subr.mxu0 %v908
    %1573 = vmatpush2.msra.mxu0 %v907
    %1574 = vmatprep.subr.mxu0 %v900
    %1575 = vmatpush2.msra.mxu0 %v899
    %1576 = vmatprep.subr.mxu0 %v892
    %1577 = vmatpush2.msra.mxu0 %v891
    %1578 = vmatprep.mubr.f32.mxu0 %v1362
    %1579 = vmatmul.mubr.f32.gmra.mxu0 %v1361
    %v1580 = vpop.f32.mrf.mxu0
    %v1581 = vadd.f32 0.0, %v1580
    %v1582 = vpop.f32.mrf.mxu0
    %v1583 = vadd.f32 0.0, %v1582
    %1584 = vdwg.mxu0
    %1585 = vmatprep.subr.mxu0 %v886
    %1586 = vmatpush1.msra.mxu0 %v885
    %1587 = vmatprep.subr.mxu0 %v878
    %1588 = vmatpush1.msra.mxu0 %v877
    %1589 = vmatprep.subr.mxu0 %v870
    %1590 = vmatpush1.msra.mxu0 %v869
    %1591 = vmatprep.subr.mxu0 %v862
    %1592 = vmatpush1.msra.mxu0 %v861
    %1593 = vmatprep.subr.mxu0 %v854
    %1594 = vmatpush1.msra.mxu0 %v853
    %1595 = vmatprep.subr.mxu0 %v846
    %1596 = vmatpush1.msra.mxu0 %v845
    %1597 = vmatprep.subr.mxu0 %v838
    %1598 = vmatpush1.msra.mxu0 %v837
    %1599 = vmatprep.subr.mxu0 %v830
    %1600 = vmatpush1.msra.mxu0 %v829
    %1601 = vmatprep.subr.mxu0 %v822
    %1602 = vmatpush1.msra.mxu0 %v821
    %1603 = vmatprep.subr.mxu0 %v814
    %1604 = vmatpush1.msra.mxu0 %v813
    %1605 = vmatprep.subr.mxu0 %v806
    %1606 = vmatpush1.msra.mxu0 %v805
    %1607 = vmatprep.subr.mxu0 %v798
    %1608 = vmatpush1.msra.mxu0 %v797
    %1609 = vmatprep.subr.mxu0 %v790
    %1610 = vmatpush1.msra.mxu0 %v789
    %1611 = vmatprep.subr.mxu0 %v782
    %1612 = vmatpush1.msra.mxu0 %v781
    %1613 = vmatprep.subr.mxu0 %v774
    %1614 = vmatpush1.msra.mxu0 %v773
    %1615 = vmatprep.subr.mxu0 %v766
    %1616 = vmatpush1.msra.mxu0 %v765
    %1617 = vmatprep.subr.mxu0 %v1014
    %1618 = vmatpush2.msra.mxu0 %v1013
    %1619 = vmatprep.subr.mxu0 %v1006
    %1620 = vmatpush2.msra.mxu0 %v1005
    %1621 = vmatprep.subr.mxu0 %v998
    %1622 = vmatpush2.msra.mxu0 %v997
    %1623 = vmatprep.subr.mxu0 %v990
    %1624 = vmatpush2.msra.mxu0 %v989
    %1625 = vmatprep.subr.mxu0 %v982
    %1626 = vmatpush2.msra.mxu0 %v981
    %1627 = vmatprep.subr.mxu0 %v974
    %1628 = vmatpush2.msra.mxu0 %v973
    %1629 = vmatprep.subr.mxu0 %v966
    %1630 = vmatpush2.msra.mxu0 %v965
    %1631 = vmatprep.subr.mxu0 %v958
    %1632 = vmatpush2.msra.mxu0 %v957
    %1633 = vmatprep.subr.mxu0 %v950
    %1634 = vmatpush2.msra.mxu0 %v949
    %1635 = vmatprep.subr.mxu0 %v942
    %1636 = vmatpush2.msra.mxu0 %v941
    %1637 = vmatprep.subr.mxu0 %v934
    %1638 = vmatpush2.msra.mxu0 %v933
    %1639 = vmatprep.subr.mxu0 %v926
    %1640 = vmatpush2.msra.mxu0 %v925
    %1641 = vmatprep.subr.mxu0 %v918
    %1642 = vmatpush2.msra.mxu0 %v917
    %1643 = vmatprep.subr.mxu0 %v910
    %1644 = vmatpush2.msra.mxu0 %v909
    %1645 = vmatprep.subr.mxu0 %v902
    %1646 = vmatpush2.msra.mxu0 %v901
    %1647 = vmatprep.subr.mxu0 %v894
    %1648 = vmatpush2.msra.mxu0 %v893
    %1649 = vmatprep.mubr.f32.mxu0 %v1362
    %1650 = vmatmul.mubr.f32.gmra.mxu0 %v1361
    %v1651 = vpop.f32.mrf.mxu0
    %v1652 = vadd.f32 0.0, %v1651
    %v1653 = vpop.f32.mrf.mxu0
    %v1654 = vadd.f32 0.0, %v1653
    %1655 = vdwg.mxu0
    %v1656 = vadd.f32 %v1364, %v1439
    %v1657 = vadd.f32 %v1365, %v1441
    %v1658 = vadd.f32 %v1366, %v1510
    %v1659 = vadd.f32 %v1367, %v1512
    %v1660 = vadd.f32 %v1368, %v1581
    %v1661 = vadd.f32 %v1369, %v1583
    %v1662 = vadd.f32 %v1370, %v1652
    %v1663 = vadd.f32 %v1371, %v1654
    %v1664 = vxor.u32 %v1656, 2147483648
    %v1665 = vxor.u32 %v1657, 2147483648
    %v1666 = vmul.f32 %v1664, 1.442695
    %v1667 = vpow.pop %v1666
    %v1668 = vmul.f32 %v1665, 1.442695
    %v1669 = vpow.pop %v1668
    %v1670 = vadd.f32 %v1667, 1.0
    %v1671 = vadd.f32 %v1669, 1.0
    %v1672 = vrcp.pop %v1670
    %v1673 = vmul.f32 1.0, %v1672
    %v1674 = vrcp.pop %v1671
    %v1675 = vmul.f32 1.0, %v1674
    %v1676 = vxor.u32 %v1658, 2147483648
    %v1677 = vxor.u32 %v1659, 2147483648
    %v1678 = vmul.f32 %v1676, 1.442695
    %v1679 = vpow.pop %v1678
    %v1680 = vmul.f32 %v1677, 1.442695
    %v1681 = vpow.pop %v1680
    %v1682 = vadd.f32 %v1679, 1.0
    %v1683 = vadd.f32 %v1681, 1.0
    %v1684 = vrcp.pop %v1682
    %v1685 = vmul.f32 1.0, %v1684
    %v1686 = vrcp.pop %v1683
    %v1687 = vmul.f32 1.0, %v1686
    %v1688 = vtanh.pop %v1660
    %v1689 = vtanh.pop %v1661
    %v1690 = vxor.u32 %v1662, 2147483648
    %v1691 = vxor.u32 %v1663, 2147483648
    %v1692 = vmul.f32 %v1690, 1.442695
    %v1693 = vpow.pop %v1692
    %v1694 = vmul.f32 %v1691, 1.442695
    %v1695 = vpow.pop %v1694
    %v1696 = vadd.f32 %v1693, 1.0
    %v1697 = vadd.f32 %v1695, 1.0
    %v1698 = vrcp.pop %v1696
    %v1699 = vmul.f32 1.0, %v1698
    %v1700 = vrcp.pop %v1697
    %v1701 = vmul.f32 1.0, %v1700
    %v1702 = vmul.f32 %v1685, %v1357
    %v1703 = vmul.f32 %v1687, %v1358
    %v1704 = vmul.f32 %v1673, %v1688
    %v1705 = vmul.f32 %v1675, %v1689
    %v1706 = vadd.f32 %v1702, %v1704
    %v1707 = vadd.f32 %v1703, %v1705
    %v1708 = vtanh.pop %v1706
    %v1709 = vtanh.pop %v1707
    %v1710 = vmul.f32 %v1699, %v1708
    %v1711 = vmul.f32 %v1701, %v1709
    %s1712 = scalar_lea.vmem [#allocation2], 128
    %v1713 = vld [vmem:[%s1712] sm:$0xff]
    %v1714 = vld [vmem:[%s1712 + $0x8] sm:$0xff]
    %v1715 = vld [vmem:[%s1712 + $0x10] sm:$0xff]
    %v1716 = vld [vmem:[%s1712 + $0x18] sm:$0xff]
    %v1717 = vld [vmem:[%s1712 + $0x20] sm:$0xff]
    %v1718 = vld [vmem:[%s1712 + $0x28] sm:$0xff]
    %v1719 = vld [vmem:[%s1712 + $0x30] sm:$0xff]
    %v1720 = vld [vmem:[%s1712 + $0x38] sm:$0xff]
    %1721 = vmatprep.subr.mxu0 %v880
    %1722 = vmatpush1.msra.mxu0 %v879
    %1723 = vmatprep.subr.mxu0 %v872
    %1724 = vmatpush1.msra.mxu0 %v871
    %1725 = vmatprep.subr.mxu0 %v864
    %1726 = vmatpush1.msra.mxu0 %v863
    %1727 = vmatprep.subr.mxu0 %v856
    %1728 = vmatpush1.msra.mxu0 %v855
    %1729 = vmatprep.subr.mxu0 %v848
    %1730 = vmatpush1.msra.mxu0 %v847
    %1731 = vmatprep.subr.mxu0 %v840
    %1732 = vmatpush1.msra.mxu0 %v839
    %1733 = vmatprep.subr.mxu0 %v832
    %1734 = vmatpush1.msra.mxu0 %v831
    %1735 = vmatprep.subr.mxu0 %v824
    %1736 = vmatpush1.msra.mxu0 %v823
    %1737 = vmatprep.subr.mxu0 %v816
    %1738 = vmatpush1.msra.mxu0 %v815
    %1739 = vmatprep.subr.mxu0 %v808
    %1740 = vmatpush1.msra.mxu0 %v807
    %1741 = vmatprep.subr.mxu0 %v800
    %1742 = vmatpush1.msra.mxu0 %v799
    %1743 = vmatprep.subr.mxu0 %v792
    %1744 = vmatpush1.msra.mxu0 %v791
    %1745 = vmatprep.subr.mxu0 %v784
    %1746 = vmatpush1.msra.mxu0 %v783
    %1747 = vmatprep.subr.mxu0 %v776
    %1748 = vmatpush1.msra.mxu0 %v775
    %1749 = vmatprep.subr.mxu0 %v768
    %1750 = vmatpush1.msra.mxu0 %v767
    %1751 = vmatprep.subr.mxu0 %v760
    %1752 = vmatpush1.msra.mxu0 %v759
    %1753 = vmatprep.subr.mxu0 %v1008
    %1754 = vmatpush2.msra.mxu0 %v1007
    %1755 = vmatprep.subr.mxu0 %v1000
    %1756 = vmatpush2.msra.mxu0 %v999
    %1757 = vmatprep.subr.mxu0 %v992
    %1758 = vmatpush2.msra.mxu0 %v991
    %1759 = vmatprep.subr.mxu0 %v984
    %1760 = vmatpush2.msra.mxu0 %v983
    %1761 = vmatprep.subr.mxu0 %v976
    %1762 = vmatpush2.msra.mxu0 %v975
    %1763 = vmatprep.subr.mxu0 %v968
    %1764 = vmatpush2.msra.mxu0 %v967
    %1765 = vmatprep.subr.mxu0 %v960
    %1766 = vmatpush2.msra.mxu0 %v959
    %1767 = vmatprep.subr.mxu0 %v952
    %1768 = vmatpush2.msra.mxu0 %v951
    %1769 = vmatprep.subr.mxu0 %v944
    %1770 = vmatpush2.msra.mxu0 %v943
    %1771 = vmatprep.subr.mxu0 %v936
    %1772 = vmatpush2.msra.mxu0 %v935
    %1773 = vmatprep.subr.mxu0 %v928
    %1774 = vmatpush2.msra.mxu0 %v927
    %1775 = vmatprep.subr.mxu0 %v920
    %1776 = vmatpush2.msra.mxu0 %v919
    %1777 = vmatprep.subr.mxu0 %v912
    %1778 = vmatpush2.msra.mxu0 %v911
    %1779 = vmatprep.subr.mxu0 %v904
    %1780 = vmatpush2.msra.mxu0 %v903
    %1781 = vmatprep.subr.mxu0 %v896
    %1782 = vmatpush2.msra.mxu0 %v895
    %1783 = vmatprep.subr.mxu0 %v888
    %1784 = vmatpush2.msra.mxu0 %v887
    %1785 = vmatprep.mubr.f32.mxu0 %v1711
    %1786 = vmatmul.mubr.f32.gmra.mxu0 %v1710
    %v1787 = vpop.f32.mrf.mxu0
    %v1788 = vadd.f32 0.0, %v1787
    %v1789 = vpop.f32.mrf.mxu0
    %v1790 = vadd.f32 0.0, %v1789
    %1791 = vdwg.mxu0
    %1792 = vmatprep.subr.mxu0 %v882
    %1793 = vmatpush1.msra.mxu0 %v881
    %1794 = vmatprep.subr.mxu0 %v874
    %1795 = vmatpush1.msra.mxu0 %v873
    %1796 = vmatprep.subr.mxu0 %v866
    %1797 = vmatpush1.msra.mxu0 %v865
    %1798 = vmatprep.subr.mxu0 %v858
    %1799 = vmatpush1.msra.mxu0 %v857
    %1800 = vmatprep.subr.mxu0 %v850
    %1801 = vmatpush1.msra.mxu0 %v849
    %1802 = vmatprep.subr.mxu0 %v842
    %1803 = vmatpush1.msra.mxu0 %v841
    %1804 = vmatprep.subr.mxu0 %v834
    %1805 = vmatpush1.msra.mxu0 %v833
    %1806 = vmatprep.subr.mxu0 %v826
    %1807 = vmatpush1.msra.mxu0 %v825
    %1808 = vmatprep.subr.mxu0 %v818
    %1809 = vmatpush1.msra.mxu0 %v817
    %1810 = vmatprep.subr.mxu0 %v810
    %1811 = vmatpush1.msra.mxu0 %v809
    %1812 = vmatprep.subr.mxu0 %v802
    %1813 = vmatpush1.msra.mxu0 %v801
    %1814 = vmatprep.subr.mxu0 %v794
    %1815 = vmatpush1.msra.mxu0 %v793
    %1816 = vmatprep.subr.mxu0 %v786
    %1817 = vmatpush1.msra.mxu0 %v785
    %1818 = vmatprep.subr.mxu0 %v778
    %1819 = vmatpush1.msra.mxu0 %v777
    %1820 = vmatprep.subr.mxu0 %v770
    %1821 = vmatpush1.msra.mxu0 %v769
    %1822 = vmatprep.subr.mxu0 %v762
    %1823 = vmatpush1.msra.mxu0 %v761
    %1824 = vmatprep.subr.mxu0 %v1010
    %1825 = vmatpush2.msra.mxu0 %v1009
    %1826 = vmatprep.subr.mxu0 %v1002
    %1827 = vmatpush2.msra.mxu0 %v1001
    %1828 = vmatprep.subr.mxu0 %v994
    %1829 = vmatpush2.msra.mxu0 %v993
    %1830 = vmatprep.subr.mxu0 %v986
    %1831 = vmatpush2.msra.mxu0 %v985
    %1832 = vmatprep.subr.mxu0 %v978
    %1833 = vmatpush2.msra.mxu0 %v977
    %1834 = vmatprep.subr.mxu0 %v970
    %1835 = vmatpush2.msra.mxu0 %v969
    %1836 = vmatprep.subr.mxu0 %v962
    %1837 = vmatpush2.msra.mxu0 %v961
    %1838 = vmatprep.subr.mxu0 %v954
    %1839 = vmatpush2.msra.mxu0 %v953
    %1840 = vmatprep.subr.mxu0 %v946
    %1841 = vmatpush2.msra.mxu0 %v945
    %1842 = vmatprep.subr.mxu0 %v938
    %1843 = vmatpush2.msra.mxu0 %v937
    %1844 = vmatprep.subr.mxu0 %v930
    %1845 = vmatpush2.msra.mxu0 %v929
    %1846 = vmatprep.subr.mxu0 %v922
    %1847 = vmatpush2.msra.mxu0 %v921
    %1848 = vmatprep.subr.mxu0 %v914
    %1849 = vmatpush2.msra.mxu0 %v913
    %1850 = vmatprep.subr.mxu0 %v906
    %1851 = vmatpush2.msra.mxu0 %v905
    %1852 = vmatprep.subr.mxu0 %v898
    %1853 = vmatpush2.msra.mxu0 %v897
    %1854 = vmatprep.subr.mxu0 %v890
    %1855 = vmatpush2.msra.mxu0 %v889
    %1856 = vmatprep.mubr.f32.mxu0 %v1711
    %1857 = vmatmul.mubr.f32.gmra.mxu0 %v1710
    %v1858 = vpop.f32.mrf.mxu0
    %v1859 = vadd.f32 0.0, %v1858
    %v1860 = vpop.f32.mrf.mxu0
    %v1861 = vadd.f32 0.0, %v1860
    %1862 = vdwg.mxu0
    %1863 = vmatprep.subr.mxu0 %v884
    %1864 = vmatpush1.msra.mxu0 %v883
    %1865 = vmatprep.subr.mxu0 %v876
    %1866 = vmatpush1.msra.mxu0 %v875
    %1867 = vmatprep.subr.mxu0 %v868
    %1868 = vmatpush1.msra.mxu0 %v867
    %1869 = vmatprep.subr.mxu0 %v860
    %1870 = vmatpush1.msra.mxu0 %v859
    %1871 = vmatprep.subr.mxu0 %v852
    %1872 = vmatpush1.msra.mxu0 %v851
    %1873 = vmatprep.subr.mxu0 %v844
    %1874 = vmatpush1.msra.mxu0 %v843
    %1875 = vmatprep.subr.mxu0 %v836
    %1876 = vmatpush1.msra.mxu0 %v835
    %1877 = vmatprep.subr.mxu0 %v828
    %1878 = vmatpush1.msra.mxu0 %v827
    %1879 = vmatprep.subr.mxu0 %v820
    %1880 = vmatpush1.msra.mxu0 %v819
    %1881 = vmatprep.subr.mxu0 %v812
    %1882 = vmatpush1.msra.mxu0 %v811
    %1883 = vmatprep.subr.mxu0 %v804
    %1884 = vmatpush1.msra.mxu0 %v803
    %1885 = vmatprep.subr.mxu0 %v796
    %1886 = vmatpush1.msra.mxu0 %v795
    %1887 = vmatprep.subr.mxu0 %v788
    %1888 = vmatpush1.msra.mxu0 %v787
    %1889 = vmatprep.subr.mxu0 %v780
    %1890 = vmatpush1.msra.mxu0 %v779
    %1891 = vmatprep.subr.mxu0 %v772
    %1892 = vmatpush1.msra.mxu0 %v771
    %1893 = vmatprep.subr.mxu0 %v764
    %1894 = vmatpush1.msra.mxu0 %v763
    %1895 = vmatprep.subr.mxu0 %v1012
    %1896 = vmatpush2.msra.mxu0 %v1011
    %1897 = vmatprep.subr.mxu0 %v1004
    %1898 = vmatpush2.msra.mxu0 %v1003
    %1899 = vmatprep.subr.mxu0 %v996
    %1900 = vmatpush2.msra.mxu0 %v995
    %1901 = vmatprep.subr.mxu0 %v988
    %1902 = vmatpush2.msra.mxu0 %v987
    %1903 = vmatprep.subr.mxu0 %v980
    %1904 = vmatpush2.msra.mxu0 %v979
    %1905 = vmatprep.subr.mxu0 %v972
    %1906 = vmatpush2.msra.mxu0 %v971
    %1907 = vmatprep.subr.mxu0 %v964
    %1908 = vmatpush2.msra.mxu0 %v963
    %1909 = vmatprep.subr.mxu0 %v956
    %1910 = vmatpush2.msra.mxu0 %v955
    %1911 = vmatprep.subr.mxu0 %v948
    %1912 = vmatpush2.msra.mxu0 %v947
    %1913 = vmatprep.subr.mxu0 %v940
    %1914 = vmatpush2.msra.mxu0 %v939
    %1915 = vmatprep.subr.mxu0 %v932
    %1916 = vmatpush2.msra.mxu0 %v931
    %1917 = vmatprep.subr.mxu0 %v924
    %1918 = vmatpush2.msra.mxu0 %v923
    %1919 = vmatprep.subr.mxu0 %v916
    %1920 = vmatpush2.msra.mxu0 %v915
    %1921 = vmatprep.subr.mxu0 %v908
    %1922 = vmatpush2.msra.mxu0 %v907
    %1923 = vmatprep.subr.mxu0 %v900
    %1924 = vmatpush2.msra.mxu0 %v899
    %1925 = vmatprep.subr.mxu0 %v892
    %1926 = vmatpush2.msra.mxu0 %v891
    %1927 = vmatprep.mubr.f32.mxu0 %v1711
    %1928 = vmatmul.mubr.f32.gmra.mxu0 %v1710
    %v1929 = vpop.f32.mrf.mxu0
    %v1930 = vadd.f32 0.0, %v1929
    %v1931 = vpop.f32.mrf.mxu0
    %v1932 = vadd.f32 0.0, %v1931
    %1933 = vdwg.mxu0
    %1934 = vmatprep.subr.mxu0 %v886
    %1935 = vmatpush1.msra.mxu0 %v885
    %1936 = vmatprep.subr.mxu0 %v878
    %1937 = vmatpush1.msra.mxu0 %v877
    %1938 = vmatprep.subr.mxu0 %v870
    %1939 = vmatpush1.msra.mxu0 %v869
    %1940 = vmatprep.subr.mxu0 %v862
    %1941 = vmatpush1.msra.mxu0 %v861
    %1942 = vmatprep.subr.mxu0 %v854
    %1943 = vmatpush1.msra.mxu0 %v853
    %1944 = vmatprep.subr.mxu0 %v846
    %1945 = vmatpush1.msra.mxu0 %v845
    %1946 = vmatprep.subr.mxu0 %v838
    %1947 = vmatpush1.msra.mxu0 %v837
    %1948 = vmatprep.subr.mxu0 %v830
    %1949 = vmatpush1.msra.mxu0 %v829
    %1950 = vmatprep.subr.mxu0 %v822
    %1951 = vmatpush1.msra.mxu0 %v821
    %1952 = vmatprep.subr.mxu0 %v814
    %1953 = vmatpush1.msra.mxu0 %v813
    %1954 = vmatprep.subr.mxu0 %v806
    %1955 = vmatpush1.msra.mxu0 %v805
    %1956 = vmatprep.subr.mxu0 %v798
    %1957 = vmatpush1.msra.mxu0 %v797
    %1958 = vmatprep.subr.mxu0 %v790
    %1959 = vmatpush1.msra.mxu0 %v789
    %1960 = vmatprep.subr.mxu0 %v782
    %1961 = vmatpush1.msra.mxu0 %v781
    %1962 = vmatprep.subr.mxu0 %v774
    %1963 = vmatpush1.msra.mxu0 %v773
    %1964 = vmatprep.subr.mxu0 %v766
    %1965 = vmatpush1.msra.mxu0 %v765
    %1966 = vmatprep.subr.mxu0 %v1014
    %1967 = vmatpush2.msra.mxu0 %v1013
    %1968 = vmatprep.subr.mxu0 %v1006
    %1969 = vmatpush2.msra.mxu0 %v1005
    %1970 = vmatprep.subr.mxu0 %v998
    %1971 = vmatpush2.msra.mxu0 %v997
    %1972 = vmatprep.subr.mxu0 %v990
    %1973 = vmatpush2.msra.mxu0 %v989
    %1974 = vmatprep.subr.mxu0 %v982
    %1975 = vmatpush2.msra.mxu0 %v981
    %1976 = vmatprep.subr.mxu0 %v974
    %1977 = vmatpush2.msra.mxu0 %v973
    %1978 = vmatprep.subr.mxu0 %v966
    %1979 = vmatpush2.msra.mxu0 %v965
    %1980 = vmatprep.subr.mxu0 %v958
    %1981 = vmatpush2.msra.mxu0 %v957
    %1982 = vmatprep.subr.mxu0 %v950
    %1983 = vmatpush2.msra.mxu0 %v949
    %1984 = vmatprep.subr.mxu0 %v942
    %1985 = vmatpush2.msra.mxu0 %v941
    %1986 = vmatprep.subr.mxu0 %v934
    %1987 = vmatpush2.msra.mxu0 %v933
    %1988 = vmatprep.subr.mxu0 %v926
    %1989 = vmatpush2.msra.mxu0 %v925
    %1990 = vmatprep.subr.mxu0 %v918
    %1991 = vmatpush2.msra.mxu0 %v917
    %1992 = vmatprep.subr.mxu0 %v910
    %1993 = vmatpush2.msra.mxu0 %v909
    %1994 = vmatprep.subr.mxu0 %v902
    %1995 = vmatpush2.msra.mxu0 %v901
    %1996 = vmatprep.subr.mxu0 %v894
    %1997 = vmatpush2.msra.mxu0 %v893
    %1998 = vmatprep.mubr.f32.mxu0 %v1711
    %1999 = vmatmul.mubr.f32.gmra.mxu0 %v1710
    %v2000 = vpop.f32.mrf.mxu0
    %v2001 = vadd.f32 0.0, %v2000
    %v2002 = vpop.f32.mrf.mxu0
    %v2003 = vadd.f32 0.0, %v2002
    %2004 = vdwg.mxu0
    %v2005 = vadd.f32 %v1713, %v1788
    %v2006 = vadd.f32 %v1714, %v1790
    %v2007 = vadd.f32 %v1715, %v1859
    %v2008 = vadd.f32 %v1716, %v1861
    %v2009 = vadd.f32 %v1717, %v1930
    %v2010 = vadd.f32 %v1718, %v1932
    %v2011 = vadd.f32 %v1719, %v2001
    %v2012 = vadd.f32 %v1720, %v2003
    %v2013 = vxor.u32 %v2005, 2147483648
    %v2014 = vxor.u32 %v2006, 2147483648
    %v2015 = vmul.f32 %v2013, 1.442695
    %v2016 = vpow.pop %v2015
    %v2017 = vmul.f32 %v2014, 1.442695
    %v2018 = vpow.pop %v2017
    %v2019 = vadd.f32 %v2016, 1.0
    %v2020 = vadd.f32 %v2018, 1.0
    %v2021 = vrcp.pop %v2019
    %v2022 = vmul.f32 1.0, %v2021
    %v2023 = vrcp.pop %v2020
    %v2024 = vmul.f32 1.0, %v2023
    %v2025 = vxor.u32 %v2007, 2147483648
    %v2026 = vxor.u32 %v2008, 2147483648
    %v2027 = vmul.f32 %v2025, 1.442695
    %v2028 = vpow.pop %v2027
    %v2029 = vmul.f32 %v2026, 1.442695
    %v2030 = vpow.pop %v2029
    %v2031 = vadd.f32 %v2028, 1.0
    %v2032 = vadd.f32 %v2030, 1.0
    %v2033 = vrcp.pop %v2031
    %v2034 = vmul.f32 1.0, %v2033
    %v2035 = vrcp.pop %v2032
    %v2036 = vmul.f32 1.0, %v2035
    %v2037 = vtanh.pop %v2009
    %v2038 = vtanh.pop %v2010
    %v2039 = vxor.u32 %v2011, 2147483648
    %v2040 = vxor.u32 %v2012, 2147483648
    %v2041 = vmul.f32 %v2039, 1.442695
    %v2042 = vpow.pop %v2041
    %v2043 = vmul.f32 %v2040, 1.442695
    %v2044 = vpow.pop %v2043
    %v2045 = vadd.f32 %v2042, 1.0
    %v2046 = vadd.f32 %v2044, 1.0
    %v2047 = vrcp.pop %v2045
    %v2048 = vmul.f32 1.0, %v2047
    %v2049 = vrcp.pop %v2046
    %v2050 = vmul.f32 1.0, %v2049
    %v2051 = vmul.f32 %v2034, %v1706
    %v2052 = vmul.f32 %v2036, %v1707
    %v2053 = vmul.f32 %v2022, %v2037
    %v2054 = vmul.f32 %v2024, %v2038
    %v2055 = vadd.f32 %v2051, %v2053
    %v2056 = vadd.f32 %v2052, %v2054
    %v2057 = vtanh.pop %v2055
    %v2058 = vtanh.pop %v2056
    %v2059 = vmul.f32 %v2048, %v2057
    %v2060 = vmul.f32 %v2050, %v2058
    %s2061 = scalar_lea.vmem [#allocation2], 192
    %v2062 = vld [vmem:[%s2061] sm:$0xff]
    %v2063 = vld [vmem:[%s2061 + $0x8] sm:$0xff]
    %v2064 = vld [vmem:[%s2061 + $0x10] sm:$0xff]
    %v2065 = vld [vmem:[%s2061 + $0x18] sm:$0xff]
    %v2066 = vld [vmem:[%s2061 + $0x20] sm:$0xff]
    %v2067 = vld [vmem:[%s2061 + $0x28] sm:$0xff]
    %v2068 = vld [vmem:[%s2061 + $0x30] sm:$0xff]
    %v2069 = vld [vmem:[%s2061 + $0x38] sm:$0xff]
    %2070 = vmatprep.subr.mxu0 %v880
    %2071 = vmatpush1.msra.mxu0 %v879
    %2072 = vmatprep.subr.mxu0 %v872
    %2073 = vmatpush1.msra.mxu0 %v871
    %2074 = vmatprep.subr.mxu0 %v864
    %2075 = vmatpush1.msra.mxu0 %v863
    %2076 = vmatprep.subr.mxu0 %v856
    %2077 = vmatpush1.msra.mxu0 %v855
    %2078 = vmatprep.subr.mxu0 %v848
    %2079 = vmatpush1.msra.mxu0 %v847
    %2080 = vmatprep.subr.mxu0 %v840
    %2081 = vmatpush1.msra.mxu0 %v839
    %2082 = vmatprep.subr.mxu0 %v832
    %2083 = vmatpush1.msra.mxu0 %v831
    %2084 = vmatprep.subr.mxu0 %v824
    %2085 = vmatpush1.msra.mxu0 %v823
    %2086 = vmatprep.subr.mxu0 %v816
    %2087 = vmatpush1.msra.mxu0 %v815
    %2088 = vmatprep.subr.mxu0 %v808
    %2089 = vmatpush1.msra.mxu0 %v807
    %2090 = vmatprep.subr.mxu0 %v800
    %2091 = vmatpush1.msra.mxu0 %v799
    %2092 = vmatprep.subr.mxu0 %v792
    %2093 = vmatpush1.msra.mxu0 %v791
    %2094 = vmatprep.subr.mxu0 %v784
    %2095 = vmatpush1.msra.mxu0 %v783
    %2096 = vmatprep.subr.mxu0 %v776
    %2097 = vmatpush1.msra.mxu0 %v775
    %2098 = vmatprep.subr.mxu0 %v768
    %2099 = vmatpush1.msra.mxu0 %v767
    %2100 = vmatprep.subr.mxu0 %v760
    %2101 = vmatpush1.msra.mxu0 %v759
    %2102 = vmatprep.subr.mxu0 %v1008
    %2103 = vmatpush2.msra.mxu0 %v1007
    %2104 = vmatprep.subr.mxu0 %v1000
    %2105 = vmatpush2.msra.mxu0 %v999
    %2106 = vmatprep.subr.mxu0 %v992
    %2107 = vmatpush2.msra.mxu0 %v991
    %2108 = vmatprep.subr.mxu0 %v984
    %2109 = vmatpush2.msra.mxu0 %v983
    %2110 = vmatprep.subr.mxu0 %v976
    %2111 = vmatpush2.msra.mxu0 %v975
    %2112 = vmatprep.subr.mxu0 %v968
    %2113 = vmatpush2.msra.mxu0 %v967
    %2114 = vmatprep.subr.mxu0 %v960
    %2115 = vmatpush2.msra.mxu0 %v959
    %2116 = vmatprep.subr.mxu0 %v952
    %2117 = vmatpush2.msra.mxu0 %v951
    %2118 = vmatprep.subr.mxu0 %v944
    %2119 = vmatpush2.msra.mxu0 %v943
    %2120 = vmatprep.subr.mxu0 %v936
    %2121 = vmatpush2.msra.mxu0 %v935
    %2122 = vmatprep.subr.mxu0 %v928
    %2123 = vmatpush2.msra.mxu0 %v927
    %2124 = vmatprep.subr.mxu0 %v920
    %2125 = vmatpush2.msra.mxu0 %v919
    %2126 = vmatprep.subr.mxu0 %v912
    %2127 = vmatpush2.msra.mxu0 %v911
    %2128 = vmatprep.subr.mxu0 %v904
    %2129 = vmatpush2.msra.mxu0 %v903
    %2130 = vmatprep.subr.mxu0 %v896
    %2131 = vmatpush2.msra.mxu0 %v895
    %2132 = vmatprep.subr.mxu0 %v888
    %2133 = vmatpush2.msra.mxu0 %v887
    %2134 = vmatprep.mubr.f32.mxu0 %v2060
    %2135 = vmatmul.mubr.f32.gmra.mxu0 %v2059
    %v2136 = vpop.f32.mrf.mxu0
    %v2137 = vadd.f32 0.0, %v2136
    %v2138 = vpop.f32.mrf.mxu0
    %v2139 = vadd.f32 0.0, %v2138
    %2140 = vdwg.mxu0
    %2141 = vmatprep.subr.mxu0 %v882
    %2142 = vmatpush1.msra.mxu0 %v881
    %2143 = vmatprep.subr.mxu0 %v874
    %2144 = vmatpush1.msra.mxu0 %v873
    %2145 = vmatprep.subr.mxu0 %v866
    %2146 = vmatpush1.msra.mxu0 %v865
    %2147 = vmatprep.subr.mxu0 %v858
    %2148 = vmatpush1.msra.mxu0 %v857
    %2149 = vmatprep.subr.mxu0 %v850
    %2150 = vmatpush1.msra.mxu0 %v849
    %2151 = vmatprep.subr.mxu0 %v842
    %2152 = vmatpush1.msra.mxu0 %v841
    %2153 = vmatprep.subr.mxu0 %v834
    %2154 = vmatpush1.msra.mxu0 %v833
    %2155 = vmatprep.subr.mxu0 %v826
    %2156 = vmatpush1.msra.mxu0 %v825
    %2157 = vmatprep.subr.mxu0 %v818
    %2158 = vmatpush1.msra.mxu0 %v817
    %2159 = vmatprep.subr.mxu0 %v810
    %2160 = vmatpush1.msra.mxu0 %v809
    %2161 = vmatprep.subr.mxu0 %v802
    %2162 = vmatpush1.msra.mxu0 %v801
    %2163 = vmatprep.subr.mxu0 %v794
    %2164 = vmatpush1.msra.mxu0 %v793
    %2165 = vmatprep.subr.mxu0 %v786
    %2166 = vmatpush1.msra.mxu0 %v785
    %2167 = vmatprep.subr.mxu0 %v778
    %2168 = vmatpush1.msra.mxu0 %v777
    %2169 = vmatprep.subr.mxu0 %v770
    %2170 = vmatpush1.msra.mxu0 %v769
    %2171 = vmatprep.subr.mxu0 %v762
    %2172 = vmatpush1.msra.mxu0 %v761
    %2173 = vmatprep.subr.mxu0 %v1010
    %2174 = vmatpush2.msra.mxu0 %v1009
    %2175 = vmatprep.subr.mxu0 %v1002
    %2176 = vmatpush2.msra.mxu0 %v1001
    %2177 = vmatprep.subr.mxu0 %v994
    %2178 = vmatpush2.msra.mxu0 %v993
    %2179 = vmatprep.subr.mxu0 %v986
    %2180 = vmatpush2.msra.mxu0 %v985
    %2181 = vmatprep.subr.mxu0 %v978
    %2182 = vmatpush2.msra.mxu0 %v977
    %2183 = vmatprep.subr.mxu0 %v970
    %2184 = vmatpush2.msra.mxu0 %v969
    %2185 = vmatprep.subr.mxu0 %v962
    %2186 = vmatpush2.msra.mxu0 %v961
    %2187 = vmatprep.subr.mxu0 %v954
    %2188 = vmatpush2.msra.mxu0 %v953
    %2189 = vmatprep.subr.mxu0 %v946
    %2190 = vmatpush2.msra.mxu0 %v945
    %2191 = vmatprep.subr.mxu0 %v938
    %2192 = vmatpush2.msra.mxu0 %v937
    %2193 = vmatprep.subr.mxu0 %v930
    %2194 = vmatpush2.msra.mxu0 %v929
    %2195 = vmatprep.subr.mxu0 %v922
    %2196 = vmatpush2.msra.mxu0 %v921
    %2197 = vmatprep.subr.mxu0 %v914
    %2198 = vmatpush2.msra.mxu0 %v913
    %2199 = vmatprep.subr.mxu0 %v906
    %2200 = vmatpush2.msra.mxu0 %v905
    %2201 = vmatprep.subr.mxu0 %v898
    %2202 = vmatpush2.msra.mxu0 %v897
    %2203 = vmatprep.subr.mxu0 %v890
    %2204 = vmatpush2.msra.mxu0 %v889
    %2205 = vmatprep.mubr.f32.mxu0 %v2060
    %2206 = vmatmul.mubr.f32.gmra.mxu0 %v2059
    %v2207 = vpop.f32.mrf.mxu0
    %v2208 = vadd.f32 0.0, %v2207
    %v2209 = vpop.f32.mrf.mxu0
    %v2210 = vadd.f32 0.0, %v2209
    %2211 = vdwg.mxu0
    %2212 = vmatprep.subr.mxu0 %v884
    %2213 = vmatpush1.msra.mxu0 %v883
    %2214 = vmatprep.subr.mxu0 %v876
    %2215 = vmatpush1.msra.mxu0 %v875
    %2216 = vmatprep.subr.mxu0 %v868
    %2217 = vmatpush1.msra.mxu0 %v867
    %2218 = vmatprep.subr.mxu0 %v860
    %2219 = vmatpush1.msra.mxu0 %v859
    %2220 = vmatprep.subr.mxu0 %v852
    %2221 = vmatpush1.msra.mxu0 %v851
    %2222 = vmatprep.subr.mxu0 %v844
    %2223 = vmatpush1.msra.mxu0 %v843
    %2224 = vmatprep.subr.mxu0 %v836
    %2225 = vmatpush1.msra.mxu0 %v835
    %2226 = vmatprep.subr.mxu0 %v828
    %2227 = vmatpush1.msra.mxu0 %v827
    %2228 = vmatprep.subr.mxu0 %v820
    %2229 = vmatpush1.msra.mxu0 %v819
    %2230 = vmatprep.subr.mxu0 %v812
    %2231 = vmatpush1.msra.mxu0 %v811
    %2232 = vmatprep.subr.mxu0 %v804
    %2233 = vmatpush1.msra.mxu0 %v803
    %2234 = vmatprep.subr.mxu0 %v796
    %2235 = vmatpush1.msra.mxu0 %v795
    %2236 = vmatprep.subr.mxu0 %v788
    %2237 = vmatpush1.msra.mxu0 %v787
    %2238 = vmatprep.subr.mxu0 %v780
    %2239 = vmatpush1.msra.mxu0 %v779
    %2240 = vmatprep.subr.mxu0 %v772
    %2241 = vmatpush1.msra.mxu0 %v771
    %2242 = vmatprep.subr.mxu0 %v764
    %2243 = vmatpush1.msra.mxu0 %v763
    %2244 = vmatprep.subr.mxu0 %v1012
    %2245 = vmatpush2.msra.mxu0 %v1011
    %2246 = vmatprep.subr.mxu0 %v1004
    %2247 = vmatpush2.msra.mxu0 %v1003
    %2248 = vmatprep.subr.mxu0 %v996
    %2249 = vmatpush2.msra.mxu0 %v995
    %2250 = vmatprep.subr.mxu0 %v988
    %2251 = vmatpush2.msra.mxu0 %v987
    %2252 = vmatprep.subr.mxu0 %v980
    %2253 = vmatpush2.msra.mxu0 %v979
    %2254 = vmatprep.subr.mxu0 %v972
    %2255 = vmatpush2.msra.mxu0 %v971
    %2256 = vmatprep.subr.mxu0 %v964
    %2257 = vmatpush2.msra.mxu0 %v963
    %2258 = vmatprep.subr.mxu0 %v956
    %2259 = vmatpush2.msra.mxu0 %v955
    %2260 = vmatprep.subr.mxu0 %v948
    %2261 = vmatpush2.msra.mxu0 %v947
    %2262 = vmatprep.subr.mxu0 %v940
    %2263 = vmatpush2.msra.mxu0 %v939
    %2264 = vmatprep.subr.mxu0 %v932
    %2265 = vmatpush2.msra.mxu0 %v931
    %2266 = vmatprep.subr.mxu0 %v924
    %2267 = vmatpush2.msra.mxu0 %v923
    %2268 = vmatprep.subr.mxu0 %v916
    %2269 = vmatpush2.msra.mxu0 %v915
    %2270 = vmatprep.subr.mxu0 %v908
    %2271 = vmatpush2.msra.mxu0 %v907
    %2272 = vmatprep.subr.mxu0 %v900
    %2273 = vmatpush2.msra.mxu0 %v899
    %2274 = vmatprep.subr.mxu0 %v892
    %2275 = vmatpush2.msra.mxu0 %v891
    %2276 = vmatprep.mubr.f32.mxu0 %v2060
    %2277 = vmatmul.mubr.f32.gmra.mxu0 %v2059
    %v2278 = vpop.f32.mrf.mxu0
    %v2279 = vadd.f32 0.0, %v2278
    %v2280 = vpop.f32.mrf.mxu0
    %v2281 = vadd.f32 0.0, %v2280
    %2282 = vdwg.mxu0
    %2283 = vmatprep.subr.mxu0 %v886
    %2284 = vmatpush1.msra.mxu0 %v885
    %2285 = vmatprep.subr.mxu0 %v878
    %2286 = vmatpush1.msra.mxu0 %v877
    %2287 = vmatprep.subr.mxu0 %v870
    %2288 = vmatpush1.msra.mxu0 %v869
    %2289 = vmatprep.subr.mxu0 %v862
    %2290 = vmatpush1.msra.mxu0 %v861
    %2291 = vmatprep.subr.mxu0 %v854
    %2292 = vmatpush1.msra.mxu0 %v853
    %2293 = vmatprep.subr.mxu0 %v846
    %2294 = vmatpush1.msra.mxu0 %v845
    %2295 = vmatprep.subr.mxu0 %v838
    %2296 = vmatpush1.msra.mxu0 %v837
    %2297 = vmatprep.subr.mxu0 %v830
    %2298 = vmatpush1.msra.mxu0 %v829
    %2299 = vmatprep.subr.mxu0 %v822
    %2300 = vmatpush1.msra.mxu0 %v821
    %2301 = vmatprep.subr.mxu0 %v814
    %2302 = vmatpush1.msra.mxu0 %v813
    %2303 = vmatprep.subr.mxu0 %v806
    %2304 = vmatpush1.msra.mxu0 %v805
    %2305 = vmatprep.subr.mxu0 %v798
    %2306 = vmatpush1.msra.mxu0 %v797
    %2307 = vmatprep.subr.mxu0 %v790
    %2308 = vmatpush1.msra.mxu0 %v789
    %2309 = vmatprep.subr.mxu0 %v782
    %2310 = vmatpush1.msra.mxu0 %v781
    %2311 = vmatprep.subr.mxu0 %v774
    %2312 = vmatpush1.msra.mxu0 %v773
    %2313 = vmatprep.subr.mxu0 %v766
    %2314 = vmatpush1.msra.mxu0 %v765
    %2315 = vmatprep.subr.mxu0 %v1014
    %2316 = vmatpush2.msra.mxu0 %v1013
    %2317 = vmatprep.subr.mxu0 %v1006
    %2318 = vmatpush2.msra.mxu0 %v1005
    %2319 = vmatprep.subr.mxu0 %v998
    %2320 = vmatpush2.msra.mxu0 %v997
    %2321 = vmatprep.subr.mxu0 %v990
    %2322 = vmatpush2.msra.mxu0 %v989
    %2323 = vmatprep.subr.mxu0 %v982
    %2324 = vmatpush2.msra.mxu0 %v981
    %2325 = vmatprep.subr.mxu0 %v974
    %2326 = vmatpush2.msra.mxu0 %v973
    %2327 = vmatprep.subr.mxu0 %v966
    %2328 = vmatpush2.msra.mxu0 %v965
    %2329 = vmatprep.subr.mxu0 %v958
    %2330 = vmatpush2.msra.mxu0 %v957
    %2331 = vmatprep.subr.mxu0 %v950
    %2332 = vmatpush2.msra.mxu0 %v949
    %2333 = vmatprep.subr.mxu0 %v942
    %2334 = vmatpush2.msra.mxu0 %v941
    %2335 = vmatprep.subr.mxu0 %v934
    %2336 = vmatpush2.msra.mxu0 %v933
    %2337 = vmatprep.subr.mxu0 %v926
    %2338 = vmatpush2.msra.mxu0 %v925
    %2339 = vmatprep.subr.mxu0 %v918
    %2340 = vmatpush2.msra.mxu0 %v917
    %2341 = vmatprep.subr.mxu0 %v910
    %2342 = vmatpush2.msra.mxu0 %v909
    %2343 = vmatprep.subr.mxu0 %v902
    %2344 = vmatpush2.msra.mxu0 %v901
    %2345 = vmatprep.subr.mxu0 %v894
    %2346 = vmatpush2.msra.mxu0 %v893
    %2347 = vmatprep.mubr.f32.mxu0 %v2060
    %2348 = vmatmul.mubr.f32.gmra.mxu0 %v2059
    %v2349 = vpop.f32.mrf.mxu0
    %v2350 = vadd.f32 0.0, %v2349
    %v2351 = vpop.f32.mrf.mxu0
    %v2352 = vadd.f32 0.0, %v2351
    %2353 = vdwg.mxu0
    %v2354 = vadd.f32 %v2062, %v2137
    %v2355 = vadd.f32 %v2063, %v2139
    %v2356 = vadd.f32 %v2064, %v2208
    %v2357 = vadd.f32 %v2065, %v2210
    %v2358 = vadd.f32 %v2066, %v2279
    %v2359 = vadd.f32 %v2067, %v2281
    %v2360 = vadd.f32 %v2068, %v2350
    %v2361 = vadd.f32 %v2069, %v2352
    %v2362 = vxor.u32 %v2354, 2147483648
    %v2363 = vxor.u32 %v2355, 2147483648
    %v2364 = vmul.f32 %v2362, 1.442695
    %v2365 = vpow.pop %v2364
    %v2366 = vmul.f32 %v2363, 1.442695
    %v2367 = vpow.pop %v2366
    %v2368 = vadd.f32 %v2365, 1.0
    %v2369 = vadd.f32 %v2367, 1.0
    %v2370 = vrcp.pop %v2368
    %v2371 = vmul.f32 1.0, %v2370
    %v2372 = vrcp.pop %v2369
    %v2373 = vmul.f32 1.0, %v2372
    %v2374 = vxor.u32 %v2356, 2147483648
    %v2375 = vxor.u32 %v2357, 2147483648
    %v2376 = vmul.f32 %v2374, 1.442695
    %v2377 = vpow.pop %v2376
    %v2378 = vmul.f32 %v2375, 1.442695
    %v2379 = vpow.pop %v2378
    %v2380 = vadd.f32 %v2377, 1.0
    %v2381 = vadd.f32 %v2379, 1.0
    %v2382 = vrcp.pop %v2380
    %v2383 = vmul.f32 1.0, %v2382
    %v2384 = vrcp.pop %v2381
    %v2385 = vmul.f32 1.0, %v2384
    %v2386 = vtanh.pop %v2358
    %v2387 = vtanh.pop %v2359
    %v2388 = vxor.u32 %v2360, 2147483648
    %v2389 = vxor.u32 %v2361, 2147483648
    %v2390 = vmul.f32 %v2388, 1.442695
    %v2391 = vpow.pop %v2390
    %v2392 = vmul.f32 %v2389, 1.442695
    %v2393 = vpow.pop %v2392
    %v2394 = vadd.f32 %v2391, 1.0
    %v2395 = vadd.f32 %v2393, 1.0
    %v2396 = vrcp.pop %v2394
    %v2397 = vmul.f32 1.0, %v2396
    %v2398 = vrcp.pop %v2395
    %v2399 = vmul.f32 1.0, %v2398
    %v2400 = vmul.f32 %v2383, %v2055
    %v2401 = vmul.f32 %v2385, %v2056
    %v2402 = vmul.f32 %v2371, %v2386
    %v2403 = vmul.f32 %v2373, %v2387
    %v2404 = vadd.f32 %v2400, %v2402
    %v2405 = vadd.f32 %v2401, %v2403
    %v2406 = vtanh.pop %v2404
    %v2407 = vtanh.pop %v2405
    %v2408 = vmul.f32 %v2397, %v2406
    %v2409 = vmul.f32 %v2399, %v2407
    %s2410 = scalar_lea.vmem [#allocation2], 256
    %v2411 = vld [vmem:[%s2410] sm:$0xff]
    %v2412 = vld [vmem:[%s2410 + $0x8] sm:$0xff]
    %v2413 = vld [vmem:[%s2410 + $0x10] sm:$0xff]
    %v2414 = vld [vmem:[%s2410 + $0x18] sm:$0xff]
    %v2415 = vld [vmem:[%s2410 + $0x20] sm:$0xff]
    %v2416 = vld [vmem:[%s2410 + $0x28] sm:$0xff]
    %v2417 = vld [vmem:[%s2410 + $0x30] sm:$0xff]
    %v2418 = vld [vmem:[%s2410 + $0x38] sm:$0xff]
    %2419 = vmatprep.subr.mxu0 %v880
    %2420 = vmatpush1.msra.mxu0 %v879
    %2421 = vmatprep.subr.mxu0 %v872
    %2422 = vmatpush1.msra.mxu0 %v871
    %2423 = vmatprep.subr.mxu0 %v864
    %2424 = vmatpush1.msra.mxu0 %v863
    %2425 = vmatprep.subr.mxu0 %v856
    %2426 = vmatpush1.msra.mxu0 %v855
    %2427 = vmatprep.subr.mxu0 %v848
    %2428 = vmatpush1.msra.mxu0 %v847
    %2429 = vmatprep.subr.mxu0 %v840
    %2430 = vmatpush1.msra.mxu0 %v839
    %2431 = vmatprep.subr.mxu0 %v832
    %2432 = vmatpush1.msra.mxu0 %v831
    %2433 = vmatprep.subr.mxu0 %v824
    %2434 = vmatpush1.msra.mxu0 %v823
    %2435 = vmatprep.subr.mxu0 %v816
    %2436 = vmatpush1.msra.mxu0 %v815
    %2437 = vmatprep.subr.mxu0 %v808
    %2438 = vmatpush1.msra.mxu0 %v807
    %2439 = vmatprep.subr.mxu0 %v800
    %2440 = vmatpush1.msra.mxu0 %v799
    %2441 = vmatprep.subr.mxu0 %v792
    %2442 = vmatpush1.msra.mxu0 %v791
    %2443 = vmatprep.subr.mxu0 %v784
    %2444 = vmatpush1.msra.mxu0 %v783
    %2445 = vmatprep.subr.mxu0 %v776
    %2446 = vmatpush1.msra.mxu0 %v775
    %2447 = vmatprep.subr.mxu0 %v768
    %2448 = vmatpush1.msra.mxu0 %v767
    %2449 = vmatprep.subr.mxu0 %v760
    %2450 = vmatpush1.msra.mxu0 %v759
    %2451 = vmatprep.subr.mxu0 %v1008
    %2452 = vmatpush2.msra.mxu0 %v1007
    %2453 = vmatprep.subr.mxu0 %v1000
    %2454 = vmatpush2.msra.mxu0 %v999
    %2455 = vmatprep.subr.mxu0 %v992
    %2456 = vmatpush2.msra.mxu0 %v991
    %2457 = vmatprep.subr.mxu0 %v984
    %2458 = vmatpush2.msra.mxu0 %v983
    %2459 = vmatprep.subr.mxu0 %v976
    %2460 = vmatpush2.msra.mxu0 %v975
    %2461 = vmatprep.subr.mxu0 %v968
    %2462 = vmatpush2.msra.mxu0 %v967
    %2463 = vmatprep.subr.mxu0 %v960
    %2464 = vmatpush2.msra.mxu0 %v959
    %2465 = vmatprep.subr.mxu0 %v952
    %2466 = vmatpush2.msra.mxu0 %v951
    %2467 = vmatprep.subr.mxu0 %v944
    %2468 = vmatpush2.msra.mxu0 %v943
    %2469 = vmatprep.subr.mxu0 %v936
    %2470 = vmatpush2.msra.mxu0 %v935
    %2471 = vmatprep.subr.mxu0 %v928
    %2472 = vmatpush2.msra.mxu0 %v927
    %2473 = vmatprep.subr.mxu0 %v920
    %2474 = vmatpush2.msra.mxu0 %v919
    %2475 = vmatprep.subr.mxu0 %v912
    %2476 = vmatpush2.msra.mxu0 %v911
    %2477 = vmatprep.subr.mxu0 %v904
    %2478 = vmatpush2.msra.mxu0 %v903
    %2479 = vmatprep.subr.mxu0 %v896
    %2480 = vmatpush2.msra.mxu0 %v895
    %2481 = vmatprep.subr.mxu0 %v888
    %2482 = vmatpush2.msra.mxu0 %v887
    %2483 = vmatprep.mubr.f32.mxu0 %v2409
    %2484 = vmatmul.mubr.f32.gmra.mxu0 %v2408
    %v2485 = vpop.f32.mrf.mxu0
    %v2486 = vadd.f32 0.0, %v2485
    %v2487 = vpop.f32.mrf.mxu0
    %v2488 = vadd.f32 0.0, %v2487
    %2489 = vdwg.mxu0
    %2490 = vmatprep.subr.mxu0 %v882
    %2491 = vmatpush1.msra.mxu0 %v881
    %2492 = vmatprep.subr.mxu0 %v874
    %2493 = vmatpush1.msra.mxu0 %v873
    %2494 = vmatprep.subr.mxu0 %v866
    %2495 = vmatpush1.msra.mxu0 %v865
    %2496 = vmatprep.subr.mxu0 %v858
    %2497 = vmatpush1.msra.mxu0 %v857
    %2498 = vmatprep.subr.mxu0 %v850
    %2499 = vmatpush1.msra.mxu0 %v849
    %2500 = vmatprep.subr.mxu0 %v842
    %2501 = vmatpush1.msra.mxu0 %v841
    %2502 = vmatprep.subr.mxu0 %v834
    %2503 = vmatpush1.msra.mxu0 %v833
    %2504 = vmatprep.subr.mxu0 %v826
    %2505 = vmatpush1.msra.mxu0 %v825
    %2506 = vmatprep.subr.mxu0 %v818
    %2507 = vmatpush1.msra.mxu0 %v817
    %2508 = vmatprep.subr.mxu0 %v810
    %2509 = vmatpush1.msra.mxu0 %v809
    %2510 = vmatprep.subr.mxu0 %v802
    %2511 = vmatpush1.msra.mxu0 %v801
    %2512 = vmatprep.subr.mxu0 %v794
    %2513 = vmatpush1.msra.mxu0 %v793
    %2514 = vmatprep.subr.mxu0 %v786
    %2515 = vmatpush1.msra.mxu0 %v785
    %2516 = vmatprep.subr.mxu0 %v778
    %2517 = vmatpush1.msra.mxu0 %v777
    %2518 = vmatprep.subr.mxu0 %v770
    %2519 = vmatpush1.msra.mxu0 %v769
    %2520 = vmatprep.subr.mxu0 %v762
    %2521 = vmatpush1.msra.mxu0 %v761
    %2522 = vmatprep.subr.mxu0 %v1010
    %2523 = vmatpush2.msra.mxu0 %v1009
    %2524 = vmatprep.subr.mxu0 %v1002
    %2525 = vmatpush2.msra.mxu0 %v1001
    %2526 = vmatprep.subr.mxu0 %v994
    %2527 = vmatpush2.msra.mxu0 %v993
    %2528 = vmatprep.subr.mxu0 %v986
    %2529 = vmatpush2.msra.mxu0 %v985
    %2530 = vmatprep.subr.mxu0 %v978
    %2531 = vmatpush2.msra.mxu0 %v977
    %2532 = vmatprep.subr.mxu0 %v970
    %2533 = vmatpush2.msra.mxu0 %v969
    %2534 = vmatprep.subr.mxu0 %v962
    %2535 = vmatpush2.msra.mxu0 %v961
    %2536 = vmatprep.subr.mxu0 %v954
    %2537 = vmatpush2.msra.mxu0 %v953
    %2538 = vmatprep.subr.mxu0 %v946
    %2539 = vmatpush2.msra.mxu0 %v945
    %2540 = vmatprep.subr.mxu0 %v938
    %2541 = vmatpush2.msra.mxu0 %v937
    %2542 = vmatprep.subr.mxu0 %v930
    %2543 = vmatpush2.msra.mxu0 %v929
    %2544 = vmatprep.subr.mxu0 %v922
    %2545 = vmatpush2.msra.mxu0 %v921
    %2546 = vmatprep.subr.mxu0 %v914
    %2547 = vmatpush2.msra.mxu0 %v913
    %2548 = vmatprep.subr.mxu0 %v906
    %2549 = vmatpush2.msra.mxu0 %v905
    %2550 = vmatprep.subr.mxu0 %v898
    %2551 = vmatpush2.msra.mxu0 %v897
    %2552 = vmatprep.subr.mxu0 %v890
    %2553 = vmatpush2.msra.mxu0 %v889
    %2554 = vmatprep.mubr.f32.mxu0 %v2409
    %2555 = vmatmul.mubr.f32.gmra.mxu0 %v2408
    %v2556 = vpop.f32.mrf.mxu0
    %v2557 = vadd.f32 0.0, %v2556
    %v2558 = vpop.f32.mrf.mxu0
    %v2559 = vadd.f32 0.0, %v2558
    %2560 = vdwg.mxu0
    %2561 = vmatprep.subr.mxu0 %v884
    %2562 = vmatpush1.msra.mxu0 %v883
    %2563 = vmatprep.subr.mxu0 %v876
    %2564 = vmatpush1.msra.mxu0 %v875
    %2565 = vmatprep.subr.mxu0 %v868
    %2566 = vmatpush1.msra.mxu0 %v867
    %2567 = vmatprep.subr.mxu0 %v860
    %2568 = vmatpush1.msra.mxu0 %v859
    %2569 = vmatprep.subr.mxu0 %v852
    %2570 = vmatpush1.msra.mxu0 %v851
    %2571 = vmatprep.subr.mxu0 %v844
    %2572 = vmatpush1.msra.mxu0 %v843
    %2573 = vmatprep.subr.mxu0 %v836
    %2574 = vmatpush1.msra.mxu0 %v835
    %2575 = vmatprep.subr.mxu0 %v828
    %2576 = vmatpush1.msra.mxu0 %v827
    %2577 = vmatprep.subr.mxu0 %v820
    %2578 = vmatpush1.msra.mxu0 %v819
    %2579 = vmatprep.subr.mxu0 %v812
    %2580 = vmatpush1.msra.mxu0 %v811
    %2581 = vmatprep.subr.mxu0 %v804
    %2582 = vmatpush1.msra.mxu0 %v803
    %2583 = vmatprep.subr.mxu0 %v796
    %2584 = vmatpush1.msra.mxu0 %v795
    %2585 = vmatprep.subr.mxu0 %v788
    %2586 = vmatpush1.msra.mxu0 %v787
    %2587 = vmatprep.subr.mxu0 %v780
    %2588 = vmatpush1.msra.mxu0 %v779
    %2589 = vmatprep.subr.mxu0 %v772
    %2590 = vmatpush1.msra.mxu0 %v771
    %2591 = vmatprep.subr.mxu0 %v764
    %2592 = vmatpush1.msra.mxu0 %v763
    %2593 = vmatprep.subr.mxu0 %v1012
    %2594 = vmatpush2.msra.mxu0 %v1011
    %2595 = vmatprep.subr.mxu0 %v1004
    %2596 = vmatpush2.msra.mxu0 %v1003
    %2597 = vmatprep.subr.mxu0 %v996
    %2598 = vmatpush2.msra.mxu0 %v995
    %2599 = vmatprep.subr.mxu0 %v988
    %2600 = vmatpush2.msra.mxu0 %v987
    %2601 = vmatprep.subr.mxu0 %v980
    %2602 = vmatpush2.msra.mxu0 %v979
    %2603 = vmatprep.subr.mxu0 %v972
    %2604 = vmatpush2.msra.mxu0 %v971
    %2605 = vmatprep.subr.mxu0 %v964
    %2606 = vmatpush2.msra.mxu0 %v963
    %2607 = vmatprep.subr.mxu0 %v956
    %2608 = vmatpush2.msra.mxu0 %v955
    %2609 = vmatprep.subr.mxu0 %v948
    %2610 = vmatpush2.msra.mxu0 %v947
    %2611 = vmatprep.subr.mxu0 %v940
    %2612 = vmatpush2.msra.mxu0 %v939
    %2613 = vmatprep.subr.mxu0 %v932
    %2614 = vmatpush2.msra.mxu0 %v931
    %2615 = vmatprep.subr.mxu0 %v924
    %2616 = vmatpush2.msra.mxu0 %v923
    %2617 = vmatprep.subr.mxu0 %v916
    %2618 = vmatpush2.msra.mxu0 %v915
    %2619 = vmatprep.subr.mxu0 %v908
    %2620 = vmatpush2.msra.mxu0 %v907
    %2621 = vmatprep.subr.mxu0 %v900
    %2622 = vmatpush2.msra.mxu0 %v899
    %2623 = vmatprep.subr.mxu0 %v892
    %2624 = vmatpush2.msra.mxu0 %v891
    %2625 = vmatprep.mubr.f32.mxu0 %v2409
    %2626 = vmatmul.mubr.f32.gmra.mxu0 %v2408
    %v2627 = vpop.f32.mrf.mxu0
    %v2628 = vadd.f32 0.0, %v2627
    %v2629 = vpop.f32.mrf.mxu0
    %v2630 = vadd.f32 0.0, %v2629
    %2631 = vdwg.mxu0
    %2632 = vmatprep.subr.mxu0 %v886
    %2633 = vmatpush1.msra.mxu0 %v885
    %2634 = vmatprep.subr.mxu0 %v878
    %2635 = vmatpush1.msra.mxu0 %v877
    %2636 = vmatprep.subr.mxu0 %v870
    %2637 = vmatpush1.msra.mxu0 %v869
    %2638 = vmatprep.subr.mxu0 %v862
    %2639 = vmatpush1.msra.mxu0 %v861
    %2640 = vmatprep.subr.mxu0 %v854
    %2641 = vmatpush1.msra.mxu0 %v853
    %2642 = vmatprep.subr.mxu0 %v846
    %2643 = vmatpush1.msra.mxu0 %v845
    %2644 = vmatprep.subr.mxu0 %v838
    %2645 = vmatpush1.msra.mxu0 %v837
    %2646 = vmatprep.subr.mxu0 %v830
    %2647 = vmatpush1.msra.mxu0 %v829
    %2648 = vmatprep.subr.mxu0 %v822
    %2649 = vmatpush1.msra.mxu0 %v821
    %2650 = vmatprep.subr.mxu0 %v814
    %2651 = vmatpush1.msra.mxu0 %v813
    %2652 = vmatprep.subr.mxu0 %v806
    %2653 = vmatpush1.msra.mxu0 %v805
    %2654 = vmatprep.subr.mxu0 %v798
    %2655 = vmatpush1.msra.mxu0 %v797
    %2656 = vmatprep.subr.mxu0 %v790
    %2657 = vmatpush1.msra.mxu0 %v789
    %2658 = vmatprep.subr.mxu0 %v782
    %2659 = vmatpush1.msra.mxu0 %v781
    %2660 = vmatprep.subr.mxu0 %v774
    %2661 = vmatpush1.msra.mxu0 %v773
    %2662 = vmatprep.subr.mxu0 %v766
    %2663 = vmatpush1.msra.mxu0 %v765
    %2664 = vmatprep.subr.mxu0 %v1014
    %2665 = vmatpush2.msra.mxu0 %v1013
    %2666 = vmatprep.subr.mxu0 %v1006
    %2667 = vmatpush2.msra.mxu0 %v1005
    %2668 = vmatprep.subr.mxu0 %v998
    %2669 = vmatpush2.msra.mxu0 %v997
    %2670 = vmatprep.subr.mxu0 %v990
    %2671 = vmatpush2.msra.mxu0 %v989
    %2672 = vmatprep.subr.mxu0 %v982
    %2673 = vmatpush2.msra.mxu0 %v981
    %2674 = vmatprep.subr.mxu0 %v974
    %2675 = vmatpush2.msra.mxu0 %v973
    %2676 = vmatprep.subr.mxu0 %v966
    %2677 = vmatpush2.msra.mxu0 %v965
    %2678 = vmatprep.subr.mxu0 %v958
    %2679 = vmatpush2.msra.mxu0 %v957
    %2680 = vmatprep.subr.mxu0 %v950
    %2681 = vmatpush2.msra.mxu0 %v949
    %2682 = vmatprep.subr.mxu0 %v942
    %2683 = vmatpush2.msra.mxu0 %v941
    %2684 = vmatprep.subr.mxu0 %v934
    %2685 = vmatpush2.msra.mxu0 %v933
    %2686 = vmatprep.subr.mxu0 %v926
    %2687 = vmatpush2.msra.mxu0 %v925
    %2688 = vmatprep.subr.mxu0 %v918
    %2689 = vmatpush2.msra.mxu0 %v917
    %2690 = vmatprep.subr.mxu0 %v910
    %2691 = vmatpush2.msra.mxu0 %v909
    %2692 = vmatprep.subr.mxu0 %v902
    %2693 = vmatpush2.msra.mxu0 %v901
    %2694 = vmatprep.subr.mxu0 %v894
    %2695 = vmatpush2.msra.mxu0 %v893
    %2696 = vmatprep.mubr.f32.mxu0 %v2409
    %2697 = vmatmul.mubr.f32.gmra.mxu0 %v2408
    %v2698 = vpop.f32.mrf.mxu0
    %v2699 = vadd.f32 0.0, %v2698
    %v2700 = vpop.f32.mrf.mxu0
    %v2701 = vadd.f32 0.0, %v2700
    %2702 = vdwg.mxu0
    %v2703 = vadd.f32 %v2411, %v2486
    %v2704 = vadd.f32 %v2412, %v2488
    %v2705 = vadd.f32 %v2413, %v2557
    %v2706 = vadd.f32 %v2414, %v2559
    %v2707 = vadd.f32 %v2415, %v2628
    %v2708 = vadd.f32 %v2416, %v2630
    %v2709 = vadd.f32 %v2417, %v2699
    %v2710 = vadd.f32 %v2418, %v2701
    %v2711 = vxor.u32 %v2703, 2147483648
    %v2712 = vxor.u32 %v2704, 2147483648
    %v2713 = vmul.f32 %v2711, 1.442695
    %v2714 = vpow.pop %v2713
    %v2715 = vmul.f32 %v2712, 1.442695
    %v2716 = vpow.pop %v2715
    %v2717 = vadd.f32 %v2714, 1.0
    %v2718 = vadd.f32 %v2716, 1.0
    %v2719 = vrcp.pop %v2717
    %v2720 = vmul.f32 1.0, %v2719
    %v2721 = vrcp.pop %v2718
    %v2722 = vmul.f32 1.0, %v2721
    %v2723 = vxor.u32 %v2705, 2147483648
    %v2724 = vxor.u32 %v2706, 2147483648
    %v2725 = vmul.f32 %v2723, 1.442695
    %v2726 = vpow.pop %v2725
    %v2727 = vmul.f32 %v2724, 1.442695
    %v2728 = vpow.pop %v2727
    %v2729 = vadd.f32 %v2726, 1.0
    %v2730 = vadd.f32 %v2728, 1.0
    %v2731 = vrcp.pop %v2729
    %v2732 = vmul.f32 1.0, %v2731
    %v2733 = vrcp.pop %v2730
    %v2734 = vmul.f32 1.0, %v2733
    %v2735 = vtanh.pop %v2707
    %v2736 = vtanh.pop %v2708
    %v2737 = vxor.u32 %v2709, 2147483648
    %v2738 = vxor.u32 %v2710, 2147483648
    %v2739 = vmul.f32 %v2737, 1.442695
    %v2740 = vpow.pop %v2739
    %v2741 = vmul.f32 %v2738, 1.442695
    %v2742 = vpow.pop %v2741
    %v2743 = vadd.f32 %v2740, 1.0
    %v2744 = vadd.f32 %v2742, 1.0
    %v2745 = vrcp.pop %v2743
    %v2746 = vmul.f32 1.0, %v2745
    %v2747 = vrcp.pop %v2744
    %v2748 = vmul.f32 1.0, %v2747
    %v2749 = vmul.f32 %v2732, %v2404
    %v2750 = vmul.f32 %v2734, %v2405
    %v2751 = vmul.f32 %v2720, %v2735
    %v2752 = vmul.f32 %v2722, %v2736
    %v2753 = vadd.f32 %v2749, %v2751
    %v2754 = vadd.f32 %v2750, %v2752
    %v2755 = vtanh.pop %v2753
    %v2756 = vtanh.pop %v2754
    %v2757 = vmul.f32 %v2746, %v2755
    %v2758 = vmul.f32 %v2748, %v2756
    %s2759 = scalar_lea.vmem [#allocation2], 320
    %v2760 = vld [vmem:[%s2759] sm:$0xff]
    %v2761 = vld [vmem:[%s2759 + $0x8] sm:$0xff]
    %v2762 = vld [vmem:[%s2759 + $0x10] sm:$0xff]
    %v2763 = vld [vmem:[%s2759 + $0x18] sm:$0xff]
    %v2764 = vld [vmem:[%s2759 + $0x20] sm:$0xff]
    %v2765 = vld [vmem:[%s2759 + $0x28] sm:$0xff]
    %v2766 = vld [vmem:[%s2759 + $0x30] sm:$0xff]
    %v2767 = vld [vmem:[%s2759 + $0x38] sm:$0xff]
    %2768 = vmatprep.subr.mxu0 %v880
    %2769 = vmatpush1.msra.mxu0 %v879
    %2770 = vmatprep.subr.mxu0 %v872
    %2771 = vmatpush1.msra.mxu0 %v871
    %2772 = vmatprep.subr.mxu0 %v864
    %2773 = vmatpush1.msra.mxu0 %v863
    %2774 = vmatprep.subr.mxu0 %v856
    %2775 = vmatpush1.msra.mxu0 %v855
    %2776 = vmatprep.subr.mxu0 %v848
    %2777 = vmatpush1.msra.mxu0 %v847
    %2778 = vmatprep.subr.mxu0 %v840
    %2779 = vmatpush1.msra.mxu0 %v839
    %2780 = vmatprep.subr.mxu0 %v832
    %2781 = vmatpush1.msra.mxu0 %v831
    %2782 = vmatprep.subr.mxu0 %v824
    %2783 = vmatpush1.msra.mxu0 %v823
    %2784 = vmatprep.subr.mxu0 %v816
    %2785 = vmatpush1.msra.mxu0 %v815
    %2786 = vmatprep.subr.mxu0 %v808
    %2787 = vmatpush1.msra.mxu0 %v807
    %2788 = vmatprep.subr.mxu0 %v800
    %2789 = vmatpush1.msra.mxu0 %v799
    %2790 = vmatprep.subr.mxu0 %v792
    %2791 = vmatpush1.msra.mxu0 %v791
    %2792 = vmatprep.subr.mxu0 %v784
    %2793 = vmatpush1.msra.mxu0 %v783
    %2794 = vmatprep.subr.mxu0 %v776
    %2795 = vmatpush1.msra.mxu0 %v775
    %2796 = vmatprep.subr.mxu0 %v768
    %2797 = vmatpush1.msra.mxu0 %v767
    %2798 = vmatprep.subr.mxu0 %v760
    %2799 = vmatpush1.msra.mxu0 %v759
    %2800 = vmatprep.subr.mxu0 %v1008
    %2801 = vmatpush2.msra.mxu0 %v1007
    %2802 = vmatprep.subr.mxu0 %v1000
    %2803 = vmatpush2.msra.mxu0 %v999
    %2804 = vmatprep.subr.mxu0 %v992
    %2805 = vmatpush2.msra.mxu0 %v991
    %2806 = vmatprep.subr.mxu0 %v984
    %2807 = vmatpush2.msra.mxu0 %v983
    %2808 = vmatprep.subr.mxu0 %v976
    %2809 = vmatpush2.msra.mxu0 %v975
    %2810 = vmatprep.subr.mxu0 %v968
    %2811 = vmatpush2.msra.mxu0 %v967
    %2812 = vmatprep.subr.mxu0 %v960
    %2813 = vmatpush2.msra.mxu0 %v959
    %2814 = vmatprep.subr.mxu0 %v952
    %2815 = vmatpush2.msra.mxu0 %v951
    %2816 = vmatprep.subr.mxu0 %v944
    %2817 = vmatpush2.msra.mxu0 %v943
    %2818 = vmatprep.subr.mxu0 %v936
    %2819 = vmatpush2.msra.mxu0 %v935
    %2820 = vmatprep.subr.mxu0 %v928
    %2821 = vmatpush2.msra.mxu0 %v927
    %2822 = vmatprep.subr.mxu0 %v920
    %2823 = vmatpush2.msra.mxu0 %v919
    %2824 = vmatprep.subr.mxu0 %v912
    %2825 = vmatpush2.msra.mxu0 %v911
    %2826 = vmatprep.subr.mxu0 %v904
    %2827 = vmatpush2.msra.mxu0 %v903
    %2828 = vmatprep.subr.mxu0 %v896
    %2829 = vmatpush2.msra.mxu0 %v895
    %2830 = vmatprep.subr.mxu0 %v888
    %2831 = vmatpush2.msra.mxu0 %v887
    %2832 = vmatprep.mubr.f32.mxu0 %v2758
    %2833 = vmatmul.mubr.f32.gmra.mxu0 %v2757
    %v2834 = vpop.f32.mrf.mxu0
    %v2835 = vadd.f32 0.0, %v2834
    %v2836 = vpop.f32.mrf.mxu0
    %v2837 = vadd.f32 0.0, %v2836
    %2838 = vdwg.mxu0
    %2839 = vmatprep.subr.mxu0 %v882
    %2840 = vmatpush1.msra.mxu0 %v881
    %2841 = vmatprep.subr.mxu0 %v874
    %2842 = vmatpush1.msra.mxu0 %v873
    %2843 = vmatprep.subr.mxu0 %v866
    %2844 = vmatpush1.msra.mxu0 %v865
    %2845 = vmatprep.subr.mxu0 %v858
    %2846 = vmatpush1.msra.mxu0 %v857
    %2847 = vmatprep.subr.mxu0 %v850
    %2848 = vmatpush1.msra.mxu0 %v849
    %2849 = vmatprep.subr.mxu0 %v842
    %2850 = vmatpush1.msra.mxu0 %v841
    %2851 = vmatprep.subr.mxu0 %v834
    %2852 = vmatpush1.msra.mxu0 %v833
    %2853 = vmatprep.subr.mxu0 %v826
    %2854 = vmatpush1.msra.mxu0 %v825
    %2855 = vmatprep.subr.mxu0 %v818
    %2856 = vmatpush1.msra.mxu0 %v817
    %2857 = vmatprep.subr.mxu0 %v810
    %2858 = vmatpush1.msra.mxu0 %v809
    %2859 = vmatprep.subr.mxu0 %v802
    %2860 = vmatpush1.msra.mxu0 %v801
    %2861 = vmatprep.subr.mxu0 %v794
    %2862 = vmatpush1.msra.mxu0 %v793
    %2863 = vmatprep.subr.mxu0 %v786
    %2864 = vmatpush1.msra.mxu0 %v785
    %2865 = vmatprep.subr.mxu0 %v778
    %2866 = vmatpush1.msra.mxu0 %v777
    %2867 = vmatprep.subr.mxu0 %v770
    %2868 = vmatpush1.msra.mxu0 %v769
    %2869 = vmatprep.subr.mxu0 %v762
    %2870 = vmatpush1.msra.mxu0 %v761
    %2871 = vmatprep.subr.mxu0 %v1010
    %2872 = vmatpush2.msra.mxu0 %v1009
    %2873 = vmatprep.subr.mxu0 %v1002
    %2874 = vmatpush2.msra.mxu0 %v1001
    %2875 = vmatprep.subr.mxu0 %v994
    %2876 = vmatpush2.msra.mxu0 %v993
    %2877 = vmatprep.subr.mxu0 %v986
    %2878 = vmatpush2.msra.mxu0 %v985
    %2879 = vmatprep.subr.mxu0 %v978
    %2880 = vmatpush2.msra.mxu0 %v977
    %2881 = vmatprep.subr.mxu0 %v970
    %2882 = vmatpush2.msra.mxu0 %v969
    %2883 = vmatprep.subr.mxu0 %v962
    %2884 = vmatpush2.msra.mxu0 %v961
    %2885 = vmatprep.subr.mxu0 %v954
    %2886 = vmatpush2.msra.mxu0 %v953
    %2887 = vmatprep.subr.mxu0 %v946
    %2888 = vmatpush2.msra.mxu0 %v945
    %2889 = vmatprep.subr.mxu0 %v938
    %2890 = vmatpush2.msra.mxu0 %v937
    %2891 = vmatprep.subr.mxu0 %v930
    %2892 = vmatpush2.msra.mxu0 %v929
    %2893 = vmatprep.subr.mxu0 %v922
    %2894 = vmatpush2.msra.mxu0 %v921
    %2895 = vmatprep.subr.mxu0 %v914
    %2896 = vmatpush2.msra.mxu0 %v913
    %2897 = vmatprep.subr.mxu0 %v906
    %2898 = vmatpush2.msra.mxu0 %v905
    %2899 = vmatprep.subr.mxu0 %v898
    %2900 = vmatpush2.msra.mxu0 %v897
    %2901 = vmatprep.subr.mxu0 %v890
    %2902 = vmatpush2.msra.mxu0 %v889
    %2903 = vmatprep.mubr.f32.mxu0 %v2758
    %2904 = vmatmul.mubr.f32.gmra.mxu0 %v2757
    %v2905 = vpop.f32.mrf.mxu0
    %v2906 = vadd.f32 0.0, %v2905
    %v2907 = vpop.f32.mrf.mxu0
    %v2908 = vadd.f32 0.0, %v2907
    %2909 = vdwg.mxu0
    %2910 = vmatprep.subr.mxu0 %v884
    %2911 = vmatpush1.msra.mxu0 %v883
    %2912 = vmatprep.subr.mxu0 %v876
    %2913 = vmatpush1.msra.mxu0 %v875
    %2914 = vmatprep.subr.mxu0 %v868
    %2915 = vmatpush1.msra.mxu0 %v867
    %2916 = vmatprep.subr.mxu0 %v860
    %2917 = vmatpush1.msra.mxu0 %v859
    %2918 = vmatprep.subr.mxu0 %v852
    %2919 = vmatpush1.msra.mxu0 %v851
    %2920 = vmatprep.subr.mxu0 %v844
    %2921 = vmatpush1.msra.mxu0 %v843
    %2922 = vmatprep.subr.mxu0 %v836
    %2923 = vmatpush1.msra.mxu0 %v835
    %2924 = vmatprep.subr.mxu0 %v828
    %2925 = vmatpush1.msra.mxu0 %v827
    %2926 = vmatprep.subr.mxu0 %v820
    %2927 = vmatpush1.msra.mxu0 %v819
    %2928 = vmatprep.subr.mxu0 %v812
    %2929 = vmatpush1.msra.mxu0 %v811
    %2930 = vmatprep.subr.mxu0 %v804
    %2931 = vmatpush1.msra.mxu0 %v803
    %2932 = vmatprep.subr.mxu0 %v796
    %2933 = vmatpush1.msra.mxu0 %v795
    %2934 = vmatprep.subr.mxu0 %v788
    %2935 = vmatpush1.msra.mxu0 %v787
    %2936 = vmatprep.subr.mxu0 %v780
    %2937 = vmatpush1.msra.mxu0 %v779
    %2938 = vmatprep.subr.mxu0 %v772
    %2939 = vmatpush1.msra.mxu0 %v771
    %2940 = vmatprep.subr.mxu0 %v764
    %2941 = vmatpush1.msra.mxu0 %v763
    %2942 = vmatprep.subr.mxu0 %v1012
    %2943 = vmatpush2.msra.mxu0 %v1011
    %2944 = vmatprep.subr.mxu0 %v1004
    %2945 = vmatpush2.msra.mxu0 %v1003
    %2946 = vmatprep.subr.mxu0 %v996
    %2947 = vmatpush2.msra.mxu0 %v995
    %2948 = vmatprep.subr.mxu0 %v988
    %2949 = vmatpush2.msra.mxu0 %v987
    %2950 = vmatprep.subr.mxu0 %v980
    %2951 = vmatpush2.msra.mxu0 %v979
    %2952 = vmatprep.subr.mxu0 %v972
    %2953 = vmatpush2.msra.mxu0 %v971
    %2954 = vmatprep.subr.mxu0 %v964
    %2955 = vmatpush2.msra.mxu0 %v963
    %2956 = vmatprep.subr.mxu0 %v956
    %2957 = vmatpush2.msra.mxu0 %v955
    %2958 = vmatprep.subr.mxu0 %v948
    %2959 = vmatpush2.msra.mxu0 %v947
    %2960 = vmatprep.subr.mxu0 %v940
    %2961 = vmatpush2.msra.mxu0 %v939
    %2962 = vmatprep.subr.mxu0 %v932
    %2963 = vmatpush2.msra.mxu0 %v931
    %2964 = vmatprep.subr.mxu0 %v924
    %2965 = vmatpush2.msra.mxu0 %v923
    %2966 = vmatprep.subr.mxu0 %v916
    %2967 = vmatpush2.msra.mxu0 %v915
    %2968 = vmatprep.subr.mxu0 %v908
    %2969 = vmatpush2.msra.mxu0 %v907
    %2970 = vmatprep.subr.mxu0 %v900
    %2971 = vmatpush2.msra.mxu0 %v899
    %2972 = vmatprep.subr.mxu0 %v892
    %2973 = vmatpush2.msra.mxu0 %v891
    %2974 = vmatprep.mubr.f32.mxu0 %v2758
    %2975 = vmatmul.mubr.f32.gmra.mxu0 %v2757
    %v2976 = vpop.f32.mrf.mxu0
    %v2977 = vadd.f32 0.0, %v2976
    %v2978 = vpop.f32.mrf.mxu0
    %v2979 = vadd.f32 0.0, %v2978
    %2980 = vdwg.mxu0
    %2981 = vmatprep.subr.mxu0 %v886
    %2982 = vmatpush1.msra.mxu0 %v885
    %2983 = vmatprep.subr.mxu0 %v878
    %2984 = vmatpush1.msra.mxu0 %v877
    %2985 = vmatprep.subr.mxu0 %v870
    %2986 = vmatpush1.msra.mxu0 %v869
    %2987 = vmatprep.subr.mxu0 %v862
    %2988 = vmatpush1.msra.mxu0 %v861
    %2989 = vmatprep.subr.mxu0 %v854
    %2990 = vmatpush1.msra.mxu0 %v853
    %2991 = vmatprep.subr.mxu0 %v846
    %2992 = vmatpush1.msra.mxu0 %v845
    %2993 = vmatprep.subr.mxu0 %v838
    %2994 = vmatpush1.msra.mxu0 %v837
    %2995 = vmatprep.subr.mxu0 %v830
    %2996 = vmatpush1.msra.mxu0 %v829
    %2997 = vmatprep.subr.mxu0 %v822
    %2998 = vmatpush1.msra.mxu0 %v821
    %2999 = vmatprep.subr.mxu0 %v814
    %3000 = vmatpush1.msra.mxu0 %v813
    %3001 = vmatprep.subr.mxu0 %v806
    %3002 = vmatpush1.msra.mxu0 %v805
    %3003 = vmatprep.subr.mxu0 %v798
    %3004 = vmatpush1.msra.mxu0 %v797
    %3005 = vmatprep.subr.mxu0 %v790
    %3006 = vmatpush1.msra.mxu0 %v789
    %3007 = vmatprep.subr.mxu0 %v782
    %3008 = vmatpush1.msra.mxu0 %v781
    %3009 = vmatprep.subr.mxu0 %v774
    %3010 = vmatpush1.msra.mxu0 %v773
    %3011 = vmatprep.subr.mxu0 %v766
    %3012 = vmatpush1.msra.mxu0 %v765
    %3013 = vmatprep.subr.mxu0 %v1014
    %3014 = vmatpush2.msra.mxu0 %v1013
    %3015 = vmatprep.subr.mxu0 %v1006
    %3016 = vmatpush2.msra.mxu0 %v1005
    %3017 = vmatprep.subr.mxu0 %v998
    %3018 = vmatpush2.msra.mxu0 %v997
    %3019 = vmatprep.subr.mxu0 %v990
    %3020 = vmatpush2.msra.mxu0 %v989
    %3021 = vmatprep.subr.mxu0 %v982
    %3022 = vmatpush2.msra.mxu0 %v981
    %3023 = vmatprep.subr.mxu0 %v974
    %3024 = vmatpush2.msra.mxu0 %v973
    %3025 = vmatprep.subr.mxu0 %v966
    %3026 = vmatpush2.msra.mxu0 %v965
    %3027 = vmatprep.subr.mxu0 %v958
    %3028 = vmatpush2.msra.mxu0 %v957
    %3029 = vmatprep.subr.mxu0 %v950
    %3030 = vmatpush2.msra.mxu0 %v949
    %3031 = vmatprep.subr.mxu0 %v942
    %3032 = vmatpush2.msra.mxu0 %v941
    %3033 = vmatprep.subr.mxu0 %v934
    %3034 = vmatpush2.msra.mxu0 %v933
    %3035 = vmatprep.subr.mxu0 %v926
    %3036 = vmatpush2.msra.mxu0 %v925
    %3037 = vmatprep.subr.mxu0 %v918
    %3038 = vmatpush2.msra.mxu0 %v917
    %3039 = vmatprep.subr.mxu0 %v910
    %3040 = vmatpush2.msra.mxu0 %v909
    %3041 = vmatprep.subr.mxu0 %v902
    %3042 = vmatpush2.msra.mxu0 %v901
    %3043 = vmatprep.subr.mxu0 %v894
    %3044 = vmatpush2.msra.mxu0 %v893
    %3045 = vmatprep.mubr.f32.mxu0 %v2758
    %3046 = vmatmul.mubr.f32.gmra.mxu0 %v2757
    %v3047 = vpop.f32.mrf.mxu0
    %v3048 = vadd.f32 0.0, %v3047
    %v3049 = vpop.f32.mrf.mxu0
    %v3050 = vadd.f32 0.0, %v3049
    %3051 = vdwg.mxu0
    %v3052 = vadd.f32 %v2760, %v2835
    %v3053 = vadd.f32 %v2761, %v2837
    %v3054 = vadd.f32 %v2762, %v2906
    %v3055 = vadd.f32 %v2763, %v2908
    %v3056 = vadd.f32 %v2764, %v2977
    %v3057 = vadd.f32 %v2765, %v2979
    %v3058 = vadd.f32 %v2766, %v3048
    %v3059 = vadd.f32 %v2767, %v3050
    %v3060 = vxor.u32 %v3052, 2147483648
    %v3061 = vxor.u32 %v3053, 2147483648
    %v3062 = vmul.f32 %v3060, 1.442695
    %v3063 = vpow.pop %v3062
    %v3064 = vmul.f32 %v3061, 1.442695
    %v3065 = vpow.pop %v3064
    %v3066 = vadd.f32 %v3063, 1.0
    %v3067 = vadd.f32 %v3065, 1.0
    %v3068 = vrcp.pop %v3066
    %v3069 = vmul.f32 1.0, %v3068
    %v3070 = vrcp.pop %v3067
    %v3071 = vmul.f32 1.0, %v3070
    %v3072 = vxor.u32 %v3054, 2147483648
    %v3073 = vxor.u32 %v3055, 2147483648
    %v3074 = vmul.f32 %v3072, 1.442695
    %v3075 = vpow.pop %v3074
    %v3076 = vmul.f32 %v3073, 1.442695
    %v3077 = vpow.pop %v3076
    %v3078 = vadd.f32 %v3075, 1.0
    %v3079 = vadd.f32 %v3077, 1.0
    %v3080 = vrcp.pop %v3078
    %v3081 = vmul.f32 1.0, %v3080
    %v3082 = vrcp.pop %v3079
    %v3083 = vmul.f32 1.0, %v3082
    %v3084 = vtanh.pop %v3056
    %v3085 = vtanh.pop %v3057
    %v3086 = vxor.u32 %v3058, 2147483648
    %v3087 = vxor.u32 %v3059, 2147483648
    %v3088 = vmul.f32 %v3086, 1.442695
    %v3089 = vpow.pop %v3088
    %v3090 = vmul.f32 %v3087, 1.442695
    %v3091 = vpow.pop %v3090
    %v3092 = vadd.f32 %v3089, 1.0
    %v3093 = vadd.f32 %v3091, 1.0
    %v3094 = vrcp.pop %v3092
    %v3095 = vmul.f32 1.0, %v3094
    %v3096 = vrcp.pop %v3093
    %v3097 = vmul.f32 1.0, %v3096
    %v3098 = vmul.f32 %v3081, %v2753
    %v3099 = vmul.f32 %v3083, %v2754
    %v3100 = vmul.f32 %v3069, %v3084
    %v3101 = vmul.f32 %v3071, %v3085
    %v3102 = vadd.f32 %v3098, %v3100
    %v3103 = vadd.f32 %v3099, %v3101
    %v3104 = vtanh.pop %v3102
    %v3105 = vtanh.pop %v3103
    %v3106 = vmul.f32 %v3095, %v3104
    %v3107 = vmul.f32 %v3097, %v3105
    %s3108 = scalar_lea.vmem [#allocation2], 384
    %v3109 = vld [vmem:[%s3108] sm:$0xff]
    %v3110 = vld [vmem:[%s3108 + $0x8] sm:$0xff]
    %v3111 = vld [vmem:[%s3108 + $0x10] sm:$0xff]
    %v3112 = vld [vmem:[%s3108 + $0x18] sm:$0xff]
    %v3113 = vld [vmem:[%s3108 + $0x20] sm:$0xff]
    %v3114 = vld [vmem:[%s3108 + $0x28] sm:$0xff]
    %v3115 = vld [vmem:[%s3108 + $0x30] sm:$0xff]
    %v3116 = vld [vmem:[%s3108 + $0x38] sm:$0xff]
    %3117 = vmatprep.subr.mxu0 %v880
    %3118 = vmatpush1.msra.mxu0 %v879
    %3119 = vmatprep.subr.mxu0 %v872
    %3120 = vmatpush1.msra.mxu0 %v871
    %3121 = vmatprep.subr.mxu0 %v864
    %3122 = vmatpush1.msra.mxu0 %v863
    %3123 = vmatprep.subr.mxu0 %v856
    %3124 = vmatpush1.msra.mxu0 %v855
    %3125 = vmatprep.subr.mxu0 %v848
    %3126 = vmatpush1.msra.mxu0 %v847
    %3127 = vmatprep.subr.mxu0 %v840
    %3128 = vmatpush1.msra.mxu0 %v839
    %3129 = vmatprep.subr.mxu0 %v832
    %3130 = vmatpush1.msra.mxu0 %v831
    %3131 = vmatprep.subr.mxu0 %v824
    %3132 = vmatpush1.msra.mxu0 %v823
    %3133 = vmatprep.subr.mxu0 %v816
    %3134 = vmatpush1.msra.mxu0 %v815
    %3135 = vmatprep.subr.mxu0 %v808
    %3136 = vmatpush1.msra.mxu0 %v807
    %3137 = vmatprep.subr.mxu0 %v800
    %3138 = vmatpush1.msra.mxu0 %v799
    %3139 = vmatprep.subr.mxu0 %v792
    %3140 = vmatpush1.msra.mxu0 %v791
    %3141 = vmatprep.subr.mxu0 %v784
    %3142 = vmatpush1.msra.mxu0 %v783
    %3143 = vmatprep.subr.mxu0 %v776
    %3144 = vmatpush1.msra.mxu0 %v775
    %3145 = vmatprep.subr.mxu0 %v768
    %3146 = vmatpush1.msra.mxu0 %v767
    %3147 = vmatprep.subr.mxu0 %v760
    %3148 = vmatpush1.msra.mxu0 %v759
    %3149 = vmatprep.subr.mxu0 %v1008
    %3150 = vmatpush2.msra.mxu0 %v1007
    %3151 = vmatprep.subr.mxu0 %v1000
    %3152 = vmatpush2.msra.mxu0 %v999
    %3153 = vmatprep.subr.mxu0 %v992
    %3154 = vmatpush2.msra.mxu0 %v991
    %3155 = vmatprep.subr.mxu0 %v984
    %3156 = vmatpush2.msra.mxu0 %v983
    %3157 = vmatprep.subr.mxu0 %v976
    %3158 = vmatpush2.msra.mxu0 %v975
    %3159 = vmatprep.subr.mxu0 %v968
    %3160 = vmatpush2.msra.mxu0 %v967
    %3161 = vmatprep.subr.mxu0 %v960
    %3162 = vmatpush2.msra.mxu0 %v959
    %3163 = vmatprep.subr.mxu0 %v952
    %3164 = vmatpush2.msra.mxu0 %v951
    %3165 = vmatprep.subr.mxu0 %v944
    %3166 = vmatpush2.msra.mxu0 %v943
    %3167 = vmatprep.subr.mxu0 %v936
    %3168 = vmatpush2.msra.mxu0 %v935
    %3169 = vmatprep.subr.mxu0 %v928
    %3170 = vmatpush2.msra.mxu0 %v927
    %3171 = vmatprep.subr.mxu0 %v920
    %3172 = vmatpush2.msra.mxu0 %v919
    %3173 = vmatprep.subr.mxu0 %v912
    %3174 = vmatpush2.msra.mxu0 %v911
    %3175 = vmatprep.subr.mxu0 %v904
    %3176 = vmatpush2.msra.mxu0 %v903
    %3177 = vmatprep.subr.mxu0 %v896
    %3178 = vmatpush2.msra.mxu0 %v895
    %3179 = vmatprep.subr.mxu0 %v888
    %3180 = vmatpush2.msra.mxu0 %v887
    %3181 = vmatprep.mubr.f32.mxu0 %v3107
    %3182 = vmatmul.mubr.f32.gmra.mxu0 %v3106
    %v3183 = vpop.f32.mrf.mxu0
    %v3184 = vadd.f32 0.0, %v3183
    %v3185 = vpop.f32.mrf.mxu0
    %v3186 = vadd.f32 0.0, %v3185
    %3187 = vdwg.mxu0
    %3188 = vmatprep.subr.mxu0 %v882
    %3189 = vmatpush1.msra.mxu0 %v881
    %3190 = vmatprep.subr.mxu0 %v874
    %3191 = vmatpush1.msra.mxu0 %v873
    %3192 = vmatprep.subr.mxu0 %v866
    %3193 = vmatpush1.msra.mxu0 %v865
    %3194 = vmatprep.subr.mxu0 %v858
    %3195 = vmatpush1.msra.mxu0 %v857
    %3196 = vmatprep.subr.mxu0 %v850
    %3197 = vmatpush1.msra.mxu0 %v849
    %3198 = vmatprep.subr.mxu0 %v842
    %3199 = vmatpush1.msra.mxu0 %v841
    %3200 = vmatprep.subr.mxu0 %v834
    %3201 = vmatpush1.msra.mxu0 %v833
    %3202 = vmatprep.subr.mxu0 %v826
    %3203 = vmatpush1.msra.mxu0 %v825
    %3204 = vmatprep.subr.mxu0 %v818
    %3205 = vmatpush1.msra.mxu0 %v817
    %3206 = vmatprep.subr.mxu0 %v810
    %3207 = vmatpush1.msra.mxu0 %v809
    %3208 = vmatprep.subr.mxu0 %v802
    %3209 = vmatpush1.msra.mxu0 %v801
    %3210 = vmatprep.subr.mxu0 %v794
    %3211 = vmatpush1.msra.mxu0 %v793
    %3212 = vmatprep.subr.mxu0 %v786
    %3213 = vmatpush1.msra.mxu0 %v785
    %3214 = vmatprep.subr.mxu0 %v778
    %3215 = vmatpush1.msra.mxu0 %v777
    %3216 = vmatprep.subr.mxu0 %v770
    %3217 = vmatpush1.msra.mxu0 %v769
    %3218 = vmatprep.subr.mxu0 %v762
    %3219 = vmatpush1.msra.mxu0 %v761
    %3220 = vmatprep.subr.mxu0 %v1010
    %3221 = vmatpush2.msra.mxu0 %v1009
    %3222 = vmatprep.subr.mxu0 %v1002
    %3223 = vmatpush2.msra.mxu0 %v1001
    %3224 = vmatprep.subr.mxu0 %v994
    %3225 = vmatpush2.msra.mxu0 %v993
    %3226 = vmatprep.subr.mxu0 %v986
    %3227 = vmatpush2.msra.mxu0 %v985
    %3228 = vmatprep.subr.mxu0 %v978
    %3229 = vmatpush2.msra.mxu0 %v977
    %3230 = vmatprep.subr.mxu0 %v970
    %3231 = vmatpush2.msra.mxu0 %v969
    %3232 = vmatprep.subr.mxu0 %v962
    %3233 = vmatpush2.msra.mxu0 %v961
    %3234 = vmatprep.subr.mxu0 %v954
    %3235 = vmatpush2.msra.mxu0 %v953
    %3236 = vmatprep.subr.mxu0 %v946
    %3237 = vmatpush2.msra.mxu0 %v945
    %3238 = vmatprep.subr.mxu0 %v938
    %3239 = vmatpush2.msra.mxu0 %v937
    %3240 = vmatprep.subr.mxu0 %v930
    %3241 = vmatpush2.msra.mxu0 %v929
    %3242 = vmatprep.subr.mxu0 %v922
    %3243 = vmatpush2.msra.mxu0 %v921
    %3244 = vmatprep.subr.mxu0 %v914
    %3245 = vmatpush2.msra.mxu0 %v913
    %3246 = vmatprep.subr.mxu0 %v906
    %3247 = vmatpush2.msra.mxu0 %v905
    %3248 = vmatprep.subr.mxu0 %v898
    %3249 = vmatpush2.msra.mxu0 %v897
    %3250 = vmatprep.subr.mxu0 %v890
    %3251 = vmatpush2.msra.mxu0 %v889
    %3252 = vmatprep.mubr.f32.mxu0 %v3107
    %3253 = vmatmul.mubr.f32.gmra.mxu0 %v3106
    %v3254 = vpop.f32.mrf.mxu0
    %v3255 = vadd.f32 0.0, %v3254
    %v3256 = vpop.f32.mrf.mxu0
    %v3257 = vadd.f32 0.0, %v3256
    %3258 = vdwg.mxu0
    %3259 = vmatprep.subr.mxu0 %v884
    %3260 = vmatpush1.msra.mxu0 %v883
    %3261 = vmatprep.subr.mxu0 %v876
    %3262 = vmatpush1.msra.mxu0 %v875
    %3263 = vmatprep.subr.mxu0 %v868
    %3264 = vmatpush1.msra.mxu0 %v867
    %3265 = vmatprep.subr.mxu0 %v860
    %3266 = vmatpush1.msra.mxu0 %v859
    %3267 = vmatprep.subr.mxu0 %v852
    %3268 = vmatpush1.msra.mxu0 %v851
    %3269 = vmatprep.subr.mxu0 %v844
    %3270 = vmatpush1.msra.mxu0 %v843
    %3271 = vmatprep.subr.mxu0 %v836
    %3272 = vmatpush1.msra.mxu0 %v835
    %3273 = vmatprep.subr.mxu0 %v828
    %3274 = vmatpush1.msra.mxu0 %v827
    %3275 = vmatprep.subr.mxu0 %v820
    %3276 = vmatpush1.msra.mxu0 %v819
    %3277 = vmatprep.subr.mxu0 %v812
    %3278 = vmatpush1.msra.mxu0 %v811
    %3279 = vmatprep.subr.mxu0 %v804
    %3280 = vmatpush1.msra.mxu0 %v803
    %3281 = vmatprep.subr.mxu0 %v796
    %3282 = vmatpush1.msra.mxu0 %v795
    %3283 = vmatprep.subr.mxu0 %v788
    %3284 = vmatpush1.msra.mxu0 %v787
    %3285 = vmatprep.subr.mxu0 %v780
    %3286 = vmatpush1.msra.mxu0 %v779
    %3287 = vmatprep.subr.mxu0 %v772
    %3288 = vmatpush1.msra.mxu0 %v771
    %3289 = vmatprep.subr.mxu0 %v764
    %3290 = vmatpush1.msra.mxu0 %v763
    %3291 = vmatprep.subr.mxu0 %v1012
    %3292 = vmatpush2.msra.mxu0 %v1011
    %3293 = vmatprep.subr.mxu0 %v1004
    %3294 = vmatpush2.msra.mxu0 %v1003
    %3295 = vmatprep.subr.mxu0 %v996
    %3296 = vmatpush2.msra.mxu0 %v995
    %3297 = vmatprep.subr.mxu0 %v988
    %3298 = vmatpush2.msra.mxu0 %v987
    %3299 = vmatprep.subr.mxu0 %v980
    %3300 = vmatpush2.msra.mxu0 %v979
    %3301 = vmatprep.subr.mxu0 %v972
    %3302 = vmatpush2.msra.mxu0 %v971
    %3303 = vmatprep.subr.mxu0 %v964
    %3304 = vmatpush2.msra.mxu0 %v963
    %3305 = vmatprep.subr.mxu0 %v956
    %3306 = vmatpush2.msra.mxu0 %v955
    %3307 = vmatprep.subr.mxu0 %v948
    %3308 = vmatpush2.msra.mxu0 %v947
    %3309 = vmatprep.subr.mxu0 %v940
    %3310 = vmatpush2.msra.mxu0 %v939
    %3311 = vmatprep.subr.mxu0 %v932
    %3312 = vmatpush2.msra.mxu0 %v931
    %3313 = vmatprep.subr.mxu0 %v924
    %3314 = vmatpush2.msra.mxu0 %v923
    %3315 = vmatprep.subr.mxu0 %v916
    %3316 = vmatpush2.msra.mxu0 %v915
    %3317 = vmatprep.subr.mxu0 %v908
    %3318 = vmatpush2.msra.mxu0 %v907
    %3319 = vmatprep.subr.mxu0 %v900
    %3320 = vmatpush2.msra.mxu0 %v899
    %3321 = vmatprep.subr.mxu0 %v892
    %3322 = vmatpush2.msra.mxu0 %v891
    %3323 = vmatprep.mubr.f32.mxu0 %v3107
    %3324 = vmatmul.mubr.f32.gmra.mxu0 %v3106
    %v3325 = vpop.f32.mrf.mxu0
    %v3326 = vadd.f32 0.0, %v3325
    %v3327 = vpop.f32.mrf.mxu0
    %v3328 = vadd.f32 0.0, %v3327
    %3329 = vdwg.mxu0
    %3330 = vmatprep.subr.mxu0 %v886
    %3331 = vmatpush1.msra.mxu0 %v885
    %3332 = vmatprep.subr.mxu0 %v878
    %3333 = vmatpush1.msra.mxu0 %v877
    %3334 = vmatprep.subr.mxu0 %v870
    %3335 = vmatpush1.msra.mxu0 %v869
    %3336 = vmatprep.subr.mxu0 %v862
    %3337 = vmatpush1.msra.mxu0 %v861
    %3338 = vmatprep.subr.mxu0 %v854
    %3339 = vmatpush1.msra.mxu0 %v853
    %3340 = vmatprep.subr.mxu0 %v846
    %3341 = vmatpush1.msra.mxu0 %v845
    %3342 = vmatprep.subr.mxu0 %v838
    %3343 = vmatpush1.msra.mxu0 %v837
    %3344 = vmatprep.subr.mxu0 %v830
    %3345 = vmatpush1.msra.mxu0 %v829
    %3346 = vmatprep.subr.mxu0 %v822
    %3347 = vmatpush1.msra.mxu0 %v821
    %3348 = vmatprep.subr.mxu0 %v814
    %3349 = vmatpush1.msra.mxu0 %v813
    %3350 = vmatprep.subr.mxu0 %v806
    %3351 = vmatpush1.msra.mxu0 %v805
    %3352 = vmatprep.subr.mxu0 %v798
    %3353 = vmatpush1.msra.mxu0 %v797
    %3354 = vmatprep.subr.mxu0 %v790
    %3355 = vmatpush1.msra.mxu0 %v789
    %3356 = vmatprep.subr.mxu0 %v782
    %3357 = vmatpush1.msra.mxu0 %v781
    %3358 = vmatprep.subr.mxu0 %v774
    %3359 = vmatpush1.msra.mxu0 %v773
    %3360 = vmatprep.subr.mxu0 %v766
    %3361 = vmatpush1.msra.mxu0 %v765
    %3362 = vmatprep.subr.mxu0 %v1014
    %3363 = vmatpush2.msra.mxu0 %v1013
    %3364 = vmatprep.subr.mxu0 %v1006
    %3365 = vmatpush2.msra.mxu0 %v1005
    %3366 = vmatprep.subr.mxu0 %v998
    %3367 = vmatpush2.msra.mxu0 %v997
    %3368 = vmatprep.subr.mxu0 %v990
    %3369 = vmatpush2.msra.mxu0 %v989
    %3370 = vmatprep.subr.mxu0 %v982
    %3371 = vmatpush2.msra.mxu0 %v981
    %3372 = vmatprep.subr.mxu0 %v974
    %3373 = vmatpush2.msra.mxu0 %v973
    %3374 = vmatprep.subr.mxu0 %v966
    %3375 = vmatpush2.msra.mxu0 %v965
    %3376 = vmatprep.subr.mxu0 %v958
    %3377 = vmatpush2.msra.mxu0 %v957
    %3378 = vmatprep.subr.mxu0 %v950
    %3379 = vmatpush2.msra.mxu0 %v949
    %3380 = vmatprep.subr.mxu0 %v942
    %3381 = vmatpush2.msra.mxu0 %v941
    %3382 = vmatprep.subr.mxu0 %v934
    %3383 = vmatpush2.msra.mxu0 %v933
    %3384 = vmatprep.subr.mxu0 %v926
    %3385 = vmatpush2.msra.mxu0 %v925
    %3386 = vmatprep.subr.mxu0 %v918
    %3387 = vmatpush2.msra.mxu0 %v917
    %3388 = vmatprep.subr.mxu0 %v910
    %3389 = vmatpush2.msra.mxu0 %v909
    %3390 = vmatprep.subr.mxu0 %v902
    %3391 = vmatpush2.msra.mxu0 %v901
    %3392 = vmatprep.subr.mxu0 %v894
    %3393 = vmatpush2.msra.mxu0 %v893
    %3394 = vmatprep.mubr.f32.mxu0 %v3107
    %3395 = vmatmul.mubr.f32.gmra.mxu0 %v3106
    %v3396 = vpop.f32.mrf.mxu0
    %v3397 = vadd.f32 0.0, %v3396
    %v3398 = vpop.f32.mrf.mxu0
    %v3399 = vadd.f32 0.0, %v3398
    %3400 = vdwg.mxu0
    %v3401 = vadd.f32 %v3109, %v3184
    %v3402 = vadd.f32 %v3110, %v3186
    %v3403 = vadd.f32 %v3111, %v3255
    %v3404 = vadd.f32 %v3112, %v3257
    %v3405 = vadd.f32 %v3113, %v3326
    %v3406 = vadd.f32 %v3114, %v3328
    %v3407 = vadd.f32 %v3115, %v3397
    %v3408 = vadd.f32 %v3116, %v3399
    %v3409 = vxor.u32 %v3401, 2147483648
    %v3410 = vxor.u32 %v3402, 2147483648
    %v3411 = vmul.f32 %v3409, 1.442695
    %v3412 = vpow.pop %v3411
    %v3413 = vmul.f32 %v3410, 1.442695
    %v3414 = vpow.pop %v3413
    %v3415 = vadd.f32 %v3412, 1.0
    %v3416 = vadd.f32 %v3414, 1.0
    %v3417 = vrcp.pop %v3415
    %v3418 = vmul.f32 1.0, %v3417
    %v3419 = vrcp.pop %v3416
    %v3420 = vmul.f32 1.0, %v3419
    %v3421 = vxor.u32 %v3403, 2147483648
    %v3422 = vxor.u32 %v3404, 2147483648
    %v3423 = vmul.f32 %v3421, 1.442695
    %v3424 = vpow.pop %v3423
    %v3425 = vmul.f32 %v3422, 1.442695
    %v3426 = vpow.pop %v3425
    %v3427 = vadd.f32 %v3424, 1.0
    %v3428 = vadd.f32 %v3426, 1.0
    %v3429 = vrcp.pop %v3427
    %v3430 = vmul.f32 1.0, %v3429
    %v3431 = vrcp.pop %v3428
    %v3432 = vmul.f32 1.0, %v3431
    %v3433 = vtanh.pop %v3405
    %v3434 = vtanh.pop %v3406
    %v3435 = vxor.u32 %v3407, 2147483648
    %v3436 = vxor.u32 %v3408, 2147483648
    %v3437 = vmul.f32 %v3435, 1.442695
    %v3438 = vpow.pop %v3437
    %v3439 = vmul.f32 %v3436, 1.442695
    %v3440 = vpow.pop %v3439
    %v3441 = vadd.f32 %v3438, 1.0
    %v3442 = vadd.f32 %v3440, 1.0
    %v3443 = vrcp.pop %v3441
    %v3444 = vmul.f32 1.0, %v3443
    %v3445 = vrcp.pop %v3442
    %v3446 = vmul.f32 1.0, %v3445
    %v3447 = vmul.f32 %v3430, %v3102
    %v3448 = vmul.f32 %v3432, %v3103
    %v3449 = vmul.f32 %v3418, %v3433
    %v3450 = vmul.f32 %v3420, %v3434
    %v3451 = vadd.f32 %v3447, %v3449
    %v3452 = vadd.f32 %v3448, %v3450
    %v3453 = vtanh.pop %v3451
    %v3454 = vtanh.pop %v3452
    %v3455 = vmul.f32 %v3444, %v3453
    %v3456 = vmul.f32 %v3446, %v3454
    %s3457 = scalar_lea.vmem [#allocation2], 448
    %v3458 = vld [vmem:[%s3457] sm:$0xff]
    %v3459 = vld [vmem:[%s3457 + $0x8] sm:$0xff]
    %v3460 = vld [vmem:[%s3457 + $0x10] sm:$0xff]
    %v3461 = vld [vmem:[%s3457 + $0x18] sm:$0xff]
    %v3462 = vld [vmem:[%s3457 + $0x20] sm:$0xff]
    %v3463 = vld [vmem:[%s3457 + $0x28] sm:$0xff]
    %v3464 = vld [vmem:[%s3457 + $0x30] sm:$0xff]
    %v3465 = vld [vmem:[%s3457 + $0x38] sm:$0xff]
    %3466 = vmatprep.subr.mxu0 %v880
    %3467 = vmatpush1.msra.mxu0 %v879
    %3468 = vmatprep.subr.mxu0 %v872
    %3469 = vmatpush1.msra.mxu0 %v871
    %3470 = vmatprep.subr.mxu0 %v864
    %3471 = vmatpush1.msra.mxu0 %v863
    %3472 = vmatprep.subr.mxu0 %v856
    %3473 = vmatpush1.msra.mxu0 %v855
    %3474 = vmatprep.subr.mxu0 %v848
    %3475 = vmatpush1.msra.mxu0 %v847
    %3476 = vmatprep.subr.mxu0 %v840
    %3477 = vmatpush1.msra.mxu0 %v839
    %3478 = vmatprep.subr.mxu0 %v832
    %3479 = vmatpush1.msra.mxu0 %v831
    %3480 = vmatprep.subr.mxu0 %v824
    %3481 = vmatpush1.msra.mxu0 %v823
    %3482 = vmatprep.subr.mxu0 %v816
    %3483 = vmatpush1.msra.mxu0 %v815
    %3484 = vmatprep.subr.mxu0 %v808
    %3485 = vmatpush1.msra.mxu0 %v807
    %3486 = vmatprep.subr.mxu0 %v800
    %3487 = vmatpush1.msra.mxu0 %v799
    %3488 = vmatprep.subr.mxu0 %v792
    %3489 = vmatpush1.msra.mxu0 %v791
    %3490 = vmatprep.subr.mxu0 %v784
    %3491 = vmatpush1.msra.mxu0 %v783
    %3492 = vmatprep.subr.mxu0 %v776
    %3493 = vmatpush1.msra.mxu0 %v775
    %3494 = vmatprep.subr.mxu0 %v768
    %3495 = vmatpush1.msra.mxu0 %v767
    %3496 = vmatprep.subr.mxu0 %v760
    %3497 = vmatpush1.msra.mxu0 %v759
    %3498 = vmatprep.subr.mxu0 %v1008
    %3499 = vmatpush2.msra.mxu0 %v1007
    %3500 = vmatprep.subr.mxu0 %v1000
    %3501 = vmatpush2.msra.mxu0 %v999
    %3502 = vmatprep.subr.mxu0 %v992
    %3503 = vmatpush2.msra.mxu0 %v991
    %3504 = vmatprep.subr.mxu0 %v984
    %3505 = vmatpush2.msra.mxu0 %v983
    %3506 = vmatprep.subr.mxu0 %v976
    %3507 = vmatpush2.msra.mxu0 %v975
    %3508 = vmatprep.subr.mxu0 %v968
    %3509 = vmatpush2.msra.mxu0 %v967
    %3510 = vmatprep.subr.mxu0 %v960
    %3511 = vmatpush2.msra.mxu0 %v959
    %3512 = vmatprep.subr.mxu0 %v952
    %3513 = vmatpush2.msra.mxu0 %v951
    %3514 = vmatprep.subr.mxu0 %v944
    %3515 = vmatpush2.msra.mxu0 %v943
    %3516 = vmatprep.subr.mxu0 %v936
    %3517 = vmatpush2.msra.mxu0 %v935
    %3518 = vmatprep.subr.mxu0 %v928
    %3519 = vmatpush2.msra.mxu0 %v927
    %3520 = vmatprep.subr.mxu0 %v920
    %3521 = vmatpush2.msra.mxu0 %v919
    %3522 = vmatprep.subr.mxu0 %v912
    %3523 = vmatpush2.msra.mxu0 %v911
    %3524 = vmatprep.subr.mxu0 %v904
    %3525 = vmatpush2.msra.mxu0 %v903
    %3526 = vmatprep.subr.mxu0 %v896
    %3527 = vmatpush2.msra.mxu0 %v895
    %3528 = vmatprep.subr.mxu0 %v888
    %3529 = vmatpush2.msra.mxu0 %v887
    %3530 = vmatprep.mubr.f32.mxu0 %v3456
    %3531 = vmatmul.mubr.f32.gmra.mxu0 %v3455
    %v3532 = vpop.f32.mrf.mxu0
    %v3533 = vadd.f32 0.0, %v3532
    %v3534 = vpop.f32.mrf.mxu0
    %v3535 = vadd.f32 0.0, %v3534
    %3536 = vdwg.mxu0
    %3537 = vmatprep.subr.mxu0 %v882
    %3538 = vmatpush1.msra.mxu0 %v881
    %3539 = vmatprep.subr.mxu0 %v874
    %3540 = vmatpush1.msra.mxu0 %v873
    %3541 = vmatprep.subr.mxu0 %v866
    %3542 = vmatpush1.msra.mxu0 %v865
    %3543 = vmatprep.subr.mxu0 %v858
    %3544 = vmatpush1.msra.mxu0 %v857
    %3545 = vmatprep.subr.mxu0 %v850
    %3546 = vmatpush1.msra.mxu0 %v849
    %3547 = vmatprep.subr.mxu0 %v842
    %3548 = vmatpush1.msra.mxu0 %v841
    %3549 = vmatprep.subr.mxu0 %v834
    %3550 = vmatpush1.msra.mxu0 %v833
    %3551 = vmatprep.subr.mxu0 %v826
    %3552 = vmatpush1.msra.mxu0 %v825
    %3553 = vmatprep.subr.mxu0 %v818
    %3554 = vmatpush1.msra.mxu0 %v817
    %3555 = vmatprep.subr.mxu0 %v810
    %3556 = vmatpush1.msra.mxu0 %v809
    %3557 = vmatprep.subr.mxu0 %v802
    %3558 = vmatpush1.msra.mxu0 %v801
    %3559 = vmatprep.subr.mxu0 %v794
    %3560 = vmatpush1.msra.mxu0 %v793
    %3561 = vmatprep.subr.mxu0 %v786
    %3562 = vmatpush1.msra.mxu0 %v785
    %3563 = vmatprep.subr.mxu0 %v778
    %3564 = vmatpush1.msra.mxu0 %v777
    %3565 = vmatprep.subr.mxu0 %v770
    %3566 = vmatpush1.msra.mxu0 %v769
    %3567 = vmatprep.subr.mxu0 %v762
    %3568 = vmatpush1.msra.mxu0 %v761
    %3569 = vmatprep.subr.mxu0 %v1010
    %3570 = vmatpush2.msra.mxu0 %v1009
    %3571 = vmatprep.subr.mxu0 %v1002
    %3572 = vmatpush2.msra.mxu0 %v1001
    %3573 = vmatprep.subr.mxu0 %v994
    %3574 = vmatpush2.msra.mxu0 %v993
    %3575 = vmatprep.subr.mxu0 %v986
    %3576 = vmatpush2.msra.mxu0 %v985
    %3577 = vmatprep.subr.mxu0 %v978
    %3578 = vmatpush2.msra.mxu0 %v977
    %3579 = vmatprep.subr.mxu0 %v970
    %3580 = vmatpush2.msra.mxu0 %v969
    %3581 = vmatprep.subr.mxu0 %v962
    %3582 = vmatpush2.msra.mxu0 %v961
    %3583 = vmatprep.subr.mxu0 %v954
    %3584 = vmatpush2.msra.mxu0 %v953
    %3585 = vmatprep.subr.mxu0 %v946
    %3586 = vmatpush2.msra.mxu0 %v945
    %3587 = vmatprep.subr.mxu0 %v938
    %3588 = vmatpush2.msra.mxu0 %v937
    %3589 = vmatprep.subr.mxu0 %v930
    %3590 = vmatpush2.msra.mxu0 %v929
    %3591 = vmatprep.subr.mxu0 %v922
    %3592 = vmatpush2.msra.mxu0 %v921
    %3593 = vmatprep.subr.mxu0 %v914
    %3594 = vmatpush2.msra.mxu0 %v913
    %3595 = vmatprep.subr.mxu0 %v906
    %3596 = vmatpush2.msra.mxu0 %v905
    %3597 = vmatprep.subr.mxu0 %v898
    %3598 = vmatpush2.msra.mxu0 %v897
    %3599 = vmatprep.subr.mxu0 %v890
    %3600 = vmatpush2.msra.mxu0 %v889
    %3601 = vmatprep.mubr.f32.mxu0 %v3456
    %3602 = vmatmul.mubr.f32.gmra.mxu0 %v3455
    %v3603 = vpop.f32.mrf.mxu0
    %v3604 = vadd.f32 0.0, %v3603
    %v3605 = vpop.f32.mrf.mxu0
    %v3606 = vadd.f32 0.0, %v3605
    %3607 = vdwg.mxu0
    %3608 = vmatprep.subr.mxu0 %v884
    %3609 = vmatpush1.msra.mxu0 %v883
    %3610 = vmatprep.subr.mxu0 %v876
    %3611 = vmatpush1.msra.mxu0 %v875
    %3612 = vmatprep.subr.mxu0 %v868
    %3613 = vmatpush1.msra.mxu0 %v867
    %3614 = vmatprep.subr.mxu0 %v860
    %3615 = vmatpush1.msra.mxu0 %v859
    %3616 = vmatprep.subr.mxu0 %v852
    %3617 = vmatpush1.msra.mxu0 %v851
    %3618 = vmatprep.subr.mxu0 %v844
    %3619 = vmatpush1.msra.mxu0 %v843
    %3620 = vmatprep.subr.mxu0 %v836
    %3621 = vmatpush1.msra.mxu0 %v835
    %3622 = vmatprep.subr.mxu0 %v828
    %3623 = vmatpush1.msra.mxu0 %v827
    %3624 = vmatprep.subr.mxu0 %v820
    %3625 = vmatpush1.msra.mxu0 %v819
    %3626 = vmatprep.subr.mxu0 %v812
    %3627 = vmatpush1.msra.mxu0 %v811
    %3628 = vmatprep.subr.mxu0 %v804
    %3629 = vmatpush1.msra.mxu0 %v803
    %3630 = vmatprep.subr.mxu0 %v796
    %3631 = vmatpush1.msra.mxu0 %v795
    %3632 = vmatprep.subr.mxu0 %v788
    %3633 = vmatpush1.msra.mxu0 %v787
    %3634 = vmatprep.subr.mxu0 %v780
    %3635 = vmatpush1.msra.mxu0 %v779
    %3636 = vmatprep.subr.mxu0 %v772
    %3637 = vmatpush1.msra.mxu0 %v771
    %3638 = vmatprep.subr.mxu0 %v764
    %3639 = vmatpush1.msra.mxu0 %v763
    %3640 = vmatprep.subr.mxu0 %v1012
    %3641 = vmatpush2.msra.mxu0 %v1011
    %3642 = vmatprep.subr.mxu0 %v1004
    %3643 = vmatpush2.msra.mxu0 %v1003
    %3644 = vmatprep.subr.mxu0 %v996
    %3645 = vmatpush2.msra.mxu0 %v995
    %3646 = vmatprep.subr.mxu0 %v988
    %3647 = vmatpush2.msra.mxu0 %v987
    %3648 = vmatprep.subr.mxu0 %v980
    %3649 = vmatpush2.msra.mxu0 %v979
    %3650 = vmatprep.subr.mxu0 %v972
    %3651 = vmatpush2.msra.mxu0 %v971
    %3652 = vmatprep.subr.mxu0 %v964
    %3653 = vmatpush2.msra.mxu0 %v963
    %3654 = vmatprep.subr.mxu0 %v956
    %3655 = vmatpush2.msra.mxu0 %v955
    %3656 = vmatprep.subr.mxu0 %v948
    %3657 = vmatpush2.msra.mxu0 %v947
    %3658 = vmatprep.subr.mxu0 %v940
    %3659 = vmatpush2.msra.mxu0 %v939
    %3660 = vmatprep.subr.mxu0 %v932
    %3661 = vmatpush2.msra.mxu0 %v931
    %3662 = vmatprep.subr.mxu0 %v924
    %3663 = vmatpush2.msra.mxu0 %v923
    %3664 = vmatprep.subr.mxu0 %v916
    %3665 = vmatpush2.msra.mxu0 %v915
    %3666 = vmatprep.subr.mxu0 %v908
    %3667 = vmatpush2.msra.mxu0 %v907
    %3668 = vmatprep.subr.mxu0 %v900
    %3669 = vmatpush2.msra.mxu0 %v899
    %3670 = vmatprep.subr.mxu0 %v892
    %3671 = vmatpush2.msra.mxu0 %v891
    %3672 = vmatprep.mubr.f32.mxu0 %v3456
    %3673 = vmatmul.mubr.f32.gmra.mxu0 %v3455
    %v3674 = vpop.f32.mrf.mxu0
    %v3675 = vadd.f32 0.0, %v3674
    %v3676 = vpop.f32.mrf.mxu0
    %v3677 = vadd.f32 0.0, %v3676
    %3678 = vdwg.mxu0
    %3679 = vmatprep.subr.mxu0 %v886
    %3680 = vmatpush1.msra.mxu0 %v885
    %3681 = vmatprep.subr.mxu0 %v878
    %3682 = vmatpush1.msra.mxu0 %v877
    %3683 = vmatprep.subr.mxu0 %v870
    %3684 = vmatpush1.msra.mxu0 %v869
    %3685 = vmatprep.subr.mxu0 %v862
    %3686 = vmatpush1.msra.mxu0 %v861
    %3687 = vmatprep.subr.mxu0 %v854
    %3688 = vmatpush1.msra.mxu0 %v853
    %3689 = vmatprep.subr.mxu0 %v846
    %3690 = vmatpush1.msra.mxu0 %v845
    %3691 = vmatprep.subr.mxu0 %v838
    %3692 = vmatpush1.msra.mxu0 %v837
    %3693 = vmatprep.subr.mxu0 %v830
    %3694 = vmatpush1.msra.mxu0 %v829
    %3695 = vmatprep.subr.mxu0 %v822
    %3696 = vmatpush1.msra.mxu0 %v821
    %3697 = vmatprep.subr.mxu0 %v814
    %3698 = vmatpush1.msra.mxu0 %v813
    %3699 = vmatprep.subr.mxu0 %v806
    %3700 = vmatpush1.msra.mxu0 %v805
    %3701 = vmatprep.subr.mxu0 %v798
    %3702 = vmatpush1.msra.mxu0 %v797
    %3703 = vmatprep.subr.mxu0 %v790
    %3704 = vmatpush1.msra.mxu0 %v789
    %3705 = vmatprep.subr.mxu0 %v782
    %3706 = vmatpush1.msra.mxu0 %v781
    %3707 = vmatprep.subr.mxu0 %v774
    %3708 = vmatpush1.msra.mxu0 %v773
    %3709 = vmatprep.subr.mxu0 %v766
    %3710 = vmatpush1.msra.mxu0 %v765
    %3711 = vmatprep.subr.mxu0 %v1014
    %3712 = vmatpush2.msra.mxu0 %v1013
    %3713 = vmatprep.subr.mxu0 %v1006
    %3714 = vmatpush2.msra.mxu0 %v1005
    %3715 = vmatprep.subr.mxu0 %v998
    %3716 = vmatpush2.msra.mxu0 %v997
    %3717 = vmatprep.subr.mxu0 %v990
    %3718 = vmatpush2.msra.mxu0 %v989
    %3719 = vmatprep.subr.mxu0 %v982
    %3720 = vmatpush2.msra.mxu0 %v981
    %3721 = vmatprep.subr.mxu0 %v974
    %3722 = vmatpush2.msra.mxu0 %v973
    %3723 = vmatprep.subr.mxu0 %v966
    %3724 = vmatpush2.msra.mxu0 %v965
    %3725 = vmatprep.subr.mxu0 %v958
    %3726 = vmatpush2.msra.mxu0 %v957
    %3727 = vmatprep.subr.mxu0 %v950
    %3728 = vmatpush2.msra.mxu0 %v949
    %3729 = vmatprep.subr.mxu0 %v942
    %3730 = vmatpush2.msra.mxu0 %v941
    %3731 = vmatprep.subr.mxu0 %v934
    %3732 = vmatpush2.msra.mxu0 %v933
    %3733 = vmatprep.subr.mxu0 %v926
    %3734 = vmatpush2.msra.mxu0 %v925
    %3735 = vmatprep.subr.mxu0 %v918
    %3736 = vmatpush2.msra.mxu0 %v917
    %3737 = vmatprep.subr.mxu0 %v910
    %3738 = vmatpush2.msra.mxu0 %v909
    %3739 = vmatprep.subr.mxu0 %v902
    %3740 = vmatpush2.msra.mxu0 %v901
    %3741 = vmatprep.subr.mxu0 %v894
    %3742 = vmatpush2.msra.mxu0 %v893
    %3743 = vmatprep.mubr.f32.mxu0 %v3456
    %3744 = vmatmul.mubr.f32.gmra.mxu0 %v3455
    %v3745 = vpop.f32.mrf.mxu0
    %v3746 = vadd.f32 0.0, %v3745
    %v3747 = vpop.f32.mrf.mxu0
    %v3748 = vadd.f32 0.0, %v3747
    %3749 = vdwg.mxu0
    %v3750 = vadd.f32 %v3458, %v3533
    %v3751 = vadd.f32 %v3459, %v3535
    %v3752 = vadd.f32 %v3460, %v3604
    %v3753 = vadd.f32 %v3461, %v3606
    %v3754 = vadd.f32 %v3462, %v3675
    %v3755 = vadd.f32 %v3463, %v3677
    %v3756 = vadd.f32 %v3464, %v3746
    %v3757 = vadd.f32 %v3465, %v3748
    %v3758 = vxor.u32 %v3750, 2147483648
    %v3759 = vxor.u32 %v3751, 2147483648
    %v3760 = vmul.f32 %v3758, 1.442695
    %v3761 = vpow.pop %v3760
    %v3762 = vmul.f32 %v3759, 1.442695
    %v3763 = vpow.pop %v3762
    %v3764 = vadd.f32 %v3761, 1.0
    %v3765 = vadd.f32 %v3763, 1.0
    %v3766 = vrcp.pop %v3764
    %v3767 = vmul.f32 1.0, %v3766
    %v3768 = vrcp.pop %v3765
    %v3769 = vmul.f32 1.0, %v3768
    %v3770 = vxor.u32 %v3752, 2147483648
    %v3771 = vxor.u32 %v3753, 2147483648
    %v3772 = vmul.f32 %v3770, 1.442695
    %v3773 = vpow.pop %v3772
    %v3774 = vmul.f32 %v3771, 1.442695
    %v3775 = vpow.pop %v3774
    %v3776 = vadd.f32 %v3773, 1.0
    %v3777 = vadd.f32 %v3775, 1.0
    %v3778 = vrcp.pop %v3776
    %v3779 = vmul.f32 1.0, %v3778
    %v3780 = vrcp.pop %v3777
    %v3781 = vmul.f32 1.0, %v3780
    %v3782 = vtanh.pop %v3754
    %v3783 = vtanh.pop %v3755
    %v3784 = vxor.u32 %v3756, 2147483648
    %v3785 = vxor.u32 %v3757, 2147483648
    %v3786 = vmul.f32 %v3784, 1.442695
    %v3787 = vpow.pop %v3786
    %v3788 = vmul.f32 %v3785, 1.442695
    %v3789 = vpow.pop %v3788
    %v3790 = vadd.f32 %v3787, 1.0
    %v3791 = vadd.f32 %v3789, 1.0
    %v3792 = vrcp.pop %v3790
    %v3793 = vmul.f32 1.0, %v3792
    %v3794 = vrcp.pop %v3791
    %v3795 = vmul.f32 1.0, %v3794
    %v3796 = vmul.f32 %v3779, %v3451
    %v3797 = vmul.f32 %v3781, %v3452
    %v3798 = vmul.f32 %v3767, %v3782
    %v3799 = vmul.f32 %v3769, %v3783
    %v3800 = vadd.f32 %v3796, %v3798
    %v3801 = vadd.f32 %v3797, %v3799
    %v3802 = vtanh.pop %v3800
    %v3803 = vtanh.pop %v3801
    %v3804 = vmul.f32 %v3793, %v3802
    %v3805 = vmul.f32 %v3795, %v3803
    %v3806 = vld [vmem:[#allocation8] sm:$0xff]
    %v3807 = vld [vmem:[#allocation8 + $0x8] sm:$0xff]
    %v3808 = vld [vmem:[#allocation8 + $0x10] sm:$0xff]
    %v3809 = vld [vmem:[#allocation8 + $0x18] sm:$0xff]
    %v3810 = vld [vmem:[#allocation8 + $0x20] sm:$0xff]
    %v3811 = vld [vmem:[#allocation8 + $0x28] sm:$0xff]
    %v3812 = vld [vmem:[#allocation8 + $0x30] sm:$0xff]
    %v3813 = vld [vmem:[#allocation8 + $0x38] sm:$0xff]
    %v3814 = vld [vmem:[#allocation8 + $0x40] sm:$0xff]
    %v3815 = vld [vmem:[#allocation8 + $0x48] sm:$0xff]
    %v3816 = vld [vmem:[#allocation8 + $0x50] sm:$0xff]
    %v3817 = vld [vmem:[#allocation8 + $0x58] sm:$0xff]
    %v3818 = vld [vmem:[#allocation8 + $0x60] sm:$0xff]
    %v3819 = vld [vmem:[#allocation8 + $0x68] sm:$0xff]
    %v3820 = vld [vmem:[#allocation8 + $0x70] sm:$0xff]
    %v3821 = vld [vmem:[#allocation8 + $0x78] sm:$0xff]
    %v3822 = vld [vmem:[#allocation8 + $0x80] sm:$0xff]
    %v3823 = vld [vmem:[#allocation8 + $0x88] sm:$0xff]
    %v3824 = vld [vmem:[#allocation8 + $0x90] sm:$0xff]
    %v3825 = vld [vmem:[#allocation8 + $0x98] sm:$0xff]
    %v3826 = vld [vmem:[#allocation8 + $0xa0] sm:$0xff]
    %v3827 = vld [vmem:[#allocation8 + $0xa8] sm:$0xff]
    %v3828 = vld [vmem:[#allocation8 + $0xb0] sm:$0xff]
    %v3829 = vld [vmem:[#allocation8 + $0xb8] sm:$0xff]
    %v3830 = vld [vmem:[#allocation8 + $0xc0] sm:$0xff]
    %v3831 = vld [vmem:[#allocation8 + $0xc8] sm:$0xff]
    %v3832 = vld [vmem:[#allocation8 + $0xd0] sm:$0xff]
    %v3833 = vld [vmem:[#allocation8 + $0xd8] sm:$0xff]
    %v3834 = vld [vmem:[#allocation8 + $0xe0] sm:$0xff]
    %v3835 = vld [vmem:[#allocation8 + $0xe8] sm:$0xff]
    %v3836 = vld [vmem:[#allocation8 + $0xf0] sm:$0xff]
    %v3837 = vld [vmem:[#allocation8 + $0xf8] sm:$0xff]
    %v3838 = vld [vmem:[#allocation9] sm:$0x1]
    %v3840 = vlaneseq
    %v3841 = vshrl.u32 %v3840, 7
    %v3842 = vsub.s32 0, %v3841
    %v3843 = vrot.slane %v3838, %v3842
    %3845 = vmatprep.subr.mxu0 0.0
    %3846 = vmatpush1.msra.mxu0 %v3821
    %3847 = vmatprep.subr.mxu0 0.0
    %3848 = vmatpush1.msra.mxu0 %v3820
    %3849 = vmatprep.subr.mxu0 0.0
    %3850 = vmatpush1.msra.mxu0 %v3819
    %3851 = vmatprep.subr.mxu0 0.0
    %3852 = vmatpush1.msra.mxu0 %v3818
    %3853 = vmatprep.subr.mxu0 0.0
    %3854 = vmatpush1.msra.mxu0 %v3817
    %3855 = vmatprep.subr.mxu0 0.0
    %3856 = vmatpush1.msra.mxu0 %v3816
    %3857 = vmatprep.subr.mxu0 0.0
    %3858 = vmatpush1.msra.mxu0 %v3815
    %3859 = vmatprep.subr.mxu0 0.0
    %3860 = vmatpush1.msra.mxu0 %v3814
    %3861 = vmatprep.subr.mxu0 0.0
    %3862 = vmatpush1.msra.mxu0 %v3813
    %3863 = vmatprep.subr.mxu0 0.0
    %3864 = vmatpush1.msra.mxu0 %v3812
    %3865 = vmatprep.subr.mxu0 0.0
    %3866 = vmatpush1.msra.mxu0 %v3811
    %3867 = vmatprep.subr.mxu0 0.0
    %3868 = vmatpush1.msra.mxu0 %v3810
    %3869 = vmatprep.subr.mxu0 0.0
    %3870 = vmatpush1.msra.mxu0 %v3809
    %3871 = vmatprep.subr.mxu0 0.0
    %3872 = vmatpush1.msra.mxu0 %v3808
    %3873 = vmatprep.subr.mxu0 0.0
    %3874 = vmatpush1.msra.mxu0 %v3807
    %3875 = vmatprep.subr.mxu0 0.0
    %3876 = vmatpush1.msra.mxu0 %v3806
    %3877 = vmatprep.subr.mxu0 0.0
    %3878 = vmatpush2.msra.mxu0 %v3837
    %3879 = vmatprep.subr.mxu0 0.0
    %3880 = vmatpush2.msra.mxu0 %v3836
    %3881 = vmatprep.subr.mxu0 0.0
    %3882 = vmatpush2.msra.mxu0 %v3835
    %3883 = vmatprep.subr.mxu0 0.0
    %3884 = vmatpush2.msra.mxu0 %v3834
    %3885 = vmatprep.subr.mxu0 0.0
    %3886 = vmatpush2.msra.mxu0 %v3833
    %3887 = vmatprep.subr.mxu0 0.0
    %3888 = vmatpush2.msra.mxu0 %v3832
    %3889 = vmatprep.subr.mxu0 0.0
    %3890 = vmatpush2.msra.mxu0 %v3831
    %3891 = vmatprep.subr.mxu0 0.0
    %3892 = vmatpush2.msra.mxu0 %v3830
    %3893 = vmatprep.subr.mxu0 0.0
    %3894 = vmatpush2.msra.mxu0 %v3829
    %3895 = vmatprep.subr.mxu0 0.0
    %3896 = vmatpush2.msra.mxu0 %v3828
    %3897 = vmatprep.subr.mxu0 0.0
    %3898 = vmatpush2.msra.mxu0 %v3827
    %3899 = vmatprep.subr.mxu0 0.0
    %3900 = vmatpush2.msra.mxu0 %v3826
    %3901 = vmatprep.subr.mxu0 0.0
    %3902 = vmatpush2.msra.mxu0 %v3825
    %3903 = vmatprep.subr.mxu0 0.0
    %3904 = vmatpush2.msra.mxu0 %v3824
    %3905 = vmatprep.subr.mxu0 0.0
    %3906 = vmatpush2.msra.mxu0 %v3823
    %3907 = vmatprep.subr.mxu0 0.0
    %3908 = vmatpush2.msra.mxu0 %v3822
    %3909 = vmatprep.mubr.f32.mxu0 %v3805
    %3910 = vmatmul.mubr.f32.gmra.mxu0 %v3804
    %v3911 = vpop.f32.mrf.mxu0
    %v3912 = vadd.f32 %v3843, %v3911
    %v3913 = vpop.f32.mrf.mxu0
    %3914 = vdwg.mxu0
    %v3915 = vmax.f32 %v3912, 0.0
    %v3916 = vld [vmem:[%s6] sm:$0xff]
    %v3917 = vld [vmem:[%s6 + $0x8] sm:$0xff]
    %v3918 = vld [vmem:[%s6 + $0x10] sm:$0xff]
    %v3919 = vld [vmem:[%s6 + $0x18] sm:$0xff]
    %v3920 = vld [vmem:[%s6 + $0x20] sm:$0xff]
    %v3921 = vld [vmem:[%s6 + $0x28] sm:$0xff]
    %v3922 = vld [vmem:[%s6 + $0x30] sm:$0xff]
    %v3923 = vld [vmem:[%s6 + $0x38] sm:$0xff]
    %v3924 = vld [vmem:[%s6 + $0x40] sm:$0xff]
    %v3925 = vld [vmem:[%s6 + $0x48] sm:$0xff]
    %v3926 = vld [vmem:[%s6 + $0x50] sm:$0xff]
    %v3927 = vld [vmem:[%s6 + $0x58] sm:$0xff]
    %v3928 = vld [vmem:[%s6 + $0x60] sm:$0xff]
    %v3929 = vld [vmem:[%s6 + $0x68] sm:$0xff]
    %v3930 = vld [vmem:[%s6 + $0x70] sm:$0xff]
    %v3931 = vld [vmem:[%s6 + $0x78] sm:$0xff]
    %v3932 = vld [vmem:[#allocation11] sm:$0x1]
    %v3934 = vlaneseq
    %v3935 = vshrl.u32 %v3934, 7
    %v3936 = vsub.s32 0, %v3935
    %v3937 = vrot.slane %v3932, %v3936
    %3939 = vmatprep.subr.mxu0 0.0
    %3940 = vmatpush1.msra.mxu0 %v3931
    %3941 = vmatprep.subr.mxu0 0.0
    %3942 = vmatpush1.msra.mxu0 %v3930
    %3943 = vmatprep.subr.mxu0 0.0
    %3944 = vmatpush1.msra.mxu0 %v3929
    %3945 = vmatprep.subr.mxu0 0.0
    %3946 = vmatpush1.msra.mxu0 %v3928
    %3947 = vmatprep.subr.mxu0 0.0
    %3948 = vmatpush1.msra.mxu0 %v3927
    %3949 = vmatprep.subr.mxu0 0.0
    %3950 = vmatpush1.msra.mxu0 %v3926
    %3951 = vmatprep.subr.mxu0 0.0
    %3952 = vmatpush1.msra.mxu0 %v3925
    %3953 = vmatprep.subr.mxu0 0.0
    %3954 = vmatpush1.msra.mxu0 %v3924
    %3955 = vmatprep.subr.mxu0 0.0
    %3956 = vmatpush1.msra.mxu0 %v3923
    %3957 = vmatprep.subr.mxu0 0.0
    %3958 = vmatpush1.msra.mxu0 %v3922
    %3959 = vmatprep.subr.mxu0 0.0
    %3960 = vmatpush1.msra.mxu0 %v3921
    %3961 = vmatprep.subr.mxu0 0.0
    %3962 = vmatpush1.msra.mxu0 %v3920
    %3963 = vmatprep.subr.mxu0 0.0
    %3964 = vmatpush1.msra.mxu0 %v3919
    %3965 = vmatprep.subr.mxu0 0.0
    %3966 = vmatpush1.msra.mxu0 %v3918
    %3967 = vmatprep.subr.mxu0 0.0
    %3968 = vmatpush1.msra.mxu0 %v3917
    %3969 = vmatprep.subr.mxu0 0.0
    %3970 = vmatpush1.msra.mxu0 %v3916
    %3971 = vmatprep.subr.mxu0 0.0
    %3972 = vmatpush2.msra.mxu0 0.0
    %3973 = vmatprep.subr.mxu0 0.0
    %3974 = vmatpush2.msra.mxu0 0.0
    %3975 = vmatprep.subr.mxu0 0.0
    %3976 = vmatpush2.msra.mxu0 0.0
    %3977 = vmatprep.subr.mxu0 0.0
    %3978 = vmatpush2.msra.mxu0 0.0
    %3979 = vmatprep.subr.mxu0 0.0
    %3980 = vmatpush2.msra.mxu0 0.0
    %3981 = vmatprep.subr.mxu0 0.0
    %3982 = vmatpush2.msra.mxu0 0.0
    %3983 = vmatprep.subr.mxu0 0.0
    %3984 = vmatpush2.msra.mxu0 0.0
    %3985 = vmatprep.subr.mxu0 0.0
    %3986 = vmatpush2.msra.mxu0 0.0
    %3987 = vmatprep.subr.mxu0 0.0
    %3988 = vmatpush2.msra.mxu0 0.0
    %3989 = vmatprep.subr.mxu0 0.0
    %3990 = vmatpush2.msra.mxu0 0.0
    %3991 = vmatprep.subr.mxu0 0.0
    %3992 = vmatpush2.msra.mxu0 0.0
    %3993 = vmatprep.subr.mxu0 0.0
    %3994 = vmatpush2.msra.mxu0 0.0
    %3995 = vmatprep.subr.mxu0 0.0
    %3996 = vmatpush2.msra.mxu0 0.0
    %3997 = vmatprep.subr.mxu0 0.0
    %3998 = vmatpush2.msra.mxu0 0.0
    %3999 = vmatprep.subr.mxu0 0.0
    %4000 = vmatpush2.msra.mxu0 0.0
    %4001 = vmatprep.subr.mxu0 0.0
    %4002 = vmatpush2.msra.mxu0 0.0
    %4003 = vmatprep.mubr.f32.mxu0 0.0
    %4004 = vmatmul.mubr.f32.gmra.mxu0 %v3915
    %v4005 = vpop.f32.mrf.mxu0
    %v4006 = vadd.f32 %v3937, %v4005
    %v4007 = vpop.f32.mrf.mxu0
    %4008 = vdwg.mxu0
    %v4009 = vmax.f32 %v4006, 0.0
    %v4010 = vld [vmem:[%s8] sm:$0xff]
    %v4011 = vld [vmem:[%s8 + $0x8] sm:$0xff]
    %v4012 = vld [vmem:[%s8 + $0x10] sm:$0xff]
    %v4013 = vld [vmem:[%s8 + $0x18] sm:$0xff]
    %v4014 = vld [vmem:[%s8 + $0x20] sm:$0xff]
    %v4015 = vld [vmem:[%s8 + $0x28] sm:$0xff]
    %v4016 = vld [vmem:[%s8 + $0x30] sm:$0xff]
    %v4017 = vld [vmem:[%s8 + $0x38] sm:$0xff]
    %v4018 = vld [vmem:[#allocation12] sm:$0x1]
    %v4020 = vlaneseq
    %v4021 = vshrl.u32 %v4020, 7
    %v4022 = vsub.s32 0, %v4021
    %v4023 = vrot.slane %v4018, %v4022
    %vm4025 = vcmask 523264
    %v4027 = vsel %vm4025, %v4009, 0
    %4029 = vmatprep.subr.mxu0 0.0
    %4030 = vmatpush1.msra.mxu0 0.0
    %4031 = vmatprep.subr.mxu0 0.0
    %4032 = vmatpush1.msra.mxu0 0.0
    %4033 = vmatprep.subr.mxu0 0.0
    %4034 = vmatpush1.msra.mxu0 0.0
    %4035 = vmatprep.subr.mxu0 0.0
    %4036 = vmatpush1.msra.mxu0 0.0
    %4037 = vmatprep.subr.mxu0 0.0
    %4038 = vmatpush1.msra.mxu0 0.0
    %4039 = vmatprep.subr.mxu0 0.0
    %4040 = vmatpush1.msra.mxu0 0.0
    %4041 = vmatprep.subr.mxu0 0.0
    %4042 = vmatpush1.msra.mxu0 0.0
    %4043 = vmatprep.subr.mxu0 0.0
    %4044 = vmatpush1.msra.mxu0 0.0
    %4045 = vmatprep.subr.mxu0 0.0
    %4046 = vmatpush1.msra.mxu0 %v4017
    %4047 = vmatprep.subr.mxu0 0.0
    %4048 = vmatpush1.msra.mxu0 %v4016
    %4049 = vmatprep.subr.mxu0 0.0
    %4050 = vmatpush1.msra.mxu0 %v4015
    %4051 = vmatprep.subr.mxu0 0.0
    %4052 = vmatpush1.msra.mxu0 %v4014
    %4053 = vmatprep.subr.mxu0 0.0
    %4054 = vmatpush1.msra.mxu0 %v4013
    %4055 = vmatprep.subr.mxu0 0.0
    %4056 = vmatpush1.msra.mxu0 %v4012
    %4057 = vmatprep.subr.mxu0 0.0
    %4058 = vmatpush1.msra.mxu0 %v4011
    %4059 = vmatprep.subr.mxu0 0.0
    %4060 = vmatpush1.msra.mxu0 %v4010
    %4061 = vmatprep.subr.mxu0 0.0
    %4062 = vmatpush2.msra.mxu0 0.0
    %4063 = vmatprep.subr.mxu0 0.0
    %4064 = vmatpush2.msra.mxu0 0.0
    %4065 = vmatprep.subr.mxu0 0.0
    %4066 = vmatpush2.msra.mxu0 0.0
    %4067 = vmatprep.subr.mxu0 0.0
    %4068 = vmatpush2.msra.mxu0 0.0
    %4069 = vmatprep.subr.mxu0 0.0
    %4070 = vmatpush2.msra.mxu0 0.0
    %4071 = vmatprep.subr.mxu0 0.0
    %4072 = vmatpush2.msra.mxu0 0.0
    %4073 = vmatprep.subr.mxu0 0.0
    %4074 = vmatpush2.msra.mxu0 0.0
    %4075 = vmatprep.subr.mxu0 0.0
    %4076 = vmatpush2.msra.mxu0 0.0
    %4077 = vmatprep.subr.mxu0 0.0
    %4078 = vmatpush2.msra.mxu0 0.0
    %4079 = vmatprep.subr.mxu0 0.0
    %4080 = vmatpush2.msra.mxu0 0.0
    %4081 = vmatprep.subr.mxu0 0.0
    %4082 = vmatpush2.msra.mxu0 0.0
    %4083 = vmatprep.subr.mxu0 0.0
    %4084 = vmatpush2.msra.mxu0 0.0
    %4085 = vmatprep.subr.mxu0 0.0
    %4086 = vmatpush2.msra.mxu0 0.0
    %4087 = vmatprep.subr.mxu0 0.0
    %4088 = vmatpush2.msra.mxu0 0.0
    %4089 = vmatprep.subr.mxu0 0.0
    %4090 = vmatpush2.msra.mxu0 0.0
    %4091 = vmatprep.subr.mxu0 0.0
    %4092 = vmatpush2.msra.mxu0 0.0
    %4093 = vmatprep.mubr.f32.mxu0 0.0
    %4094 = vmatmul.mubr.f32.gmra.mxu0 %v4027
    %v4095 = vpop.f32.mrf.mxu0
    %v4096 = vadd.f32 %v4023, %v4095
    %v4097 = vpop.f32.mrf.mxu0
    %4098 = vdwg.mxu0
    %v4099 = vmax.f32 %v4096, 0.0
    %v4100 = vld [vmem:[#allocation14] sm:$0x1]
    %v4102 = vlaneseq
    %v4103 = vshrl.u32 %v4102, 7
    %v4104 = vsub.s32 0, %v4103
    %v4105 = vrot.slane %v4100, %v4104
    %v4107 = vmul.f32 %v4099, %v4105
    %vm4108 = vcmask 261120
    %v4109 = vsel %vm4108, %v4107, 0.0
    %4110 = vadd.xlane.f32.xlu0 %v4109
    %v4111 = vpop.xlane.xlu0 %4110
    %v4112 = vld [vmem:[#allocation3] sm:$0x1]
    %v4114 = vlaneseq
    %v4115 = vshrl.u32 %v4114, 7
    %v4116 = vsub.s32 0, %v4115
    %v4117 = vrot.slane %v4112, %v4116
    %v4119 = vadd.f32 %v4111, %v4117
    %vm4120 = vcmask 7168
    %4121 = vst.msk [vmem:[%s12] sm:$0xff] %vm4120, %v4119
    // Predicated region
    $region78: #{base_model_forward.1} parent=1 // pred_check
      _
    $region79: #{base_model_forward.1} parent=1 // pred_check_branch
      %4123 = sbr.rel (0) target = $region81
    $region80: #{base_model_forward.1} parent=1 // pred_region
      _
    $region81: #{base_model_forward.1} parent=1 // pred_fallthru
      _
    // Predicated region
    $region82: #{base_model_forward.1} parent=1 // pred_check
      _
    $region83: #{base_model_forward.1} parent=1 // pred_check_branch
      %4125 = sbr.rel (0) target = $region85
    $region84: #{base_model_forward.1} parent=1 // pred_region
      _
    $region85: #{base_model_forward.1} parent=1 // pred_fallthru
      _
    %4126 = vsyncpa [#allocation5], 1
    %4127 = vsyncpa [#allocation7], 1
    %4128 = vsyncpa [#allocation10], 1
    %4129 = vsyncpa [#allocation13], 1

</llo_original>
